<compile_context>
chip_gen: v5e
topology: v5e:2x2
jax: 0.10.0
libtpu: 0.0.40
codegen_flags: <defaults>
</compile_context>

<pallas_src>
import functools

import jax
import jax.numpy as jnp
import numpy as np
from jax.experimental import pallas as pl
from jax.experimental.pallas import tpu as pltpu


def _round_up(x, m):
    return (x + m - 1) // m * m


def _rcab_kernel(x_ref, w1_ref, b1_ref, w2_ref, b2_ref, wd1_ref, wd2_ref,
                 ml_ref, mr_ref, o_ref, f_ref,
                 *, C, W, HW, Nc, base, R, res_scale):
    # Compute column t <-> pixel (t // W, t % W).  Hoist the broadcast masks
    # once (JAX does not CSE broadcast_in_dim): left/right-neighbour validity.
    ml = jnp.broadcast_to(ml_ref[...] != 0.0, (C, Nc))
    mr = jnp.broadcast_to(mr_ref[...] != 0.0, (C, Nc))

    def conv3x3(w_ref):
        # 9 accumulating (C,C)@(C,Nc) bf16 matmuls; RHS are lane-shifted views
        # of the padded bf16 feature buffer (no tap stores at all).
        acc = jnp.zeros((C, Nc), jnp.float32)
        for kh in range(3):
            for kw in range(3):
                d = (kh - 1) * W + (kw - 1)
                v = f_ref[:, base + d: base + d + Nc]      # bf16 view
                if kw == 0:
                    v = jnp.where(ml, v, 0)                # w == 0 has no left nbr
                elif kw == 2:
                    v = jnp.where(mr, v, 0)                # w == W-1 has no right nbr
                acc = acc + jnp.dot(w_ref[kh * 3 + kw], v,
                                    preferred_element_type=jnp.float32)
        return acc

    # Zero the padding halo (top/bottom rows + round-up tail).  The body is
    # fully rewritten below, so the scratch carries no cross-step state
    # (megacore-safe with a "parallel" batch axis).
    f_ref[:, 0:base] = jnp.zeros((C, base), jnp.bfloat16)
    f_ref[:, base + HW:R] = jnp.zeros((C, R - base - HW), jnp.bfloat16)

    # ---- conv1 (3x3, bias, ReLU) -------------------------------------------
    f_ref[:, base:base + HW] = x_ref[...].astype(jnp.bfloat16)    # cast once
    h1 = jnp.maximum(conv3x3(w1_ref) + b1_ref[...], 0.0)          # (C, Nc) f32

    # ---- conv2 (3x3, bias, no activation) ----------------------------------
    f_ref[:, base:base + HW] = h1[:, :HW].astype(jnp.bfloat16)
    h2 = conv3x3(w2_ref) + b2_ref[...]                            # (C, Nc) f32

    # ---- CALayer: global avg pool + 1x1 -> ReLU -> 1x1 -> sigmoid ----------
    y = jnp.sum(h2[:, :HW], axis=1, keepdims=True) * (1.0 / HW)              # (C, 1)
    z = jnp.maximum(jnp.sum(wd1_ref[...] * y, axis=0, keepdims=True), 0.0)   # (1, Cr)
    s_pre = jnp.sum(wd2_ref[...] * z, axis=1, keepdims=True)                 # (C, 1)
    s = 1.0 / (1.0 + jnp.exp(-s_pre))                                        # sigmoid

    # ---- residual: out = h2 * s * res_scale + x (lane-dense compact store) --
    o_ref[...] = (h2[:, :HW] * (s * res_scale) + x_ref[...]).astype(o_ref.dtype)


def rcab_pallas(x_nchw, wk1, b1, wk2, b2, wd1, wd2, *, res_scale=0.1):
    """RCAB forward.

    x_nchw : (N, C, H, W) f32
    wk1/wk2: (3, 3, C, C) 3x3 conv weights, layout [kh, kw, co, ci]
             (== PyTorch Conv2d weight[co, ci, kh, kw] transposed to (2,3,0,1))
    b1/b2  : (C,) conv biases
    wd1    : (C//r, C)  CALayer squeeze weight (1x1 conv, no bias)
    wd2    : (C, C//r)  CALayer excite weight (1x1 conv, no bias)
    """
    N, C, H, W = x_nchw.shape
    Cr = wd1.shape[0]
    assert C % 16 == 0, "channel count must be a multiple of 16 (bf16 sublane tiling)"
    assert wk1.shape == (3, 3, C, C) and wk2.shape == (3, 3, C, C)
    assert wd1.shape == (Cr, C) and wd2.shape == (C, Cr)

    HW = H * W
    Nc = _round_up(HW, 128)                     # lane-dense compute width
    base = _round_up(W + 1, 128)                # 128-aligned column of pixel (0, 0)
    R = base + Nc + _round_up(W + 1, 128)       # padded bf16 feature-buffer width

    # --- layout plumbing (all free: reshapes / small weight packs, no pad pass)
    x_flat = x_nchw.reshape(N, C, HW).astype(jnp.float32)

    w1_9 = wk1.reshape(9, C, C).astype(jnp.bfloat16)     # [kh*3+kw, co, ci]
    w2_9 = wk2.reshape(9, C, C).astype(jnp.bfloat16)
    b1c = b1.reshape(C, 1).astype(jnp.float32)
    b2c = b2.reshape(C, 1).astype(jnp.float32)
    wd1t = jnp.transpose(wd1).astype(jnp.float32)        # (C, Cr)
    wd2c = wd2.astype(jnp.float32)                       # (C, Cr)

    # Horizontal-edge masks for the stride-W flattening: the dw=-1 taps are
    # invalid at w == 0, the dw=+1 taps at w == W-1.
    t = np.arange(Nc)
    ml = jnp.asarray(((t % W) != 0).astype(np.float32)).reshape(1, Nc)
    mr = jnp.asarray(((t % W) != W - 1).astype(np.float32)).reshape(1, Nc)

    kernel = functools.partial(
        _rcab_kernel, C=C, W=W, HW=HW, Nc=Nc, base=base, R=R,
        res_scale=float(res_scale))

    flops = N * (2 * 2 * 9 * C * C * HW + 4 * C * Cr + 6 * C * HW)
    bytes_accessed = (2 * N * C * HW * 4                 # x in + out
                      + 2 * 9 * C * C * 2                # conv weights (bf16)
                      + 2 * C * Cr * 4 + 2 * C * 4 + 2 * Nc * 4)
    cost = pl.CostEstimate(flops=flops, transcendentals=N * C,
                           bytes_accessed=bytes_accessed)

    out = pl.pallas_call(
        kernel,
        out_shape=jax.ShapeDtypeStruct((N, C, HW), jnp.float32),
        grid_spec=pltpu.PrefetchScalarGridSpec(
            num_scalar_prefetch=0,
            grid=(N,),
            in_specs=[
                pl.BlockSpec((None, C, HW), lambda b: (b, 0, 0)),   # x (compact)
                pl.BlockSpec((9, C, C), lambda b: (0, 0, 0)),       # W1 taps
                pl.BlockSpec((C, 1), lambda b: (0, 0)),             # b1
                pl.BlockSpec((9, C, C), lambda b: (0, 0, 0)),       # W2 taps
                pl.BlockSpec((C, 1), lambda b: (0, 0)),             # b2
                pl.BlockSpec((C, Cr), lambda b: (0, 0)),            # Wd1^T
                pl.BlockSpec((C, Cr), lambda b: (0, 0)),            # Wd2
                pl.BlockSpec((1, Nc), lambda b: (0, 0)),            # left-nbr mask
                pl.BlockSpec((1, Nc), lambda b: (0, 0)),            # right-nbr mask
            ],
            out_specs=pl.BlockSpec((None, C, HW), lambda b: (b, 0, 0)),
            scratch_shapes=[
                pltpu.VMEM((C, R), jnp.bfloat16),   # zero-padded bf16 feature buffer
            ],
        ),
        compiler_params=pltpu.CompilerParams(
            dimension_semantics=("parallel",),
            vmem_limit_bytes=32 * 1024 * 1024),
        cost_estimate=cost,
    )(x_flat, w1_9, b1c, w2_9, b2c, wd1t, wd2c, ml, mr)

    return out.reshape(N, C, H, W)   # free reshape, no crop pass


# ---------------------------------------------------------------------------
# Pure-JAX reference (mirrors the PyTorch module) for correctness checking.
# ---------------------------------------------------------------------------
def _reference(x, wk1, b1, wk2, b2, wd1, wd2, *, res_scale=0.1):
    w1 = jnp.transpose(wk1, (2, 3, 0, 1))   # -> OIHW
    w2 = jnp.transpose(wk2, (2, 3, 0, 1))
    conv = lambda v, w: jax.lax.conv_general_dilated(
        v, w, window_strides=(1, 1), padding="SAME",
        dimension_numbers=("NCHW", "OIHW", "NCHW"))
    h1 = jax.nn.relu(conv(x, w1) + b1.reshape(1, -1, 1, 1))
    h2 = conv(h1, w2) + b2.reshape(1, -1, 1, 1)
    y = jnp.mean(h2, axis=(2, 3))                       # (N, C)
    z = jax.nn.relu(y @ wd1.T)                          # (N, Cr)
    s = jax.nn.sigmoid(z @ wd2.T)                       # (N, C)
    res = h2 * s[:, :, None, None]
    return res * res_scale + x


if __name__ == "__main__":
    # Small shapes consistent with the module (reduction must divide n_feat).
    N, C, H, W = 2, 32, 16, 16
    reduction = 8
    Cr = C // reduction

    key = jax.random.PRNGKey(0)
    k = jax.random.split(key, 7)
    x = jax.random.normal(k[0], (N, C, H, W), jnp.float32)
    wk1 = 0.1 * jax.random.normal(k[1], (3, 3, C, C), jnp.float32)   # [kh,kw,co,ci]
    b1 = 0.1 * jax.random.normal(k[2], (C,), jnp.float32)
    wk2 = 0.1 * jax.random.normal(k[3], (3, 3, C, C), jnp.float32)
    b2 = 0.1 * jax.random.normal(k[4], (C,), jnp.float32)
    wd1 = 0.5 * jax.random.normal(k[5], (Cr, C), jnp.float32)
    wd2 = 0.5 * jax.random.normal(k[6], (C, Cr), jnp.float32)

    out = rcab_pallas(x, wk1, b1, wk2, b2, wd1, wd2, res_scale=0.1)
    out = jax.block_until_ready(out)

    ref = _reference(x, wk1, b1, wk2, b2, wd1, wd2, res_scale=0.1)
    # bf16 MXU operands (f32 accumulation) -> tolerance a bit looser than pure f32.
    np.testing.assert_allclose(np.asarray(out), np.asarray(ref),
                               rtol=2e-2, atol=2e-2)
    print("KERNEL_OK")
</pallas_src>

<mosaic_0001>
module attributes {stable_mosaic.version = 11 : i64} {
  func.func @_rcab_kernel(%arg0: i32, %arg1: memref<1x32x256xf32, #tpu.memory_space<vmem>>, %arg2: memref<9x32x32xbf16, #tpu.memory_space<vmem>>, %arg3: memref<32x1xf32, #tpu.memory_space<vmem>>, %arg4: memref<9x32x32xbf16, #tpu.memory_space<vmem>>, %arg5: memref<32x1xf32, #tpu.memory_space<vmem>>, %arg6: memref<32x4xf32, #tpu.memory_space<vmem>>, %arg7: memref<32x4xf32, #tpu.memory_space<vmem>>, %arg8: memref<1x256xf32, #tpu.memory_space<vmem>>, %arg9: memref<1x256xf32, #tpu.memory_space<vmem>>, %arg10: memref<1x32x256xf32, #tpu.memory_space<vmem>>, %arg11: memref<32x512xbf16, #tpu.memory_space<vmem>>) attributes {dimension_semantics = [#tpu.dimension_semantics<parallel>], iteration_bounds = array<i64: 2>, scalar_prefetch = 0 : i64, scratch_operands = 1 : i64, tpu.core_type = #tpu.core_type<tc>, window_params = [{transform_indices = @transform_0, window_bounds = array<i64: 1, 32, 256>}, {pipeline_mode = #tpu.pipeline_mode<synchronous>, transform_indices = @transform_1, window_bounds = array<i64: 9, 32, 32>}, {pipeline_mode = #tpu.pipeline_mode<synchronous>, transform_indices = @transform_2, window_bounds = array<i64: 32, 1>}, {pipeline_mode = #tpu.pipeline_mode<synchronous>, transform_indices = @transform_3, window_bounds = array<i64: 9, 32, 32>}, {pipeline_mode = #tpu.pipeline_mode<synchronous>, transform_indices = @transform_4, window_bounds = array<i64: 32, 1>}, {pipeline_mode = #tpu.pipeline_mode<synchronous>, transform_indices = @transform_5, window_bounds = array<i64: 32, 4>}, {pipeline_mode = #tpu.pipeline_mode<synchronous>, transform_indices = @transform_6, window_bounds = array<i64: 32, 4>}, {pipeline_mode = #tpu.pipeline_mode<synchronous>, transform_indices = @transform_7, window_bounds = array<i64: 1, 256>}, {pipeline_mode = #tpu.pipeline_mode<synchronous>, transform_indices = @transform_8, window_bounds = array<i64: 1, 256>}, {transform_indices = @transform_9, window_bounds = array<i64: 1, 32, 256>}]} {
    %c0 = arith.constant 0 : index
    %c0_0 = arith.constant 0 : index
    %0 = vector.load %arg8[%c0, %c0_0] : memref<1x256xf32, #tpu.memory_space<vmem>>, vector<1x256xf32>
    %cst = arith.constant 0.000000e+00 : f32
    %1 = vector.broadcast %cst : f32 to vector<1x256xf32>
    %2 = arith.cmpf one, %0, %1 : vector<1x256xf32>
    %3 = vector.shape_cast %2 : vector<1x256xi1> to vector<1x256xi1>
    %4 = vector.broadcast %3 : vector<1x256xi1> to vector<32x256xi1>
    %c0_1 = arith.constant 0 : index
    %c0_2 = arith.constant 0 : index
    %5 = vector.load %arg9[%c0_1, %c0_2] : memref<1x256xf32, #tpu.memory_space<vmem>>, vector<1x256xf32>
    %cst_3 = arith.constant 0.000000e+00 : f32
    %6 = vector.broadcast %cst_3 : f32 to vector<1x256xf32>
    %7 = arith.cmpf one, %5, %6 : vector<1x256xf32>
    %8 = vector.shape_cast %7 : vector<1x256xi1> to vector<1x256xi1>
    %9 = vector.broadcast %8 : vector<1x256xi1> to vector<32x256xi1>
    %cst_4 = arith.constant 0.000000e+00 : bf16
    %10 = vector.broadcast %cst_4 : bf16 to vector<32x128xbf16>
    %c0_5 = arith.constant 0 : index
    %c0_6 = arith.constant 0 : index
    %11 = vector.load %arg11[%c0_5, %c0_6] : memref<32x512xbf16, #tpu.memory_space<vmem>>, vector<32x128xbf16>
    tpu.vector_store %arg11[%c0_5, %c0_6], %10 {strides = array<i32>} : memref<32x512xbf16, #tpu.memory_space<vmem>>, vector<32x128xbf16>,
    %cst_7 = arith.constant 0.000000e+00 : bf16
    %12 = vector.broadcast %cst_7 : bf16 to vector<32x128xbf16>
    %c0_8 = arith.constant 0 : index
    %c384 = arith.constant 384 : index
    %13 = vector.load %arg11[%c0_8, %c384] : memref<32x512xbf16, #tpu.memory_space<vmem>>, vector<32x128xbf16>
    tpu.vector_store %arg11[%c0_8, %c384], %12 {strides = array<i32>} : memref<32x512xbf16, #tpu.memory_space<vmem>>, vector<32x128xbf16>,
    %c0_9 = arith.constant 0 : index
    %c0_10 = arith.constant 0 : index
    %c0_11 = arith.constant 0 : index
    %14 = vector.load %arg1[%c0_9, %c0_10, %c0_11] : memref<1x32x256xf32, #tpu.memory_space<vmem>>, vector<1x32x256xf32>
    %15 = vector.shape_cast %14 : vector<1x32x256xf32> to vector<32x256xf32>
    %16 = arith.truncf %15 : vector<32x256xf32> to vector<32x256xbf16>
    %c0_12 = arith.constant 0 : index
    %c128 = arith.constant 128 : index
    %17 = vector.load %arg11[%c0_12, %c128] : memref<32x512xbf16, #tpu.memory_space<vmem>>, vector<32x256xbf16>
    tpu.vector_store %arg11[%c0_12, %c128], %16 {strides = array<i32>} : memref<32x512xbf16, #tpu.memory_space<vmem>>, vector<32x256xbf16>,
    %cst_13 = arith.constant 0.000000e+00 : f32
    %18 = vector.broadcast %cst_13 : f32 to vector<32x256xf32>
    %c0_14 = arith.constant 0 : index
    %c111 = arith.constant 111 : index
    %19 = vector.load %arg11[%c0_14, %c111] : memref<32x512xbf16, #tpu.memory_space<vmem>>, vector<32x256xbf16>
    %c0_i32 = arith.constant 0 : i32
    %20 = arith.sitofp %c0_i32 : i32 to bf16
    %21 = vector.broadcast %20 : bf16 to vector<32x256xbf16>
    %22 = arith.select %4, %19, %21 : vector<32x256xi1>, vector<32x256xbf16>
    %c0_15 = arith.constant 0 : index
    %c0_16 = arith.constant 0 : index
    %c0_17 = arith.constant 0 : index
    %23 = vector.load %arg2[%c0_15, %c0_16, %c0_17] : memref<9x32x32xbf16, #tpu.memory_space<vmem>>, vector<1x32x32xbf16>
    %24 = vector.shape_cast %23 : vector<1x32x32xbf16> to vector<32x32xbf16>
    %cst_18 = arith.constant dense<0.000000e+00> : vector<32x256xf32>
    %25 = tpu.matmul %24, %22, %cst_18 {dimension_numbers = #tpu.dot_dimension_numbers<[1], [0], [0], [1], [0, 0, 1, 1], [], []>} : vector<32x32xbf16>, vector<32x256xbf16>, vector<32x256xf32> -> vector<32x256xf32>
    %26 = arith.addf %18, %25 : vector<32x256xf32>
    %c0_19 = arith.constant 0 : index
    %c112 = arith.constant 112 : index
    %27 = vector.load %arg11[%c0_19, %c112] : memref<32x512xbf16, #tpu.memory_space<vmem>>, vector<32x256xbf16>
    %c1 = arith.constant 1 : index
    %c0_20 = arith.constant 0 : index
    %c0_21 = arith.constant 0 : index
    %28 = vector.load %arg2[%c1, %c0_20, %c0_21] : memref<9x32x32xbf16, #tpu.memory_space<vmem>>, vector<1x32x32xbf16>
    %29 = vector.shape_cast %28 : vector<1x32x32xbf16> to vector<32x32xbf16>
    %cst_22 = arith.constant dense<0.000000e+00> : vector<32x256xf32>
    %30 = tpu.matmul %29, %27, %cst_22 {dimension_numbers = #tpu.dot_dimension_numbers<[1], [0], [0], [1], [0, 0, 1, 1], [], []>} : vector<32x32xbf16>, vector<32x256xbf16>, vector<32x256xf32> -> vector<32x256xf32>
    %31 = arith.addf %26, %30 : vector<32x256xf32>
    %c0_23 = arith.constant 0 : index
    %c113 = arith.constant 113 : index
    %32 = vector.load %arg11[%c0_23, %c113] : memref<32x512xbf16, #tpu.memory_space<vmem>>, vector<32x256xbf16>
    %c0_i32_24 = arith.constant 0 : i32
    %33 = arith.sitofp %c0_i32_24 : i32 to bf16
    %34 = vector.broadcast %33 : bf16 to vector<32x256xbf16>
    %35 = arith.select %9, %32, %34 : vector<32x256xi1>, vector<32x256xbf16>
    %c2 = arith.constant 2 : index
    %c0_25 = arith.constant 0 : index
    %c0_26 = arith.constant 0 : index
    %36 = vector.load %arg2[%c2, %c0_25, %c0_26] : memref<9x32x32xbf16, #tpu.memory_space<vmem>>, vector<1x32x32xbf16>
    %37 = vector.shape_cast %36 : vector<1x32x32xbf16> to vector<32x32xbf16>
    %cst_27 = arith.constant dense<0.000000e+00> : vector<32x256xf32>
    %38 = tpu.matmul %37, %35, %cst_27 {dimension_numbers = #tpu.dot_dimension_numbers<[1], [0], [0], [1], [0, 0, 1, 1], [], []>} : vector<32x32xbf16>, vector<32x256xbf16>, vector<32x256xf32> -> vector<32x256xf32>
    %39 = arith.addf %31, %38 : vector<32x256xf32>
    %c0_28 = arith.constant 0 : index
    %c127 = arith.constant 127 : index
    %40 = vector.load %arg11[%c0_28, %c127] : memref<32x512xbf16, #tpu.memory_space<vmem>>, vector<32x256xbf16>
    %c0_i32_29 = arith.constant 0 : i32
    %41 = arith.sitofp %c0_i32_29 : i32 to bf16
    %42 = vector.broadcast %41 : bf16 to vector<32x256xbf16>
    %43 = arith.select %4, %40, %42 : vector<32x256xi1>, vector<32x256xbf16>
    %c3 = arith.constant 3 : index
    %c0_30 = arith.constant 0 : index
    %c0_31 = arith.constant 0 : index
    %44 = vector.load %arg2[%c3, %c0_30, %c0_31] : memref<9x32x32xbf16, #tpu.memory_space<vmem>>, vector<1x32x32xbf16>
    %45 = vector.shape_cast %44 : vector<1x32x32xbf16> to vector<32x32xbf16>
    %cst_32 = arith.constant dense<0.000000e+00> : vector<32x256xf32>
    %46 = tpu.matmul %45, %43, %cst_32 {dimension_numbers = #tpu.dot_dimension_numbers<[1], [0], [0], [1], [0, 0, 1, 1], [], []>} : vector<32x32xbf16>, vector<32x256xbf16>, vector<32x256xf32> -> vector<32x256xf32>
    %47 = arith.addf %39, %46 : vector<32x256xf32>
    %c0_33 = arith.constant 0 : index
    %c128_34 = arith.constant 128 : index
    %48 = vector.load %arg11[%c0_33, %c128_34] : memref<32x512xbf16, #tpu.memory_space<vmem>>, vector<32x256xbf16>
    %c4 = arith.constant 4 : index
    %c0_35 = arith.constant 0 : index
    %c0_36 = arith.constant 0 : index
    %49 = vector.load %arg2[%c4, %c0_35, %c0_36] : memref<9x32x32xbf16, #tpu.memory_space<vmem>>, vector<1x32x32xbf16>
    %50 = vector.shape_cast %49 : vector<1x32x32xbf16> to vector<32x32xbf16>
    %cst_37 = arith.constant dense<0.000000e+00> : vector<32x256xf32>
    %51 = tpu.matmul %50, %48, %cst_37 {dimension_numbers = #tpu.dot_dimension_numbers<[1], [0], [0], [1], [0, 0, 1, 1], [], []>} : vector<32x32xbf16>, vector<32x256xbf16>, vector<32x256xf32> -> vector<32x256xf32>
    %52 = arith.addf %47, %51 : vector<32x256xf32>
    %c0_38 = arith.constant 0 : index
    %c129 = arith.constant 129 : index
    %53 = vector.load %arg11[%c0_38, %c129] : memref<32x512xbf16, #tpu.memory_space<vmem>>, vector<32x256xbf16>
    %c0_i32_39 = arith.constant 0 : i32
    %54 = arith.sitofp %c0_i32_39 : i32 to bf16
    %55 = vector.broadcast %54 : bf16 to vector<32x256xbf16>
    %56 = arith.select %9, %53, %55 : vector<32x256xi1>, vector<32x256xbf16>
    %c5 = arith.constant 5 : index
    %c0_40 = arith.constant 0 : index
    %c0_41 = arith.constant 0 : index
    %57 = vector.load %arg2[%c5, %c0_40, %c0_41] : memref<9x32x32xbf16, #tpu.memory_space<vmem>>, vector<1x32x32xbf16>
    %58 = vector.shape_cast %57 : vector<1x32x32xbf16> to vector<32x32xbf16>
    %cst_42 = arith.constant dense<0.000000e+00> : vector<32x256xf32>
    %59 = tpu.matmul %58, %56, %cst_42 {dimension_numbers = #tpu.dot_dimension_numbers<[1], [0], [0], [1], [0, 0, 1, 1], [], []>} : vector<32x32xbf16>, vector<32x256xbf16>, vector<32x256xf32> -> vector<32x256xf32>
    %60 = arith.addf %52, %59 : vector<32x256xf32>
    %c0_43 = arith.constant 0 : index
    %c143 = arith.constant 143 : index
    %61 = vector.load %arg11[%c0_43, %c143] : memref<32x512xbf16, #tpu.memory_space<vmem>>, vector<32x256xbf16>
    %c0_i32_44 = arith.constant 0 : i32
    %62 = arith.sitofp %c0_i32_44 : i32 to bf16
    %63 = vector.broadcast %62 : bf16 to vector<32x256xbf16>
    %64 = arith.select %4, %61, %63 : vector<32x256xi1>, vector<32x256xbf16>
    %c6 = arith.constant 6 : index
    %c0_45 = arith.constant 0 : index
    %c0_46 = arith.constant 0 : index
    %65 = vector.load %arg2[%c6, %c0_45, %c0_46] : memref<9x32x32xbf16, #tpu.memory_space<vmem>>, vector<1x32x32xbf16>
    %66 = vector.shape_cast %65 : vector<1x32x32xbf16> to vector<32x32xbf16>
    %cst_47 = arith.constant dense<0.000000e+00> : vector<32x256xf32>
    %67 = tpu.matmul %66, %64, %cst_47 {dimension_numbers = #tpu.dot_dimension_numbers<[1], [0], [0], [1], [0, 0, 1, 1], [], []>} : vector<32x32xbf16>, vector<32x256xbf16>, vector<32x256xf32> -> vector<32x256xf32>
    %68 = arith.addf %60, %67 : vector<32x256xf32>
    %c0_48 = arith.constant 0 : index
    %c144 = arith.constant 144 : index
    %69 = vector.load %arg11[%c0_48, %c144] : memref<32x512xbf16, #tpu.memory_space<vmem>>, vector<32x256xbf16>
    %c7 = arith.constant 7 : index
    %c0_49 = arith.constant 0 : index
    %c0_50 = arith.constant 0 : index
    %70 = vector.load %arg2[%c7, %c0_49, %c0_50] : memref<9x32x32xbf16, #tpu.memory_space<vmem>>, vector<1x32x32xbf16>
    %71 = vector.shape_cast %70 : vector<1x32x32xbf16> to vector<32x32xbf16>
    %cst_51 = arith.constant dense<0.000000e+00> : vector<32x256xf32>
    %72 = tpu.matmul %71, %69, %cst_51 {dimension_numbers = #tpu.dot_dimension_numbers<[1], [0], [0], [1], [0, 0, 1, 1], [], []>} : vector<32x32xbf16>, vector<32x256xbf16>, vector<32x256xf32> -> vector<32x256xf32>
    %73 = arith.addf %68, %72 : vector<32x256xf32>
    %c0_52 = arith.constant 0 : index
    %c145 = arith.constant 145 : index
    %74 = vector.load %arg11[%c0_52, %c145] : memref<32x512xbf16, #tpu.memory_space<vmem>>, vector<32x256xbf16>
    %c0_i32_53 = arith.constant 0 : i32
    %75 = arith.sitofp %c0_i32_53 : i32 to bf16
    %76 = vector.broadcast %75 : bf16 to vector<32x256xbf16>
    %77 = arith.select %9, %74, %76 : vector<32x256xi1>, vector<32x256xbf16>
    %c8 = arith.constant 8 : index
    %c0_54 = arith.constant 0 : index
    %c0_55 = arith.constant 0 : index
    %78 = vector.load %arg2[%c8, %c0_54, %c0_55] : memref<9x32x32xbf16, #tpu.memory_space<vmem>>, vector<1x32x32xbf16>
    %79 = vector.shape_cast %78 : vector<1x32x32xbf16> to vector<32x32xbf16>
    %cst_56 = arith.constant dense<0.000000e+00> : vector<32x256xf32>
    %80 = tpu.matmul %79, %77, %cst_56 {dimension_numbers = #tpu.dot_dimension_numbers<[1], [0], [0], [1], [0, 0, 1, 1], [], []>} : vector<32x32xbf16>, vector<32x256xbf16>, vector<32x256xf32> -> vector<32x256xf32>
    %81 = arith.addf %73, %80 : vector<32x256xf32>
    %c0_57 = arith.constant 0 : index
    %c0_58 = arith.constant 0 : index
    %82 = vector.load %arg3[%c0_57, %c0_58] : memref<32x1xf32, #tpu.memory_space<vmem>>, vector<32x1xf32>
    %83 = vector.broadcast %82 : vector<32x1xf32> to vector<32x256xf32>
    %84 = arith.addf %81, %83 : vector<32x256xf32>
    %cst_59 = arith.constant 0.000000e+00 : f32
    %85 = vector.broadcast %cst_59 : f32 to vector<32x256xf32>
    %86 = arith.maximumf %84, %85 : vector<32x256xf32>
    %87 = arith.truncf %86 : vector<32x256xf32> to vector<32x256xbf16>
    %c0_60 = arith.constant 0 : index
    %c128_61 = arith.constant 128 : index
    %88 = vector.load %arg11[%c0_60, %c128_61] : memref<32x512xbf16, #tpu.memory_space<vmem>>, vector<32x256xbf16>
    tpu.vector_store %arg11[%c0_60, %c128_61], %87 {strides = array<i32>} : memref<32x512xbf16, #tpu.memory_space<vmem>>, vector<32x256xbf16>,
    %cst_62 = arith.constant 0.000000e+00 : f32
    %89 = vector.broadcast %cst_62 : f32 to vector<32x256xf32>
    %c0_63 = arith.constant 0 : index
    %c111_64 = arith.constant 111 : index
    %90 = vector.load %arg11[%c0_63, %c111_64] : memref<32x512xbf16, #tpu.memory_space<vmem>>, vector<32x256xbf16>
    %c0_i32_65 = arith.constant 0 : i32
    %91 = arith.sitofp %c0_i32_65 : i32 to bf16
    %92 = vector.broadcast %91 : bf16 to vector<32x256xbf16>
    %93 = arith.select %4, %90, %92 : vector<32x256xi1>, vector<32x256xbf16>
    %c0_66 = arith.constant 0 : index
    %c0_67 = arith.constant 0 : index
    %c0_68 = arith.constant 0 : index
    %94 = vector.load %arg4[%c0_66, %c0_67, %c0_68] : memref<9x32x32xbf16, #tpu.memory_space<vmem>>, vector<1x32x32xbf16>
    %95 = vector.shape_cast %94 : vector<1x32x32xbf16> to vector<32x32xbf16>
    %cst_69 = arith.constant dense<0.000000e+00> : vector<32x256xf32>
    %96 = tpu.matmul %95, %93, %cst_69 {dimension_numbers = #tpu.dot_dimension_numbers<[1], [0], [0], [1], [0, 0, 1, 1], [], []>} : vector<32x32xbf16>, vector<32x256xbf16>, vector<32x256xf32> -> vector<32x256xf32>
    %97 = arith.addf %89, %96 : vector<32x256xf32>
    %c0_70 = arith.constant 0 : index
    %c112_71 = arith.constant 112 : index
    %98 = vector.load %arg11[%c0_70, %c112_71] : memref<32x512xbf16, #tpu.memory_space<vmem>>, vector<32x256xbf16>
    %c1_72 = arith.constant 1 : index
    %c0_73 = arith.constant 0 : index
    %c0_74 = arith.constant 0 : index
    %99 = vector.load %arg4[%c1_72, %c0_73, %c0_74] : memref<9x32x32xbf16, #tpu.memory_space<vmem>>, vector<1x32x32xbf16>
    %100 = vector.shape_cast %99 : vector<1x32x32xbf16> to vector<32x32xbf16>
    %cst_75 = arith.constant dense<0.000000e+00> : vector<32x256xf32>
    %101 = tpu.matmul %100, %98, %cst_75 {dimension_numbers = #tpu.dot_dimension_numbers<[1], [0], [0], [1], [0, 0, 1, 1], [], []>} : vector<32x32xbf16>, vector<32x256xbf16>, vector<32x256xf32> -> vector<32x256xf32>
    %102 = arith.addf %97, %101 : vector<32x256xf32>
    %c0_76 = arith.constant 0 : index
    %c113_77 = arith.constant 113 : index
    %103 = vector.load %arg11[%c0_76, %c113_77] : memref<32x512xbf16, #tpu.memory_space<vmem>>, vector<32x256xbf16>
    %c0_i32_78 = arith.constant 0 : i32
    %104 = arith.sitofp %c0_i32_78 : i32 to bf16
    %105 = vector.broadcast %104 : bf16 to vector<32x256xbf16>
    %106 = arith.select %9, %103, %105 : vector<32x256xi1>, vector<32x256xbf16>
    %c2_79 = arith.constant 2 : index
    %c0_80 = arith.constant 0 : index
    %c0_81 = arith.constant 0 : index
    %107 = vector.load %arg4[%c2_79, %c0_80, %c0_81] : memref<9x32x32xbf16, #tpu.memory_space<vmem>>, vector<1x32x32xbf16>
    %108 = vector.shape_cast %107 : vector<1x32x32xbf16> to vector<32x32xbf16>
    %cst_82 = arith.constant dense<0.000000e+00> : vector<32x256xf32>
    %109 = tpu.matmul %108, %106, %cst_82 {dimension_numbers = #tpu.dot_dimension_numbers<[1], [0], [0], [1], [0, 0, 1, 1], [], []>} : vector<32x32xbf16>, vector<32x256xbf16>, vector<32x256xf32> -> vector<32x256xf32>
    %110 = arith.addf %102, %109 : vector<32x256xf32>
    %c0_83 = arith.constant 0 : index
    %c127_84 = arith.constant 127 : index
    %111 = vector.load %arg11[%c0_83, %c127_84] : memref<32x512xbf16, #tpu.memory_space<vmem>>, vector<32x256xbf16>
    %c0_i32_85 = arith.constant 0 : i32
    %112 = arith.sitofp %c0_i32_85 : i32 to bf16
    %113 = vector.broadcast %112 : bf16 to vector<32x256xbf16>
    %114 = arith.select %4, %111, %113 : vector<32x256xi1>, vector<32x256xbf16>
    %c3_86 = arith.constant 3 : index
    %c0_87 = arith.constant 0 : index
    %c0_88 = arith.constant 0 : index
    %115 = vector.load %arg4[%c3_86, %c0_87, %c0_88] : memref<9x32x32xbf16, #tpu.memory_space<vmem>>, vector<1x32x32xbf16>
    %116 = vector.shape_cast %115 : vector<1x32x32xbf16> to vector<32x32xbf16>
    %cst_89 = arith.constant dense<0.000000e+00> : vector<32x256xf32>
    %117 = tpu.matmul %116, %114, %cst_89 {dimension_numbers = #tpu.dot_dimension_numbers<[1], [0], [0], [1], [0, 0, 1, 1], [], []>} : vector<32x32xbf16>, vector<32x256xbf16>, vector<32x256xf32> -> vector<32x256xf32>
    %118 = arith.addf %110, %117 : vector<32x256xf32>
    %c0_90 = arith.constant 0 : index
    %c128_91 = arith.constant 128 : index
    %119 = vector.load %arg11[%c0_90, %c128_91] : memref<32x512xbf16, #tpu.memory_space<vmem>>, vector<32x256xbf16>
    %c4_92 = arith.constant 4 : index
    %c0_93 = arith.constant 0 : index
    %c0_94 = arith.constant 0 : index
    %120 = vector.load %arg4[%c4_92, %c0_93, %c0_94] : memref<9x32x32xbf16, #tpu.memory_space<vmem>>, vector<1x32x32xbf16>
    %121 = vector.shape_cast %120 : vector<1x32x32xbf16> to vector<32x32xbf16>
    %cst_95 = arith.constant dense<0.000000e+00> : vector<32x256xf32>
    %122 = tpu.matmul %121, %119, %cst_95 {dimension_numbers = #tpu.dot_dimension_numbers<[1], [0], [0], [1], [0, 0, 1, 1], [], []>} : vector<32x32xbf16>, vector<32x256xbf16>, vector<32x256xf32> -> vector<32x256xf32>
    %123 = arith.addf %118, %122 : vector<32x256xf32>
    %c0_96 = arith.constant 0 : index
    %c129_97 = arith.constant 129 : index
    %124 = vector.load %arg11[%c0_96, %c129_97] : memref<32x512xbf16, #tpu.memory_space<vmem>>, vector<32x256xbf16>
    %c0_i32_98 = arith.constant 0 : i32
    %125 = arith.sitofp %c0_i32_98 : i32 to bf16
    %126 = vector.broadcast %125 : bf16 to vector<32x256xbf16>
    %127 = arith.select %9, %124, %126 : vector<32x256xi1>, vector<32x256xbf16>
    %c5_99 = arith.constant 5 : index
    %c0_100 = arith.constant 0 : index
    %c0_101 = arith.constant 0 : index
    %128 = vector.load %arg4[%c5_99, %c0_100, %c0_101] : memref<9x32x32xbf16, #tpu.memory_space<vmem>>, vector<1x32x32xbf16>
    %129 = vector.shape_cast %128 : vector<1x32x32xbf16> to vector<32x32xbf16>
    %cst_102 = arith.constant dense<0.000000e+00> : vector<32x256xf32>
    %130 = tpu.matmul %129, %127, %cst_102 {dimension_numbers = #tpu.dot_dimension_numbers<[1], [0], [0], [1], [0, 0, 1, 1], [], []>} : vector<32x32xbf16>, vector<32x256xbf16>, vector<32x256xf32> -> vector<32x256xf32>
    %131 = arith.addf %123, %130 : vector<32x256xf32>
    %c0_103 = arith.constant 0 : index
    %c143_104 = arith.constant 143 : index
    %132 = vector.load %arg11[%c0_103, %c143_104] : memref<32x512xbf16, #tpu.memory_space<vmem>>, vector<32x256xbf16>
    %c0_i32_105 = arith.constant 0 : i32
    %133 = arith.sitofp %c0_i32_105 : i32 to bf16
    %134 = vector.broadcast %133 : bf16 to vector<32x256xbf16>
    %135 = arith.select %4, %132, %134 : vector<32x256xi1>, vector<32x256xbf16>
    %c6_106 = arith.constant 6 : index
    %c0_107 = arith.constant 0 : index
    %c0_108 = arith.constant 0 : index
    %136 = vector.load %arg4[%c6_106, %c0_107, %c0_108] : memref<9x32x32xbf16, #tpu.memory_space<vmem>>, vector<1x32x32xbf16>
    %137 = vector.shape_cast %136 : vector<1x32x32xbf16> to vector<32x32xbf16>
    %cst_109 = arith.constant dense<0.000000e+00> : vector<32x256xf32>
    %138 = tpu.matmul %137, %135, %cst_109 {dimension_numbers = #tpu.dot_dimension_numbers<[1], [0], [0], [1], [0, 0, 1, 1], [], []>} : vector<32x32xbf16>, vector<32x256xbf16>, vector<32x256xf32> -> vector<32x256xf32>
    %139 = arith.addf %131, %138 : vector<32x256xf32>
    %c0_110 = arith.constant 0 : index
    %c144_111 = arith.constant 144 : index
    %140 = vector.load %arg11[%c0_110, %c144_111] : memref<32x512xbf16, #tpu.memory_space<vmem>>, vector<32x256xbf16>
    %c7_112 = arith.constant 7 : index
    %c0_113 = arith.constant 0 : index
    %c0_114 = arith.constant 0 : index
    %141 = vector.load %arg4[%c7_112, %c0_113, %c0_114] : memref<9x32x32xbf16, #tpu.memory_space<vmem>>, vector<1x32x32xbf16>
    %142 = vector.shape_cast %141 : vector<1x32x32xbf16> to vector<32x32xbf16>
    %cst_115 = arith.constant dense<0.000000e+00> : vector<32x256xf32>
    %143 = tpu.matmul %142, %140, %cst_115 {dimension_numbers = #tpu.dot_dimension_numbers<[1], [0], [0], [1], [0, 0, 1, 1], [], []>} : vector<32x32xbf16>, vector<32x256xbf16>, vector<32x256xf32> -> vector<32x256xf32>
    %144 = arith.addf %139, %143 : vector<32x256xf32>
    %c0_116 = arith.constant 0 : index
    %c145_117 = arith.constant 145 : index
    %145 = vector.load %arg11[%c0_116, %c145_117] : memref<32x512xbf16, #tpu.memory_space<vmem>>, vector<32x256xbf16>
    %c0_i32_118 = arith.constant 0 : i32
    %146 = arith.sitofp %c0_i32_118 : i32 to bf16
    %147 = vector.broadcast %146 : bf16 to vector<32x256xbf16>
    %148 = arith.select %9, %145, %147 : vector<32x256xi1>, vector<32x256xbf16>
    %c8_119 = arith.constant 8 : index
    %c0_120 = arith.constant 0 : index
    %c0_121 = arith.constant 0 : index
    %149 = vector.load %arg4[%c8_119, %c0_120, %c0_121] : memref<9x32x32xbf16, #tpu.memory_space<vmem>>, vector<1x32x32xbf16>
    %150 = vector.shape_cast %149 : vector<1x32x32xbf16> to vector<32x32xbf16>
    %cst_122 = arith.constant dense<0.000000e+00> : vector<32x256xf32>
    %151 = tpu.matmul %150, %148, %cst_122 {dimension_numbers = #tpu.dot_dimension_numbers<[1], [0], [0], [1], [0, 0, 1, 1], [], []>} : vector<32x32xbf16>, vector<32x256xbf16>, vector<32x256xf32> -> vector<32x256xf32>
    %152 = arith.addf %144, %151 : vector<32x256xf32>
    %c0_123 = arith.constant 0 : index
    %c0_124 = arith.constant 0 : index
    %153 = vector.load %arg5[%c0_123, %c0_124] : memref<32x1xf32, #tpu.memory_space<vmem>>, vector<32x1xf32>
    %154 = vector.broadcast %153 : vector<32x1xf32> to vector<32x256xf32>
    %155 = arith.addf %152, %154 : vector<32x256xf32>
    %cst_125 = arith.constant dense<0.000000e+00> : vector<32xf32>
    %156 = vector.multi_reduction <add>, %155, %cst_125 [1] : vector<32x256xf32> to vector<32xf32>
    %157 = vector.shape_cast %156 : vector<32xf32> to vector<32x1xf32>
    %cst_126 = arith.constant 3.906250e-03 : f32
    %158 = vector.broadcast %cst_126 : f32 to vector<32x1xf32>
    %159 = arith.mulf %157, %158 : vector<32x1xf32>
    %c0_127 = arith.constant 0 : index
    %c0_128 = arith.constant 0 : index
    %160 = vector.load %arg6[%c0_127, %c0_128] : memref<32x4xf32, #tpu.memory_space<vmem>>, vector<32x4xf32>
    %161 = vector.broadcast %159 : vector<32x1xf32> to vector<32x4xf32>
    %162 = arith.mulf %160, %161 : vector<32x4xf32>
    %cst_129 = arith.constant dense<0.000000e+00> : vector<4xf32>
    %163 = vector.multi_reduction <add>, %162, %cst_129 [0] : vector<32x4xf32> to vector<4xf32>
    %164 = vector.shape_cast %163 : vector<4xf32> to vector<1x4xf32>
    %cst_130 = arith.constant 0.000000e+00 : f32
    %165 = vector.broadcast %cst_130 : f32 to vector<1x4xf32>
    %166 = arith.maximumf %164, %165 : vector<1x4xf32>
    %c0_131 = arith.constant 0 : index
    %c0_132 = arith.constant 0 : index
    %167 = vector.load %arg7[%c0_131, %c0_132] : memref<32x4xf32, #tpu.memory_space<vmem>>, vector<32x4xf32>
    %168 = vector.broadcast %166 : vector<1x4xf32> to vector<32x4xf32>
    %169 = arith.mulf %167, %168 : vector<32x4xf32>
    %cst_133 = arith.constant dense<0.000000e+00> : vector<32xf32>
    %170 = vector.multi_reduction <add>, %169, %cst_133 [1] : vector<32x4xf32> to vector<32xf32>
    %171 = vector.shape_cast %170 : vector<32xf32> to vector<32x1xf32>
    %cst_134 = arith.constant 0.000000e+00 : f32
    %172 = vector.broadcast %cst_134 : f32 to vector<32x1xf32>
    %173 = arith.subf %172, %171 : vector<32x1xf32>
    %174 = math.exp %173 : vector<32x1xf32>
    %cst_135 = arith.constant 1.000000e+00 : f32
    %175 = vector.broadcast %cst_135 : f32 to vector<32x1xf32>
    %176 = arith.addf %175, %174 : vector<32x1xf32>
    %cst_136 = arith.constant 1.000000e+00 : f32
    %177 = vector.broadcast %cst_136 : f32 to vector<32x1xf32>
    %178 = arith.divf %177, %176 : vector<32x1xf32>
    %cst_137 = arith.constant 1.000000e-01 : f32
    %179 = vector.broadcast %cst_137 : f32 to vector<32x1xf32>
    %180 = arith.mulf %178, %179 : vector<32x1xf32>
    %181 = vector.broadcast %180 : vector<32x1xf32> to vector<32x256xf32>
    %182 = arith.mulf %155, %181 : vector<32x256xf32>
    %c0_138 = arith.constant 0 : index
    %c0_139 = arith.constant 0 : index
    %c0_140 = arith.constant 0 : index
    %183 = vector.load %arg1[%c0_138, %c0_139, %c0_140] : memref<1x32x256xf32, #tpu.memory_space<vmem>>, vector<1x32x256xf32>
    %184 = vector.shape_cast %183 : vector<1x32x256xf32> to vector<32x256xf32>
    %185 = arith.addf %182, %184 : vector<32x256xf32>
    %c0_141 = arith.constant 0 : index
    %c0_142 = arith.constant 0 : index
    %c0_143 = arith.constant 0 : index
    %186 = vector.load %arg10[%c0_141, %c0_142, %c0_143] : memref<1x32x256xf32, #tpu.memory_space<vmem>>, vector<1x32x256xf32>
    %187 = vector.shape_cast %186 : vector<1x32x256xf32> to vector<32x256xf32>
    %188 = vector.shape_cast %185 : vector<32x256xf32> to vector<1x32x256xf32>
    tpu.vector_store %arg10[%c0_141, %c0_142, %c0_143], %188 {strides = array<i32>} : memref<1x32x256xf32, #tpu.memory_space<vmem>>, vector<1x32x256xf32>,
    return
  }
  func.func @transform_0(%arg0: i32) -> (i32, i32, i32) {
    %c0_i32 = arith.constant 0 : i32
    %c0_i32_0 = arith.constant 0 : i32
    %c0_i32_1 = arith.constant 0 : i32
    return %arg0, %c0_i32, %c0_i32_0 : i32, i32, i32
  }
  func.func @transform_1(%arg0: i32) -> (i32, i32, i32) {
    %c0_i32 = arith.constant 0 : i32
    %c0_i32_0 = arith.constant 0 : i32
    %c0_i32_1 = arith.constant 0 : i32
    %c0_i32_2 = arith.constant 0 : i32
    return %c0_i32, %c0_i32_0, %c0_i32_1 : i32, i32, i32
  }
  func.func @transform_2(%arg0: i32) -> (i32, i32) {
    %c0_i32 = arith.constant 0 : i32
    %c0_i32_0 = arith.constant 0 : i32
    %c0_i32_1 = arith.constant 0 : i32
    return %c0_i32, %c0_i32_0 : i32, i32
  }
  func.func @transform_3(%arg0: i32) -> (i32, i32, i32) {
    %c0_i32 = arith.constant 0 : i32
    %c0_i32_0 = arith.constant 0 : i32
    %c0_i32_1 = arith.constant 0 : i32
    %c0_i32_2 = arith.constant 0 : i32
    return %c0_i32, %c0_i32_0, %c0_i32_1 : i32, i32, i32
  }
  func.func @transform_4(%arg0: i32) -> (i32, i32) {
    %c0_i32 = arith.constant 0 : i32
    %c0_i32_0 = arith.constant 0 : i32
    %c0_i32_1 = arith.constant 0 : i32
    return %c0_i32, %c0_i32_0 : i32, i32
  }
  func.func @transform_5(%arg0: i32) -> (i32, i32) {
    %c0_i32 = arith.constant 0 : i32
    %c0_i32_0 = arith.constant 0 : i32
    %c0_i32_1 = arith.constant 0 : i32
    return %c0_i32, %c0_i32_0 : i32, i32
  }
  func.func @transform_6(%arg0: i32) -> (i32, i32) {
    %c0_i32 = arith.constant 0 : i32
    %c0_i32_0 = arith.constant 0 : i32
    %c0_i32_1 = arith.constant 0 : i32
    return %c0_i32, %c0_i32_0 : i32, i32
  }
  func.func @transform_7(%arg0: i32) -> (i32, i32) {
    %c0_i32 = arith.constant 0 : i32
    %c0_i32_0 = arith.constant 0 : i32
    %c0_i32_1 = arith.constant 0 : i32
    return %c0_i32, %c0_i32_0 : i32, i32
  }
  func.func @transform_8(%arg0: i32) -> (i32, i32) {
    %c0_i32 = arith.constant 0 : i32
    %c0_i32_0 = arith.constant 0 : i32
    %c0_i32_1 = arith.constant 0 : i32
    return %c0_i32, %c0_i32_0 : i32, i32
  }
  func.func @transform_9(%arg0: i32) -> (i32, i32, i32) {
    %c0_i32 = arith.constant 0 : i32
    %c0_i32_0 = arith.constant 0 : i32
    %c0_i32_1 = arith.constant 0 : i32
    return %arg0, %c0_i32, %c0_i32_0 : i32, i32, i32
  }
}

</mosaic_0001>

<llo_original>
// kernel: tpu_custom_call.1
$region0: #{tpu_custom_call.1}
  #allocation0 [shape = 'u32[]', space=smem, size = 0x4, offset = 0x4, fixed_abs, tag = 'smem constant byte address 0x4 - core index']
  #allocation1 [shape = 'u32[72,128]{1,0:T(1,128)}', space=vmem, size = 0x9000, scoped, tag = 'internal scratch']
  #allocation2 [shape = 'bf16[32,512]{1,0:T(8,128)(2,1)}', space=vmem, size = 0x8000, scoped, tag = 'scratch operand']
  %s0 = inlined_call_operand.vmem [shape: f32[2,32,256], index: 0, kind: input, shape index: {}]
  %s1 = inlined_call_operand.hbm [shape: bf16[9,32,32], index: 1, kind: input, shape index: {}]
  %s2 = inlined_call_operand.vmem [shape: f32[32,1], index: 2, kind: input, shape index: {}]
  %s3 = inlined_call_operand.hbm [shape: bf16[9,32,32], index: 3, kind: input, shape index: {}]
  %s4 = inlined_call_operand.vmem [shape: f32[32,1], index: 4, kind: input, shape index: {}]
  %s5 = inlined_call_operand.vmem [shape: f32[32,4], index: 5, kind: input, shape index: {}]
  %s6 = inlined_call_operand.vmem [shape: f32[32,4], index: 6, kind: input, shape index: {}]
  %s7 = inlined_call_operand.vmem [shape: f32[1,256], index: 7, kind: input, shape index: {}]
  %s8 = inlined_call_operand.vmem [shape: f32[1,256], index: 8, kind: input, shape index: {}]
  %s9 = inlined_call_operand.hbm [shape: f32[2,32,256], index: 9, kind: output, shape index: {}]
  %s10 = sld [smem:[#allocation0]]
  $region77: #{tpu_custom_call.1} parent=0
    _
  %s12 = ssub.s32 1, %s10
  %s13 = scalar_select 0, %s12, %s10
  $region1: #{tpu_custom_call.1} parent=0
    #allocation3 [shape = 'u8[73728]{0}', space=vmem, size = 0x12000, scoped, tag = 'input window, operand 1, single buffered']
    #allocation4 [shape = 's32[2]{0}', space=sflag, size = 0x8, scoped, tag = 'scoped memory for tpu_custom_call.1']
    #allocation5 [shape = 's32[2]{0}', space=sflag, size = 0x8, scoped, tag = 'scoped memory for tpu_custom_call.1']
    #allocation6 [shape = 'u8[73728]{0}', space=vmem, size = 0x12000, scoped, tag = 'input window, operand 3, single buffered']
    #allocation7 [shape = 's32[1]{0}', space=sflag, size = 0x4, scoped, tag = 'scoped memory for tpu_custom_call.1']
    #allocation8 [shape = 'u8[65536]{0}', space=vmem, size = 0x10000, scoped, tag = 'output window, operand 0']
    %14 = vsyncpa [#allocation4], 0
    %15 = vsyncpa [#allocation7], 0
    %16 = vsyncpa [#allocation5], 0
    %s17 = scalar_lea.sflag [#allocation5], 1
    %18 = vsyncpa %s17, 0
    loop: start=0, step=1, limit=4
    $region2: #{tpu_custom_call.1} parent=1 // loop_pre_header
      _
    $region3: #{tpu_custom_call.1} parent=1 // loop_header
      %s20 = sphi 0, %s24
      %p21 = scmp.ge.s32.totalorder %s20, 4
      %s30 = sphi 0, %s32
      %s33 = sphi 0, %s30
      %s34 = sphi 0, %s33
      %s50 = sphi 0, %s34
      %s54 = sphi 0, %s54
      %s56 = sphi 0, %s54
      %s57 = sphi 0, %s56
      %s71 = sphi 0, %s57
      %s75 = sphi 0, %s75
      %s77 = sphi 0, %s75
      %s78 = sphi 0, %s77
      %s92 = sphi 0, %s78
      %s96 = sphi 0, %s96
      %s98 = sphi 0, %s96
      %s99 = sphi 0, %s98
      %s113 = sphi 0, %s99
      %s117 = sphi 0, %s117
      %s119 = sphi 0, %s117
      %s120 = sphi 0, %s119
      %s134 = sphi 0, %s120
      %s138 = sphi 0, %s138
      %s140 = sphi 0, %s138
      %s141 = sphi 0, %s140
      %s155 = sphi 0, %s141
      %s159 = sphi 0, %s159
      %s161 = sphi 0, %s159
      %s162 = sphi 0, %s161
      %s176 = sphi 0, %s162
      %s180 = sphi 0, %s180
      %s182 = sphi 0, %s180
      %s183 = sphi 0, %s182
      %s197 = sphi 0, %s183
      %s201 = sphi 0, %s201
      %s203 = sphi 0, %s201
      %s204 = sphi 0, %s203
      %s218 = sphi 0, %s204
      %s224 = sphi 0, %s226
      %s227 = sphi 0, %s224
      %s228 = sphi 0, %s227
      %s244 = sphi 0, %s228
    $region4: #{tpu_custom_call.1} parent=1 // loop_header_branch
      %23 = sbr.rel (%p21) target = $region8
    $region5: #{tpu_custom_call.1} parent=1 // loop_body
      %s25 = ssub.s32 %s20, 1
      %s26 = ssub.s32 %s20, 2
      %s27 = sadd.s32 %s20, 1
      %s28 = ssub.s32 %s20, %s27
      %p29 = scmp.eq.s32.totalorder %s28, 0
      %s31 = sadd.s32 %s30, 1
      %s32 = scalar_select %p29, %s30, %s31
      %p35 = pneg %p29
      %p36 = scmp.eq.s32.totalorder %s20, 1
      %p37 = por %p35, %p36
      %p38 = scmp.ne.s32.totalorder %s30, %s33
      %p39 = scmp.eq.s32.totalorder %s20, 0
      %p40 = por %p38, %p39
      %p41 = scmp.ne.s32.totalorder %s30, %s33
      %p42 = scmp.eq.s32.totalorder %s25, 1
      %p43 = por %p41, %p42
      %p44 = scmp.ne.s32.totalorder %s33, %s34
      %p45 = scmp.eq.s32.totalorder %s25, 0
      %p46 = por %p44, %p45
      %p47 = scmp.ne.s32.totalorder %s33, %s34
      %p48 = scmp.eq.s32.totalorder %s26, 1
      %p49 = por %p47, %p48
      %p51 = scmp.ne.s32.totalorder %s34, %s50
      %p52 = scmp.eq.s32.totalorder %s26, 0
      %p53 = por %p51, %p52
      %s55 = sadd.s32 %s54, 1
      %p58 = scmp.eq.s32.totalorder %s20, 1
      %p59 = scmp.ne.s32.totalorder %s54, %s56
      %p60 = scmp.eq.s32.totalorder %s20, 0
      %p61 = por %p59, %p60
      %p62 = scmp.ne.s32.totalorder %s54, %s56
      %p63 = scmp.eq.s32.totalorder %s25, 1
      %p64 = por %p62, %p63
      %p65 = scmp.ne.s32.totalorder %s56, %s57
      %p66 = scmp.eq.s32.totalorder %s25, 0
      %p67 = por %p65, %p66
      %p68 = scmp.ne.s32.totalorder %s56, %s57
      %p69 = scmp.eq.s32.totalorder %s26, 1
      %p70 = por %p68, %p69
      %p72 = scmp.ne.s32.totalorder %s57, %s71
      %p73 = scmp.eq.s32.totalorder %s26, 0
      %p74 = por %p72, %p73
      %s76 = sadd.s32 %s75, 1
      %p79 = scmp.eq.s32.totalorder %s20, 1
      %p80 = scmp.ne.s32.totalorder %s75, %s77
      %p81 = scmp.eq.s32.totalorder %s20, 0
      %p82 = por %p80, %p81
      %p83 = scmp.ne.s32.totalorder %s75, %s77
      %p84 = scmp.eq.s32.totalorder %s25, 1
      %p85 = por %p83, %p84
      %p86 = scmp.ne.s32.totalorder %s77, %s78
      %p87 = scmp.eq.s32.totalorder %s25, 0
      %p88 = por %p86, %p87
      %p89 = scmp.ne.s32.totalorder %s77, %s78
      %p90 = scmp.eq.s32.totalorder %s26, 1
      %p91 = por %p89, %p90
      %p93 = scmp.ne.s32.totalorder %s78, %s92
      %p94 = scmp.eq.s32.totalorder %s26, 0
      %p95 = por %p93, %p94
      %s97 = sadd.s32 %s96, 1
      %p100 = scmp.eq.s32.totalorder %s20, 1
      %p101 = scmp.ne.s32.totalorder %s96, %s98
      %p102 = scmp.eq.s32.totalorder %s20, 0
      %p103 = por %p101, %p102
      %p104 = scmp.ne.s32.totalorder %s96, %s98
      %p105 = scmp.eq.s32.totalorder %s25, 1
      %p106 = por %p104, %p105
      %p107 = scmp.ne.s32.totalorder %s98, %s99
      %p108 = scmp.eq.s32.totalorder %s25, 0
      %p109 = por %p107, %p108
      %p110 = scmp.ne.s32.totalorder %s98, %s99
      %p111 = scmp.eq.s32.totalorder %s26, 1
      %p112 = por %p110, %p111
      %p114 = scmp.ne.s32.totalorder %s99, %s113
      %p115 = scmp.eq.s32.totalorder %s26, 0
      %p116 = por %p114, %p115
      %s118 = sadd.s32 %s117, 1
      %p121 = scmp.eq.s32.totalorder %s20, 1
      %p122 = scmp.ne.s32.totalorder %s117, %s119
      %p123 = scmp.eq.s32.totalorder %s20, 0
      %p124 = por %p122, %p123
      %p125 = scmp.ne.s32.totalorder %s117, %s119
      %p126 = scmp.eq.s32.totalorder %s25, 1
      %p127 = por %p125, %p126
      %p128 = scmp.ne.s32.totalorder %s119, %s120
      %p129 = scmp.eq.s32.totalorder %s25, 0
      %p130 = por %p128, %p129
      %p131 = scmp.ne.s32.totalorder %s119, %s120
      %p132 = scmp.eq.s32.totalorder %s26, 1
      %p133 = por %p131, %p132
      %p135 = scmp.ne.s32.totalorder %s120, %s134
      %p136 = scmp.eq.s32.totalorder %s26, 0
      %p137 = por %p135, %p136
      %s139 = sadd.s32 %s138, 1
      %p142 = scmp.eq.s32.totalorder %s20, 1
      %p143 = scmp.ne.s32.totalorder %s138, %s140
      %p144 = scmp.eq.s32.totalorder %s20, 0
      %p145 = por %p143, %p144
      %p146 = scmp.ne.s32.totalorder %s138, %s140
      %p147 = scmp.eq.s32.totalorder %s25, 1
      %p148 = por %p146, %p147
      %p149 = scmp.ne.s32.totalorder %s140, %s141
      %p150 = scmp.eq.s32.totalorder %s25, 0
      %p151 = por %p149, %p150
      %p152 = scmp.ne.s32.totalorder %s140, %s141
      %p153 = scmp.eq.s32.totalorder %s26, 1
      %p154 = por %p152, %p153
      %p156 = scmp.ne.s32.totalorder %s141, %s155
      %p157 = scmp.eq.s32.totalorder %s26, 0
      %p158 = por %p156, %p157
      %s160 = sadd.s32 %s159, 1
      %p163 = scmp.eq.s32.totalorder %s20, 1
      %p164 = scmp.ne.s32.totalorder %s159, %s161
      %p165 = scmp.eq.s32.totalorder %s20, 0
      %p166 = por %p164, %p165
      %p167 = scmp.ne.s32.totalorder %s159, %s161
      %p168 = scmp.eq.s32.totalorder %s25, 1
      %p169 = por %p167, %p168
      %p170 = scmp.ne.s32.totalorder %s161, %s162
      %p171 = scmp.eq.s32.totalorder %s25, 0
      %p172 = por %p170, %p171
      %p173 = scmp.ne.s32.totalorder %s161, %s162
      %p174 = scmp.eq.s32.totalorder %s26, 1
      %p175 = por %p173, %p174
      %p177 = scmp.ne.s32.totalorder %s162, %s176
      %p178 = scmp.eq.s32.totalorder %s26, 0
      %p179 = por %p177, %p178
      %s181 = sadd.s32 %s180, 1
      %p184 = scmp.eq.s32.totalorder %s20, 1
      %p185 = scmp.ne.s32.totalorder %s180, %s182
      %p186 = scmp.eq.s32.totalorder %s20, 0
      %p187 = por %p185, %p186
      %p188 = scmp.ne.s32.totalorder %s180, %s182
      %p189 = scmp.eq.s32.totalorder %s25, 1
      %p190 = por %p188, %p189
      %p191 = scmp.ne.s32.totalorder %s182, %s183
      %p192 = scmp.eq.s32.totalorder %s25, 0
      %p193 = por %p191, %p192
      %p194 = scmp.ne.s32.totalorder %s182, %s183
      %p195 = scmp.eq.s32.totalorder %s26, 1
      %p196 = por %p194, %p195
      %p198 = scmp.ne.s32.totalorder %s183, %s197
      %p199 = scmp.eq.s32.totalorder %s26, 0
      %p200 = por %p198, %p199
      %s202 = sadd.s32 %s201, 1
      %p205 = scmp.eq.s32.totalorder %s20, 1
      %p206 = scmp.ne.s32.totalorder %s201, %s203
      %p207 = scmp.eq.s32.totalorder %s20, 0
      %p208 = por %p206, %p207
      %p209 = scmp.ne.s32.totalorder %s201, %s203
      %p210 = scmp.eq.s32.totalorder %s25, 1
      %p211 = por %p209, %p210
      %p212 = scmp.ne.s32.totalorder %s203, %s204
      %p213 = scmp.eq.s32.totalorder %s25, 0
      %p214 = por %p212, %p213
      %p215 = scmp.ne.s32.totalorder %s203, %s204
      %p216 = scmp.eq.s32.totalorder %s26, 1
      %p217 = por %p215, %p216
      %p219 = scmp.ne.s32.totalorder %s204, %s218
      %p220 = scmp.eq.s32.totalorder %s26, 0
      %p221 = por %p219, %p220
      %s222 = ssub.s32 %s20, %s27
      %p223 = scmp.eq.s32.totalorder %s222, 0
      %s225 = sadd.s32 %s224, 1
      %s226 = scalar_select %p223, %s224, %s225
      %p229 = pneg %p223
      %p230 = scmp.eq.s32.totalorder %s20, 1
      %p231 = por %p229, %p230
      %p232 = scmp.ne.s32.totalorder %s224, %s227
      %p233 = scmp.eq.s32.totalorder %s20, 0
      %p234 = por %p232, %p233
      %p235 = scmp.ne.s32.totalorder %s224, %s227
      %p236 = scmp.eq.s32.totalorder %s25, 1
      %p237 = por %p235, %p236
      %p238 = scmp.ne.s32.totalorder %s227, %s228
      %p239 = scmp.eq.s32.totalorder %s25, 0
      %p240 = por %p238, %p239
      %p241 = scmp.ne.s32.totalorder %s227, %s228
      %p242 = scmp.eq.s32.totalorder %s26, 1
      %p243 = por %p241, %p242
      %p245 = scmp.ne.s32.totalorder %s228, %s244
      %p246 = scmp.eq.s32.totalorder %s26, 0
      %p247 = por %p245, %p246
      %p248 = scmp.le.s32.totalorder 1, %s20
      %p249 = scmp.lt.s32.totalorder %s20, 3
      %p250 = pnand %p248, %p249
      %p251 = pneg %p250
      // Predicated region
      $region9: #{tpu_custom_call.1} parent=5 // pred_check
        _
      $region10: #{tpu_custom_call.1} parent=5 // pred_check_branch
        %253 = sbr.rel (%p250) target = $region12
      $region11: #{tpu_custom_call.1} parent=5 // pred_region
        %s254 = ssub.s32 %s20, 1
        // Predicated region
        $region13: #{tpu_custom_call.1} parent=11 // pred_check
          %p255 = pneg %p67
        $region14: #{tpu_custom_call.1} parent=11 // pred_check_branch
          %257 = sbr.rel (%p255) target = $region16
        $region15: #{tpu_custom_call.1} parent=11 // pred_region
          %259 = vsyncadd [#allocation4], 0
          %s260 = sshll.u32 %s1, 4
          %s261 = int_to_ptr.hbm [resolvable:$true] %s260
          %s262 = sshll.u32 [#allocation3], 4
          %s263 = int_to_ptr.vmem [resolvable:$true] %s262
          %268 = dma.hbm_to_vmem [thread:$0]  %s261, 2304, %s263, [#allocation4], 64, 64, 4
        $region16: #{tpu_custom_call.1} parent=11 // pred_fallthru
          _
        // Predicated region
        $region17: #{tpu_custom_call.1} parent=11 // pred_check
          %p269 = pneg %p88
        $region18: #{tpu_custom_call.1} parent=11 // pred_check_branch
          %271 = sbr.rel (%p269) target = $region20
        $region19: #{tpu_custom_call.1} parent=11 // pred_region
          _
        $region20: #{tpu_custom_call.1} parent=11 // pred_fallthru
          _
        // Predicated region
        $region21: #{tpu_custom_call.1} parent=11 // pred_check
          %p272 = pneg %p109
        $region22: #{tpu_custom_call.1} parent=11 // pred_check_branch
          %274 = sbr.rel (%p272) target = $region24
        $region23: #{tpu_custom_call.1} parent=11 // pred_region
          %276 = vsyncadd [#allocation7], 0
          %s277 = sshll.u32 %s3, 4
          %s278 = int_to_ptr.hbm [resolvable:$true] %s277
          %s279 = sshll.u32 [#allocation6], 4
          %s280 = int_to_ptr.vmem [resolvable:$true] %s279
          %285 = dma.hbm_to_vmem [thread:$0]  %s278, 2304, %s280, [#allocation7], 64, 64, 4
        $region24: #{tpu_custom_call.1} parent=11 // pred_fallthru
          _
        // Predicated region
        $region25: #{tpu_custom_call.1} parent=11 // pred_check
          %p286 = pneg %p130
        $region26: #{tpu_custom_call.1} parent=11 // pred_check_branch
          %288 = sbr.rel (%p286) target = $region28
        $region27: #{tpu_custom_call.1} parent=11 // pred_region
          _
        $region28: #{tpu_custom_call.1} parent=11 // pred_fallthru
          _
        // Predicated region
        $region29: #{tpu_custom_call.1} parent=11 // pred_check
          %p289 = pneg %p151
        $region30: #{tpu_custom_call.1} parent=11 // pred_check_branch
          %291 = sbr.rel (%p289) target = $region32
        $region31: #{tpu_custom_call.1} parent=11 // pred_region
          _
        $region32: #{tpu_custom_call.1} parent=11 // pred_fallthru
          _
        // Predicated region
        $region33: #{tpu_custom_call.1} parent=11 // pred_check
          %p292 = pneg %p172
        $region34: #{tpu_custom_call.1} parent=11 // pred_check_branch
          %294 = sbr.rel (%p292) target = $region36
        $region35: #{tpu_custom_call.1} parent=11 // pred_region
          _
        $region36: #{tpu_custom_call.1} parent=11 // pred_fallthru
          _
        // Predicated region
        $region37: #{tpu_custom_call.1} parent=11 // pred_check
          %p295 = pneg %p193
        $region38: #{tpu_custom_call.1} parent=11 // pred_check_branch
          %297 = sbr.rel (%p295) target = $region40
        $region39: #{tpu_custom_call.1} parent=11 // pred_region
          _
        $region40: #{tpu_custom_call.1} parent=11 // pred_fallthru
          _
        // Predicated region
        $region41: #{tpu_custom_call.1} parent=11 // pred_check
          %p298 = pneg %p214
        $region42: #{tpu_custom_call.1} parent=11 // pred_check_branch
          %300 = sbr.rel (%p298) target = $region44
        $region43: #{tpu_custom_call.1} parent=11 // pred_region
          _
        $region44: #{tpu_custom_call.1} parent=11 // pred_fallthru
          _
      $region12: #{tpu_custom_call.1} parent=5 // pred_fallthru
        _
      %p301 = scmp.lt.s32.totalorder %s20, 2
      // Predicated region
      $region45: #{tpu_custom_call.1} parent=5 // pred_check
        %p302 = pneg %p301
      $region46: #{tpu_custom_call.1} parent=5 // pred_check_branch
        %304 = sbr.rel (%p302) target = $region48
      $region47: #{tpu_custom_call.1} parent=5 // pred_region
        // Predicated region
        $region49: #{tpu_custom_call.1} parent=47 // pred_check
          %p305 = pneg %p40
        $region50: #{tpu_custom_call.1} parent=47 // pred_check_branch
          %307 = sbr.rel (%p305) target = $region52
        $region51: #{tpu_custom_call.1} parent=47 // pred_region
          %p308 = scmp.lt.s32.totalorder %s20, 1
          %s309 = scalar_select %p308, %s20, 1
          %s310 = smul.addr %s309, 8
          %s311 = smul.addr %s310, 8
          %s312 = scalar_lea.vmem %s0, %s311
        $region52: #{tpu_custom_call.1} parent=47 // pred_fallthru
          _
      $region48: #{tpu_custom_call.1} parent=5 // pred_fallthru
        _
      %p313 = scmp.le.s32.totalorder 1, %s20
      %p314 = scmp.lt.s32.totalorder %s20, 3
      %p315 = pnand %p313, %p314
      %p316 = pneg %p315
      // Predicated region
      $region53: #{tpu_custom_call.1} parent=5 // pred_check
        _
      $region54: #{tpu_custom_call.1} parent=5 // pred_check_branch
        %318 = sbr.rel (%p315) target = $region56
      $region55: #{tpu_custom_call.1} parent=5 // pred_region
        %s319 = ssub.s32 %s20, 1
        // Predicated region
        $region57: #{tpu_custom_call.1} parent=55 // pred_check
          %p320 = pneg %p67
        $region58: #{tpu_custom_call.1} parent=55 // pred_check_branch
          %322 = sbr.rel (%p320) target = $region60
        $region59: #{tpu_custom_call.1} parent=55 // pred_region
          %324 = dma.done [#allocation4], 2304
        $region60: #{tpu_custom_call.1} parent=55 // pred_fallthru
          _
        // Predicated region
        $region61: #{tpu_custom_call.1} parent=55 // pred_check
          %p325 = pneg %p109
        $region62: #{tpu_custom_call.1} parent=55 // pred_check_branch
          %327 = sbr.rel (%p325) target = $region64
        $region63: #{tpu_custom_call.1} parent=55 // pred_region
          %329 = dma.done [#allocation7], 2304
        $region64: #{tpu_custom_call.1} parent=55 // pred_fallthru
          _
        %p330 = scmp.lt.s32.totalorder %s25, 1
        %s331 = scalar_select %p330, %s25, 1
        %s332 = smul.addr %s331, 8
        %s333 = smul.addr %s332, 8
        %s334 = scalar_lea.vmem %s0, %s333
        %p335 = pneg %p46
        %p336 = pneg %p43
        %p337 = pneg %p67
        %p338 = pneg %p64
        %p339 = pneg %p88
        %p340 = pneg %p85
        %p341 = pneg %p109
        %p342 = pneg %p106
        %p343 = pneg %p130
        %p344 = pneg %p127
        %p345 = pneg %p151
        %p346 = pneg %p148
        %p347 = pneg %p172
        %p348 = pneg %p169
        %p349 = pneg %p193
        %p350 = pneg %p190
        %p351 = pneg %p214
        %p352 = pneg %p211
        %p353 = pneg %p240
        %p354 = pneg %p237
        %s355 = sand.u32 %s227, 1
        %s356 = scalar_lea.sflag [#allocation5], %s355
        %s357 = sand.u32 %s227, 1
        %s358 = smul.addr %s357, 64
        %s359 = scalar_lea.vmem [#allocation8], %s358
        %p360 = scmp.lt.s32.totalorder %s25, 1
        %s361 = scalar_select %p360, %s25, 1
        %s362 = smul.addr %s361, 8
        %s363 = smul.addr %s362, 8
        %s364 = scalar_lea.vmem %s0, %s363
        %v368 = vld [vmem:[%s7] sm:$0x3]
        %vm369 = vcmp.ne.f32.partialorder %v368, 0.0
        %v370 = vsel %vm369, 1, 0
        %v371 = vperm.slane %v370, 0
        %v372 = vperm.slane %v370, 1
        %vm373 = vcmp.eq.s32.totalorder %v371, 1
        %vm374 = vcmp.eq.s32.totalorder %v372, 1
        %v375 = vld [vmem:[%s8] sm:$0x3]
        %vm376 = vcmp.ne.f32.partialorder %v375, 0.0
        %v377 = vsel %vm376, 1, 0
        %v378 = vperm.slane %v377, 0
        %v379 = vperm.slane %v377, 1
        %vm380 = vcmp.eq.s32.totalorder %v378, 1
        %vm381 = vcmp.eq.s32.totalorder %v379, 1
        %382 = vst [vmem:[#allocation2] sm:$0xf] 0
        %383 = vst [vmem:[#allocation2 + $0x10] sm:$0xf] 0
        %384 = vst [vmem:[#allocation2 + $0x20] sm:$0xf] 0
        %385 = vst [vmem:[#allocation2 + $0x30] sm:$0xf] 0
        %386 = vst [vmem:[#allocation2 + $0xc] sm:$0xf] 0
        %387 = vst [vmem:[#allocation2 + $0x1c] sm:$0xf] 0
        %388 = vst [vmem:[#allocation2 + $0x2c] sm:$0xf] 0
        %389 = vst [vmem:[#allocation2 + $0x3c] sm:$0xf] 0
        %v390 = vld [vmem:[%s364] sm:$0xff]
        %v391 = vld [vmem:[%s364 + $0x8] sm:$0xff]
        %v392 = vld [vmem:[%s364 + $0x10] sm:$0xff]
        %v393 = vld [vmem:[%s364 + $0x18] sm:$0xff]
        %v394 = vld [vmem:[%s364 + $0x20] sm:$0xff]
        %v395 = vld [vmem:[%s364 + $0x28] sm:$0xff]
        %v396 = vld [vmem:[%s364 + $0x30] sm:$0xff]
        %v397 = vld [vmem:[%s364 + $0x38] sm:$0xff]
        %v398 = vpack.c.bf16 %v391, %v390
        %v399 = vpack.c.bf16 %v393, %v392
        %v400 = vpack.c.bf16 %v395, %v394
        %v401 = vpack.c.bf16 %v397, %v396
        %402 = vst [vmem:[#allocation2 + $0x4] sm:$0xff] %v398
        %403 = vst [vmem:[#allocation2 + $0x14] sm:$0xff] %v399
        %404 = vst [vmem:[#allocation2 + $0x24] sm:$0xff] %v400
        %405 = vst [vmem:[#allocation2 + $0x34] sm:$0xff] %v401
        %v406 = vld [vmem:[#allocation2] sm:$0xff]
        %v407 = vld [vmem:[#allocation2 + $0x8] sm:$0xf]
        %v408 = vld [vmem:[#allocation2 + $0x10] sm:$0xff]
        %v409 = vld [vmem:[#allocation2 + $0x18] sm:$0xf]
        %v410 = vld [vmem:[#allocation2 + $0x20] sm:$0xff]
        %v411 = vld [vmem:[#allocation2 + $0x28] sm:$0xf]
        %v412 = vld [vmem:[#allocation2 + $0x30] sm:$0xff]
        %v413 = vld [vmem:[#allocation2 + $0x38] sm:$0xf]
        %vm414 = vmpackc.low %vm374, %vm373
        %v415 = vsel %vm414, 65537, 0
        %416 = vrot.lane.b32.xlu0 %v415, 111
        %v417 = vpop.permute.xlu0 %416
        %v418 = vrot.slane %v417, 4
        %vm419 = vcmask 908288
        %v420 = vsel %vm419, %v418, %v417
        %v421 = vunpack.c.l.b16 %v420
        %v422 = vunpack.c.h.b16 %v420
        %v423 = vunpack.c.l.b16 0
        %v424 = vunpack.c.h.b16 0
        %vm425 = vcmp.ne.s32.totalorder %v421, %v423
        %vm426 = vcmp.ne.s32.totalorder %v422, %v424
        %vm427 = vmpackc.low %vm426, %vm425
        %v428 = vunpack.c.l.b16 %v418
        %v429 = vunpack.c.h.b16 %v418
        %v430 = vunpack.c.l.b16 0
        %v431 = vunpack.c.h.b16 0
        %vm432 = vcmp.ne.s32.totalorder %v428, %v430
        %vm433 = vcmp.ne.s32.totalorder %v429, %v431
        %vm434 = vmpackc.low %vm433, %vm432
        %v435 = vsel %vm427, %v406, 0
        %v436 = vsel %vm434, %v407, 0
        %v437 = vsel %vm427, %v408, 0
        %v438 = vsel %vm434, %v409, 0
        %v439 = vsel %vm427, %v410, 0
        %v440 = vsel %vm434, %v411, 0
        %v441 = vsel %vm427, %v412, 0
        %v442 = vsel %vm434, %v413, 0
        %v443 = vld [vmem:[#allocation3] sm:$0xf]
        %v444 = vld [vmem:[#allocation3 + $0x4] sm:$0xf]
        %v445 = vld [vmem:[#allocation3 + $0x8] sm:$0xf]
        %v446 = vld [vmem:[#allocation3 + $0xc] sm:$0xf]
        %s447 = scalar_lea.vmem [#allocation3], 16
        %v448 = vld [vmem:[%s447] sm:$0xf]
        %v449 = vld [vmem:[%s447 + $0x4] sm:$0xf]
        %v450 = vld [vmem:[%s447 + $0x8] sm:$0xf]
        %v451 = vld [vmem:[%s447 + $0xc] sm:$0xf]
        %v456 = vunpack.c.l.b16 %v448
        %v457 = vunpack.c.l.b16 %v449
        %v458 = vunpack.c.l.b16 %v450
        %v459 = vunpack.c.l.b16 %v451
        %v460 = vpack.c.b16 %v457, %v456
        %v461 = vpack.c.b16 %v459, %v458
        %v470 = vunpack.c.l.b16 %v406
        %v471 = vunpack.c.h.b16 %v406
        %v472 = vunpack.c.l.b16 %v407
        %v473 = vunpack.c.l.b16 %v408
        %v474 = vunpack.c.h.b16 %v408
        %v475 = vunpack.c.l.b16 %v409
        %v476 = vunpack.c.l.b16 %v410
        %v477 = vunpack.c.h.b16 %v410
        %v478 = vunpack.c.l.b16 %v411
        %v479 = vunpack.c.l.b16 %v412
        %v480 = vunpack.c.h.b16 %v412
        %v481 = vunpack.c.l.b16 %v413
        %v482 = vpack.c.b16 %v473, %v470
        %v483 = vpack.c.b16 %v474, %v471
        %v484 = vpack.c.b16 %v475, %v472
        %v485 = vpack.c.b16 %v479, %v476
        %v486 = vpack.c.b16 %v480, %v477
        %v487 = vpack.c.b16 %v481, %v478
        %488 = vrot.lane.b32.xlu0 %v482, 16
        %v489 = vpop.permute.xlu0 %488
        %490 = vrot.lane.b32.xlu0 %v483, 16
        %v491 = vpop.permute.xlu0 %490
        %492 = vrot.lane.b32.xlu0 %v484, 16
        %v493 = vpop.permute.xlu0 %492
        %494 = vrot.lane.b32.xlu0 %v485, 16
        %v495 = vpop.permute.xlu0 %494
        %496 = vrot.lane.b32.xlu0 %v486, 16
        %v497 = vpop.permute.xlu0 %496
        %498 = vrot.lane.b32.xlu0 %v487, 16
        %v499 = vpop.permute.xlu0 %498
        %vm500 = vcmask 130048
        %v501 = vsel %vm500, %v489, %v491
        %v502 = vsel %vm500, %v491, %v493
        %v503 = vsel %vm500, %v495, %v497
        %v504 = vsel %vm500, %v497, %v499
        %vm509 = vcmask 261120
        %v511 = vsel %vm509, %v460, 0
        %v514 = vsel %vm509, %v461, 0
        %516 = vmatpush.bf16.msra.mxu0 0
        %517 = vmatpush.bf16.msra.mxu0 0
        %518 = vmatpush.bf16.msra.mxu0 0
        %519 = vmatpush.bf16.msra.mxu0 0
        %520 = vmatpush.bf16.msra.mxu0 0
        %521 = vmatpush.bf16.msra.mxu0 0
        %522 = vmatpush.bf16.msra.mxu0 %v503
        %523 = vmatpush.bf16.msra.mxu0 %v501
        %524 = vmatmul.bf16.gmra.mxu0 %v511
        %v525 = vpop.f32.mrf.mxu0
        %v526 = vadd.f32 0.0, %v525
        %v527 = vpop.f32.mrf.mxu0
        %v528 = vadd.f32 0.0, %v527
        %529 = vmatmul.bf16.gmra.mxu0 %v514
        %v530 = vpop.f32.mrf.mxu0
        %v531 = vadd.f32 0.0, %v530
        %v532 = vpop.f32.mrf.mxu0
        %v533 = vadd.f32 0.0, %v532
        %534 = vdwg.mxu0
        %535 = vmatpush.bf16.msra.mxu0 0
        %536 = vmatpush.bf16.msra.mxu0 0
        %537 = vmatpush.bf16.msra.mxu0 0
        %538 = vmatpush.bf16.msra.mxu0 0
        %539 = vmatpush.bf16.msra.mxu0 0
        %540 = vmatpush.bf16.msra.mxu0 0
        %541 = vmatpush.bf16.msra.mxu0 %v504
        %542 = vmatpush.bf16.msra.mxu0 %v502
        %543 = vmatmul.bf16.gmra.mxu0 %v511
        %v544 = vpop.f32.mrf.mxu0
        %v545 = vadd.f32 0.0, %v544
        %v546 = vpop.f32.mrf.mxu0
        %v547 = vadd.f32 0.0, %v546
        %548 = vmatmul.bf16.gmra.mxu0 %v514
        %v549 = vpop.f32.mrf.mxu0
        %v550 = vadd.f32 0.0, %v549
        %v551 = vpop.f32.mrf.mxu0
        %v552 = vadd.f32 0.0, %v551
        %553 = vdwg.mxu0
        %v558 = vunpack.c.l.b16 %v443
        %v559 = vunpack.c.l.b16 %v444
        %v560 = vunpack.c.l.b16 %v445
        %v561 = vunpack.c.l.b16 %v446
        %v562 = vpack.c.b16 %v559, %v558
        %v563 = vpack.c.b16 %v561, %v560
        %v572 = vunpack.c.l.b16 %v435
        %v573 = vunpack.c.h.b16 %v435
        %v574 = vunpack.c.l.b16 %v436
        %v575 = vunpack.c.l.b16 %v437
        %v576 = vunpack.c.h.b16 %v437
        %v577 = vunpack.c.l.b16 %v438
        %v578 = vunpack.c.l.b16 %v439
        %v579 = vunpack.c.h.b16 %v439
        %v580 = vunpack.c.l.b16 %v440
        %v581 = vunpack.c.l.b16 %v441
        %v582 = vunpack.c.h.b16 %v441
        %v583 = vunpack.c.l.b16 %v442
        %v584 = vpack.c.b16 %v575, %v572
        %v585 = vpack.c.b16 %v576, %v573
        %v586 = vpack.c.b16 %v577, %v574
        %v587 = vpack.c.b16 %v581, %v578
        %v588 = vpack.c.b16 %v582, %v579
        %v589 = vpack.c.b16 %v583, %v580
        %590 = vrot.lane.b32.xlu0 %v584, 17
        %v591 = vpop.permute.xlu0 %590
        %592 = vrot.lane.b32.xlu0 %v585, 17
        %v593 = vpop.permute.xlu0 %592
        %594 = vrot.lane.b32.xlu0 %v586, 17
        %v595 = vpop.permute.xlu0 %594
        %596 = vrot.lane.b32.xlu0 %v587, 17
        %v597 = vpop.permute.xlu0 %596
        %598 = vrot.lane.b32.xlu0 %v588, 17
        %v599 = vpop.permute.xlu0 %598
        %600 = vrot.lane.b32.xlu0 %v589, 17
        %v601 = vpop.permute.xlu0 %600
        %vm602 = vcmask 138240
        %v603 = vsel %vm602, %v591, %v593
        %v604 = vsel %vm602, %v593, %v595
        %v605 = vsel %vm602, %v597, %v599
        %v606 = vsel %vm602, %v599, %v601
        %v612 = vsel %vm509, %v562, 0
        %v615 = vsel %vm509, %v563, 0
        %617 = vmatpush.bf16.msra.mxu0 0
        %618 = vmatpush.bf16.msra.mxu0 0
        %619 = vmatpush.bf16.msra.mxu0 0
        %620 = vmatpush.bf16.msra.mxu0 0
        %621 = vmatpush.bf16.msra.mxu0 0
        %622 = vmatpush.bf16.msra.mxu0 0
        %623 = vmatpush.bf16.msra.mxu0 %v605
        %624 = vmatpush.bf16.msra.mxu0 %v603
        %625 = vmatmul.bf16.gmra.mxu0 %v612
        %v626 = vpop.f32.mrf.mxu0
        %v627 = vadd.f32 %v526, %v626
        %v628 = vpop.f32.mrf.mxu0
        %v629 = vadd.f32 %v528, %v628
        %630 = vmatmul.bf16.gmra.mxu0 %v615
        %v631 = vpop.f32.mrf.mxu0
        %v632 = vadd.f32 %v531, %v631
        %v633 = vpop.f32.mrf.mxu0
        %v634 = vadd.f32 %v533, %v633
        %635 = vdwg.mxu0
        %636 = vmatpush.bf16.msra.mxu0 0
        %637 = vmatpush.bf16.msra.mxu0 0
        %638 = vmatpush.bf16.msra.mxu0 0
        %639 = vmatpush.bf16.msra.mxu0 0
        %640 = vmatpush.bf16.msra.mxu0 0
        %641 = vmatpush.bf16.msra.mxu0 0
        %642 = vmatpush.bf16.msra.mxu0 %v606
        %643 = vmatpush.bf16.msra.mxu0 %v604
        %644 = vmatmul.bf16.gmra.mxu0 %v612
        %v645 = vpop.f32.mrf.mxu0
        %v646 = vadd.f32 %v545, %v645
        %v647 = vpop.f32.mrf.mxu0
        %v648 = vadd.f32 %v547, %v647
        %649 = vmatmul.bf16.gmra.mxu0 %v615
        %v650 = vpop.f32.mrf.mxu0
        %v651 = vadd.f32 %v550, %v650
        %v652 = vpop.f32.mrf.mxu0
        %v653 = vadd.f32 %v552, %v652
        %654 = vdwg.mxu0
        %vm655 = vmpackc.low %vm381, %vm380
        %v656 = vsel %vm655, 65537, 0
        %657 = vrot.lane.b32.xlu0 %v656, 113
        %v658 = vpop.permute.xlu0 %657
        %v659 = vrot.slane %v658, 4
        %vm660 = vcmask 924672
        %v661 = vsel %vm660, %v659, %v658
        %v662 = vunpack.c.l.b16 %v661
        %v663 = vunpack.c.h.b16 %v661
        %v664 = vunpack.c.l.b16 0
        %v665 = vunpack.c.h.b16 0
        %vm666 = vcmp.ne.s32.totalorder %v662, %v664
        %vm667 = vcmp.ne.s32.totalorder %v663, %v665
        %vm668 = vmpackc.low %vm667, %vm666
        %v669 = vunpack.c.l.b16 %v659
        %v670 = vunpack.c.h.b16 %v659
        %v671 = vunpack.c.l.b16 0
        %v672 = vunpack.c.h.b16 0
        %vm673 = vcmp.ne.s32.totalorder %v669, %v671
        %vm674 = vcmp.ne.s32.totalorder %v670, %v672
        %vm675 = vmpackc.low %vm674, %vm673
        %v676 = vsel %vm668, %v406, 0
        %v677 = vsel %vm675, %v407, 0
        %v678 = vsel %vm668, %v408, 0
        %v679 = vsel %vm675, %v409, 0
        %v680 = vsel %vm668, %v410, 0
        %v681 = vsel %vm675, %v411, 0
        %v682 = vsel %vm668, %v412, 0
        %v683 = vsel %vm675, %v413, 0
        %s684 = scalar_lea.vmem [#allocation3], 32
        %v685 = vld [vmem:[%s684] sm:$0xf]
        %v686 = vld [vmem:[%s684 + $0x4] sm:$0xf]
        %v687 = vld [vmem:[%s684 + $0x8] sm:$0xf]
        %v688 = vld [vmem:[%s684 + $0xc] sm:$0xf]
        %v693 = vunpack.c.l.b16 %v685
        %v694 = vunpack.c.l.b16 %v686
        %v695 = vunpack.c.l.b16 %v687
        %v696 = vunpack.c.l.b16 %v688
        %v697 = vpack.c.b16 %v694, %v693
        %v698 = vpack.c.b16 %v696, %v695
        %v707 = vunpack.c.l.b16 %v676
        %v708 = vunpack.c.h.b16 %v676
        %v709 = vunpack.c.l.b16 %v677
        %v710 = vunpack.c.l.b16 %v678
        %v711 = vunpack.c.h.b16 %v678
        %v712 = vunpack.c.l.b16 %v679
        %v713 = vunpack.c.l.b16 %v680
        %v714 = vunpack.c.h.b16 %v680
        %v715 = vunpack.c.l.b16 %v681
        %v716 = vunpack.c.l.b16 %v682
        %v717 = vunpack.c.h.b16 %v682
        %v718 = vunpack.c.l.b16 %v683
        %v719 = vpack.c.b16 %v710, %v707
        %v720 = vpack.c.b16 %v711, %v708
        %v721 = vpack.c.b16 %v712, %v709
        %v722 = vpack.c.b16 %v716, %v713
        %v723 = vpack.c.b16 %v717, %v714
        %v724 = vpack.c.b16 %v718, %v715
        %725 = vrot.lane.b32.xlu0 %v719, 15
        %v726 = vpop.permute.xlu0 %725
        %727 = vrot.lane.b32.xlu0 %v720, 15
        %v728 = vpop.permute.xlu0 %727
        %729 = vrot.lane.b32.xlu0 %v721, 15
        %v730 = vpop.permute.xlu0 %729
        %731 = vrot.lane.b32.xlu0 %v722, 15
        %v732 = vpop.permute.xlu0 %731
        %733 = vrot.lane.b32.xlu0 %v723, 15
        %v734 = vpop.permute.xlu0 %733
        %735 = vrot.lane.b32.xlu0 %v724, 15
        %v736 = vpop.permute.xlu0 %735
        %vm737 = vcmask 121856
        %v738 = vsel %vm737, %v726, %v728
        %v739 = vsel %vm737, %v728, %v730
        %v740 = vsel %vm737, %v732, %v734
        %v741 = vsel %vm737, %v734, %v736
        %v747 = vsel %vm509, %v697, 0
        %v750 = vsel %vm509, %v698, 0
        %752 = vmatpush.bf16.msra.mxu0 0
        %753 = vmatpush.bf16.msra.mxu0 0
        %754 = vmatpush.bf16.msra.mxu0 0
        %755 = vmatpush.bf16.msra.mxu0 0
        %756 = vmatpush.bf16.msra.mxu0 0
        %757 = vmatpush.bf16.msra.mxu0 0
        %758 = vmatpush.bf16.msra.mxu0 %v740
        %759 = vmatpush.bf16.msra.mxu0 %v738
        %760 = vmatmul.bf16.gmra.mxu0 %v747
        %v761 = vpop.f32.mrf.mxu0
        %v762 = vadd.f32 0.0, %v761
        %v763 = vpop.f32.mrf.mxu0
        %v764 = vadd.f32 0.0, %v763
        %765 = vmatmul.bf16.gmra.mxu0 %v750
        %v766 = vpop.f32.mrf.mxu0
        %v767 = vadd.f32 0.0, %v766
        %v768 = vpop.f32.mrf.mxu0
        %v769 = vadd.f32 0.0, %v768
        %770 = vdwg.mxu0
        %771 = vmatpush.bf16.msra.mxu0 0
        %772 = vmatpush.bf16.msra.mxu0 0
        %773 = vmatpush.bf16.msra.mxu0 0
        %774 = vmatpush.bf16.msra.mxu0 0
        %775 = vmatpush.bf16.msra.mxu0 0
        %776 = vmatpush.bf16.msra.mxu0 0
        %777 = vmatpush.bf16.msra.mxu0 %v741
        %778 = vmatpush.bf16.msra.mxu0 %v739
        %779 = vmatmul.bf16.gmra.mxu0 %v747
        %v780 = vpop.f32.mrf.mxu0
        %v781 = vadd.f32 0.0, %v780
        %v782 = vpop.f32.mrf.mxu0
        %v783 = vadd.f32 0.0, %v782
        %784 = vmatmul.bf16.gmra.mxu0 %v750
        %v785 = vpop.f32.mrf.mxu0
        %v786 = vadd.f32 0.0, %v785
        %v787 = vpop.f32.mrf.mxu0
        %v788 = vadd.f32 0.0, %v787
        %789 = vdwg.mxu0
        %v790 = vadd.f32 %v627, %v762
        %v791 = vadd.f32 %v646, %v781
        %v792 = vadd.f32 %v629, %v764
        %v793 = vadd.f32 %v648, %v783
        %v794 = vadd.f32 %v632, %v767
        %v795 = vadd.f32 %v651, %v786
        %v796 = vadd.f32 %v634, %v769
        %v797 = vadd.f32 %v653, %v788
        %798 = vrot.lane.b32.xlu0 %v415, 127
        %v799 = vpop.permute.xlu0 %798
        %v800 = vrot.slane %v799, 4
        %vm801 = vcmask 1039360
        %v802 = vsel %vm801, %v800, %v799
        %v803 = vunpack.c.l.b16 %v802
        %v804 = vunpack.c.h.b16 %v802
        %v805 = vunpack.c.l.b16 0
        %v806 = vunpack.c.h.b16 0
        %vm807 = vcmp.ne.s32.totalorder %v803, %v805
        %vm808 = vcmp.ne.s32.totalorder %v804, %v806
        %vm809 = vmpackc.low %vm808, %vm807
        %v810 = vunpack.c.l.b16 %v800
        %v811 = vunpack.c.h.b16 %v800
        %v812 = vunpack.c.l.b16 0
        %v813 = vunpack.c.h.b16 0
        %vm814 = vcmp.ne.s32.totalorder %v810, %v812
        %vm815 = vcmp.ne.s32.totalorder %v811, %v813
        %vm816 = vmpackc.low %vm815, %vm814
        %v817 = vsel %vm809, %v406, 0
        %v818 = vsel %vm816, %v407, 0
        %v819 = vsel %vm809, %v408, 0
        %v820 = vsel %vm816, %v409, 0
        %v821 = vsel %vm809, %v410, 0
        %v822 = vsel %vm816, %v411, 0
        %v823 = vsel %vm809, %v412, 0
        %v824 = vsel %vm816, %v413, 0
        %s825 = scalar_lea.vmem [#allocation3], 48
        %v826 = vld [vmem:[%s825] sm:$0xf]
        %v827 = vld [vmem:[%s825 + $0x4] sm:$0xf]
        %v828 = vld [vmem:[%s825 + $0x8] sm:$0xf]
        %v829 = vld [vmem:[%s825 + $0xc] sm:$0xf]
        %v834 = vunpack.c.l.b16 %v826
        %v835 = vunpack.c.l.b16 %v827
        %v836 = vunpack.c.l.b16 %v828
        %v837 = vunpack.c.l.b16 %v829
        %v838 = vpack.c.b16 %v835, %v834
        %v839 = vpack.c.b16 %v837, %v836
        %v848 = vunpack.c.l.b16 %v817
        %v849 = vunpack.c.h.b16 %v817
        %v850 = vunpack.c.l.b16 %v818
        %v851 = vunpack.c.l.b16 %v819
        %v852 = vunpack.c.h.b16 %v819
        %v853 = vunpack.c.l.b16 %v820
        %v854 = vunpack.c.l.b16 %v821
        %v855 = vunpack.c.h.b16 %v821
        %v856 = vunpack.c.l.b16 %v822
        %v857 = vunpack.c.l.b16 %v823
        %v858 = vunpack.c.h.b16 %v823
        %v859 = vunpack.c.l.b16 %v824
        %v860 = vpack.c.b16 %v851, %v848
        %v861 = vpack.c.b16 %v852, %v849
        %v862 = vpack.c.b16 %v853, %v850
        %v863 = vpack.c.b16 %v857, %v854
        %v864 = vpack.c.b16 %v858, %v855
        %v865 = vpack.c.b16 %v859, %v856
        %866 = vrot.lane.b32.xlu0 %v860, 1
        %v867 = vpop.permute.xlu0 %866
        %868 = vrot.lane.b32.xlu0 %v861, 1
        %v869 = vpop.permute.xlu0 %868
        %870 = vrot.lane.b32.xlu0 %v862, 1
        %v871 = vpop.permute.xlu0 %870
        %872 = vrot.lane.b32.xlu0 %v863, 1
        %v873 = vpop.permute.xlu0 %872
        %874 = vrot.lane.b32.xlu0 %v864, 1
        %v875 = vpop.permute.xlu0 %874
        %876 = vrot.lane.b32.xlu0 %v865, 1
        %v877 = vpop.permute.xlu0 %876
        %vm878 = vcmask 7168
        %v879 = vsel %vm878, %v867, %v869
        %v880 = vsel %vm878, %v869, %v871
        %v881 = vsel %vm878, %v873, %v875
        %v882 = vsel %vm878, %v875, %v877
        %v888 = vsel %vm509, %v838, 0
        %v891 = vsel %vm509, %v839, 0
        %893 = vmatpush.bf16.msra.mxu0 0
        %894 = vmatpush.bf16.msra.mxu0 0
        %895 = vmatpush.bf16.msra.mxu0 0
        %896 = vmatpush.bf16.msra.mxu0 0
        %897 = vmatpush.bf16.msra.mxu0 0
        %898 = vmatpush.bf16.msra.mxu0 0
        %899 = vmatpush.bf16.msra.mxu0 %v881
        %900 = vmatpush.bf16.msra.mxu0 %v879
        %901 = vmatmul.bf16.gmra.mxu0 %v888
        %v902 = vpop.f32.mrf.mxu0
        %v903 = vadd.f32 0.0, %v902
        %v904 = vpop.f32.mrf.mxu0
        %v905 = vadd.f32 0.0, %v904
        %906 = vmatmul.bf16.gmra.mxu0 %v891
        %v907 = vpop.f32.mrf.mxu0
        %v908 = vadd.f32 0.0, %v907
        %v909 = vpop.f32.mrf.mxu0
        %v910 = vadd.f32 0.0, %v909
        %911 = vdwg.mxu0
        %912 = vmatpush.bf16.msra.mxu0 0
        %913 = vmatpush.bf16.msra.mxu0 0
        %914 = vmatpush.bf16.msra.mxu0 0
        %915 = vmatpush.bf16.msra.mxu0 0
        %916 = vmatpush.bf16.msra.mxu0 0
        %917 = vmatpush.bf16.msra.mxu0 0
        %918 = vmatpush.bf16.msra.mxu0 %v882
        %919 = vmatpush.bf16.msra.mxu0 %v880
        %920 = vmatmul.bf16.gmra.mxu0 %v888
        %v921 = vpop.f32.mrf.mxu0
        %v922 = vadd.f32 0.0, %v921
        %v923 = vpop.f32.mrf.mxu0
        %v924 = vadd.f32 0.0, %v923
        %925 = vmatmul.bf16.gmra.mxu0 %v891
        %v926 = vpop.f32.mrf.mxu0
        %v927 = vadd.f32 0.0, %v926
        %v928 = vpop.f32.mrf.mxu0
        %v929 = vadd.f32 0.0, %v928
        %930 = vdwg.mxu0
        %v931 = vadd.f32 %v790, %v903
        %v932 = vadd.f32 %v791, %v922
        %v933 = vadd.f32 %v792, %v905
        %v934 = vadd.f32 %v793, %v924
        %v935 = vadd.f32 %v794, %v908
        %v936 = vadd.f32 %v795, %v927
        %v937 = vadd.f32 %v796, %v910
        %v938 = vadd.f32 %v797, %v929
        %v939 = vld [vmem:[#allocation2 + $0x4] sm:$0xff]
        %v940 = vld [vmem:[#allocation2 + $0x14] sm:$0xff]
        %v941 = vld [vmem:[#allocation2 + $0x24] sm:$0xff]
        %v942 = vld [vmem:[#allocation2 + $0x34] sm:$0xff]
        %s943 = scalar_lea.vmem [#allocation3], 64
        %v944 = vld [vmem:[%s943] sm:$0xf]
        %v945 = vld [vmem:[%s943 + $0x4] sm:$0xf]
        %v946 = vld [vmem:[%s943 + $0x8] sm:$0xf]
        %v947 = vld [vmem:[%s943 + $0xc] sm:$0xf]
        %v952 = vunpack.c.l.b16 %v944
        %v953 = vunpack.c.l.b16 %v945
        %v954 = vunpack.c.l.b16 %v946
        %v955 = vunpack.c.l.b16 %v947
        %v956 = vpack.c.b16 %v953, %v952
        %v957 = vpack.c.b16 %v955, %v954
        %v962 = vunpack.c.l.b16 %v939
        %v963 = vunpack.c.h.b16 %v939
        %v964 = vunpack.c.l.b16 %v940
        %v965 = vunpack.c.h.b16 %v940
        %v966 = vunpack.c.l.b16 %v941
        %v967 = vunpack.c.h.b16 %v941
        %v968 = vunpack.c.l.b16 %v942
        %v969 = vunpack.c.h.b16 %v942
        %v970 = vpack.c.b16 %v964, %v962
        %v971 = vpack.c.b16 %v965, %v963
        %v972 = vpack.c.b16 %v968, %v966
        %v973 = vpack.c.b16 %v969, %v967
        %v979 = vsel %vm509, %v956, 0
        %v982 = vsel %vm509, %v957, 0
        %984 = vmatpush.bf16.msra.mxu0 0
        %985 = vmatpush.bf16.msra.mxu0 0
        %986 = vmatpush.bf16.msra.mxu0 0
        %987 = vmatpush.bf16.msra.mxu0 0
        %988 = vmatpush.bf16.msra.mxu0 0
        %989 = vmatpush.bf16.msra.mxu0 0
        %990 = vmatpush.bf16.msra.mxu0 %v972
        %991 = vmatpush.bf16.msra.mxu0 %v970
        %992 = vmatmul.bf16.gmra.mxu0 %v979
        %v993 = vpop.f32.mrf.mxu0
        %v994 = vadd.f32 0.0, %v993
        %v995 = vpop.f32.mrf.mxu0
        %v996 = vadd.f32 0.0, %v995
        %997 = vmatmul.bf16.gmra.mxu0 %v982
        %v998 = vpop.f32.mrf.mxu0
        %v999 = vadd.f32 0.0, %v998
        %v1000 = vpop.f32.mrf.mxu0
        %v1001 = vadd.f32 0.0, %v1000
        %1002 = vdwg.mxu0
        %1003 = vmatpush.bf16.msra.mxu0 0
        %1004 = vmatpush.bf16.msra.mxu0 0
        %1005 = vmatpush.bf16.msra.mxu0 0
        %1006 = vmatpush.bf16.msra.mxu0 0
        %1007 = vmatpush.bf16.msra.mxu0 0
        %1008 = vmatpush.bf16.msra.mxu0 0
        %1009 = vmatpush.bf16.msra.mxu0 %v973
        %1010 = vmatpush.bf16.msra.mxu0 %v971
        %1011 = vmatmul.bf16.gmra.mxu0 %v979
        %v1012 = vpop.f32.mrf.mxu0
        %v1013 = vadd.f32 0.0, %v1012
        %v1014 = vpop.f32.mrf.mxu0
        %v1015 = vadd.f32 0.0, %v1014
        %1016 = vmatmul.bf16.gmra.mxu0 %v982
        %v1017 = vpop.f32.mrf.mxu0
        %v1018 = vadd.f32 0.0, %v1017
        %v1019 = vpop.f32.mrf.mxu0
        %v1020 = vadd.f32 0.0, %v1019
        %1021 = vdwg.mxu0
        %v1022 = vadd.f32 %v931, %v994
        %v1023 = vadd.f32 %v932, %v1013
        %v1024 = vadd.f32 %v933, %v996
        %v1025 = vadd.f32 %v934, %v1015
        %v1026 = vadd.f32 %v935, %v999
        %v1027 = vadd.f32 %v936, %v1018
        %v1028 = vadd.f32 %v937, %v1001
        %v1029 = vadd.f32 %v938, %v1020
        %v1030 = vld [vmem:[#allocation2 + $0x4] sm:$0xff]
        %v1031 = vld [vmem:[#allocation2 + $0xc] sm:$0xf]
        %v1032 = vld [vmem:[#allocation2 + $0x14] sm:$0xff]
        %v1033 = vld [vmem:[#allocation2 + $0x1c] sm:$0xf]
        %v1034 = vld [vmem:[#allocation2 + $0x24] sm:$0xff]
        %v1035 = vld [vmem:[#allocation2 + $0x2c] sm:$0xf]
        %v1036 = vld [vmem:[#allocation2 + $0x34] sm:$0xff]
        %v1037 = vld [vmem:[#allocation2 + $0x3c] sm:$0xf]
        %1038 = vrot.lane.b32.xlu0 %v656, 1
        %v1039 = vpop.permute.xlu0 %1038
        %v1040 = vrot.slane %v1039, 4
        %v1041 = vsel %vm878, %v1040, %v1039
        %v1042 = vunpack.c.l.b16 %v1041
        %v1043 = vunpack.c.h.b16 %v1041
        %v1044 = vunpack.c.l.b16 0
        %v1045 = vunpack.c.h.b16 0
        %vm1046 = vcmp.ne.s32.totalorder %v1042, %v1044
        %vm1047 = vcmp.ne.s32.totalorder %v1043, %v1045
        %vm1048 = vmpackc.low %vm1047, %vm1046
        %v1049 = vunpack.c.l.b16 %v1040
        %v1050 = vunpack.c.h.b16 %v1040
        %v1051 = vunpack.c.l.b16 0
        %v1052 = vunpack.c.h.b16 0
        %vm1053 = vcmp.ne.s32.totalorder %v1049, %v1051
        %vm1054 = vcmp.ne.s32.totalorder %v1050, %v1052
        %vm1055 = vmpackc.low %vm1054, %vm1053
        %v1056 = vsel %vm1048, %v1030, 0
        %v1057 = vsel %vm1055, %v1031, 0
        %v1058 = vsel %vm1048, %v1032, 0
        %v1059 = vsel %vm1055, %v1033, 0
        %v1060 = vsel %vm1048, %v1034, 0
        %v1061 = vsel %vm1055, %v1035, 0
        %v1062 = vsel %vm1048, %v1036, 0
        %v1063 = vsel %vm1055, %v1037, 0
        %s1064 = scalar_lea.vmem [#allocation3], 80
        %v1065 = vld [vmem:[%s1064] sm:$0xf]
        %v1066 = vld [vmem:[%s1064 + $0x4] sm:$0xf]
        %v1067 = vld [vmem:[%s1064 + $0x8] sm:$0xf]
        %v1068 = vld [vmem:[%s1064 + $0xc] sm:$0xf]
        %v1073 = vunpack.c.l.b16 %v1065
        %v1074 = vunpack.c.l.b16 %v1066
        %v1075 = vunpack.c.l.b16 %v1067
        %v1076 = vunpack.c.l.b16 %v1068
        %v1077 = vpack.c.b16 %v1074, %v1073
        %v1078 = vpack.c.b16 %v1076, %v1075
        %v1087 = vunpack.c.l.b16 %v1056
        %v1088 = vunpack.c.h.b16 %v1056
        %v1089 = vunpack.c.l.b16 %v1057
        %v1090 = vunpack.c.l.b16 %v1058
        %v1091 = vunpack.c.h.b16 %v1058
        %v1092 = vunpack.c.l.b16 %v1059
        %v1093 = vunpack.c.l.b16 %v1060
        %v1094 = vunpack.c.h.b16 %v1060
        %v1095 = vunpack.c.l.b16 %v1061
        %v1096 = vunpack.c.l.b16 %v1062
        %v1097 = vunpack.c.h.b16 %v1062
        %v1098 = vunpack.c.l.b16 %v1063
        %v1099 = vpack.c.b16 %v1090, %v1087
        %v1100 = vpack.c.b16 %v1091, %v1088
        %v1101 = vpack.c.b16 %v1092, %v1089
        %v1102 = vpack.c.b16 %v1096, %v1093
        %v1103 = vpack.c.b16 %v1097, %v1094
        %v1104 = vpack.c.b16 %v1098, %v1095
        %1105 = vrot.lane.b32.xlu0 %v1099, 127
        %v1106 = vpop.permute.xlu0 %1105
        %1107 = vrot.lane.b32.xlu0 %v1100, 127
        %v1108 = vpop.permute.xlu0 %1107
        %1109 = vrot.lane.b32.xlu0 %v1101, 127
        %v1110 = vpop.permute.xlu0 %1109
        %1111 = vrot.lane.b32.xlu0 %v1102, 127
        %v1112 = vpop.permute.xlu0 %1111
        %1113 = vrot.lane.b32.xlu0 %v1103, 127
        %v1114 = vpop.permute.xlu0 %1113
        %1115 = vrot.lane.b32.xlu0 %v1104, 127
        %v1116 = vpop.permute.xlu0 %1115
        %v1117 = vsel %vm801, %v1106, %v1108
        %v1118 = vsel %vm801, %v1108, %v1110
        %v1119 = vsel %vm801, %v1112, %v1114
        %v1120 = vsel %vm801, %v1114, %v1116
        %v1126 = vsel %vm509, %v1077, 0
        %v1129 = vsel %vm509, %v1078, 0
        %1131 = vmatpush.bf16.msra.mxu0 0
        %1132 = vmatpush.bf16.msra.mxu0 0
        %1133 = vmatpush.bf16.msra.mxu0 0
        %1134 = vmatpush.bf16.msra.mxu0 0
        %1135 = vmatpush.bf16.msra.mxu0 0
        %1136 = vmatpush.bf16.msra.mxu0 0
        %1137 = vmatpush.bf16.msra.mxu0 %v1119
        %1138 = vmatpush.bf16.msra.mxu0 %v1117
        %1139 = vmatmul.bf16.gmra.mxu0 %v1126
        %v1140 = vpop.f32.mrf.mxu0
        %v1141 = vadd.f32 0.0, %v1140
        %v1142 = vpop.f32.mrf.mxu0
        %v1143 = vadd.f32 0.0, %v1142
        %1144 = vmatmul.bf16.gmra.mxu0 %v1129
        %v1145 = vpop.f32.mrf.mxu0
        %v1146 = vadd.f32 0.0, %v1145
        %v1147 = vpop.f32.mrf.mxu0
        %v1148 = vadd.f32 0.0, %v1147
        %1149 = vdwg.mxu0
        %1150 = vmatpush.bf16.msra.mxu0 0
        %1151 = vmatpush.bf16.msra.mxu0 0
        %1152 = vmatpush.bf16.msra.mxu0 0
        %1153 = vmatpush.bf16.msra.mxu0 0
        %1154 = vmatpush.bf16.msra.mxu0 0
        %1155 = vmatpush.bf16.msra.mxu0 0
        %1156 = vmatpush.bf16.msra.mxu0 %v1120
        %1157 = vmatpush.bf16.msra.mxu0 %v1118
        %1158 = vmatmul.bf16.gmra.mxu0 %v1126
        %v1159 = vpop.f32.mrf.mxu0
        %v1160 = vadd.f32 0.0, %v1159
        %v1161 = vpop.f32.mrf.mxu0
        %v1162 = vadd.f32 0.0, %v1161
        %1163 = vmatmul.bf16.gmra.mxu0 %v1129
        %v1164 = vpop.f32.mrf.mxu0
        %v1165 = vadd.f32 0.0, %v1164
        %v1166 = vpop.f32.mrf.mxu0
        %v1167 = vadd.f32 0.0, %v1166
        %1168 = vdwg.mxu0
        %v1169 = vadd.f32 %v1022, %v1141
        %v1170 = vadd.f32 %v1023, %v1160
        %v1171 = vadd.f32 %v1024, %v1143
        %v1172 = vadd.f32 %v1025, %v1162
        %v1173 = vadd.f32 %v1026, %v1146
        %v1174 = vadd.f32 %v1027, %v1165
        %v1175 = vadd.f32 %v1028, %v1148
        %v1176 = vadd.f32 %v1029, %v1167
        %1177 = vrot.lane.b32.xlu0 %v415, 15
        %v1178 = vpop.permute.xlu0 %1177
        %v1179 = vrot.slane %v1178, 4
        %v1180 = vsel %vm737, %v1179, %v1178
        %v1181 = vunpack.c.l.b16 %v1180
        %v1182 = vunpack.c.h.b16 %v1180
        %v1183 = vunpack.c.l.b16 0
        %v1184 = vunpack.c.h.b16 0
        %vm1185 = vcmp.ne.s32.totalorder %v1181, %v1183
        %vm1186 = vcmp.ne.s32.totalorder %v1182, %v1184
        %vm1187 = vmpackc.low %vm1186, %vm1185
        %v1188 = vunpack.c.l.b16 %v1179
        %v1189 = vunpack.c.h.b16 %v1179
        %v1190 = vunpack.c.l.b16 0
        %v1191 = vunpack.c.h.b16 0
        %vm1192 = vcmp.ne.s32.totalorder %v1188, %v1190
        %vm1193 = vcmp.ne.s32.totalorder %v1189, %v1191
        %vm1194 = vmpackc.low %vm1193, %vm1192
        %v1195 = vsel %vm1187, %v1030, 0
        %v1196 = vsel %vm1194, %v1031, 0
        %v1197 = vsel %vm1187, %v1032, 0
        %v1198 = vsel %vm1194, %v1033, 0
        %v1199 = vsel %vm1187, %v1034, 0
        %v1200 = vsel %vm1194, %v1035, 0
        %v1201 = vsel %vm1187, %v1036, 0
        %v1202 = vsel %vm1194, %v1037, 0
        %s1203 = scalar_lea.vmem [#allocation3], 96
        %v1204 = vld [vmem:[%s1203] sm:$0xf]
        %v1205 = vld [vmem:[%s1203 + $0x4] sm:$0xf]
        %v1206 = vld [vmem:[%s1203 + $0x8] sm:$0xf]
        %v1207 = vld [vmem:[%s1203 + $0xc] sm:$0xf]
        %v1212 = vunpack.c.l.b16 %v1204
        %v1213 = vunpack.c.l.b16 %v1205
        %v1214 = vunpack.c.l.b16 %v1206
        %v1215 = vunpack.c.l.b16 %v1207
        %v1216 = vpack.c.b16 %v1213, %v1212
        %v1217 = vpack.c.b16 %v1215, %v1214
        %v1226 = vunpack.c.l.b16 %v1195
        %v1227 = vunpack.c.h.b16 %v1195
        %v1228 = vunpack.c.l.b16 %v1196
        %v1229 = vunpack.c.l.b16 %v1197
        %v1230 = vunpack.c.h.b16 %v1197
        %v1231 = vunpack.c.l.b16 %v1198
        %v1232 = vunpack.c.l.b16 %v1199
        %v1233 = vunpack.c.h.b16 %v1199
        %v1234 = vunpack.c.l.b16 %v1200
        %v1235 = vunpack.c.l.b16 %v1201
        %v1236 = vunpack.c.h.b16 %v1201
        %v1237 = vunpack.c.l.b16 %v1202
        %v1238 = vpack.c.b16 %v1229, %v1226
        %v1239 = vpack.c.b16 %v1230, %v1227
        %v1240 = vpack.c.b16 %v1231, %v1228
        %v1241 = vpack.c.b16 %v1235, %v1232
        %v1242 = vpack.c.b16 %v1236, %v1233
        %v1243 = vpack.c.b16 %v1237, %v1234
        %1244 = vrot.lane.b32.xlu0 %v1238, 113
        %v1245 = vpop.permute.xlu0 %1244
        %1246 = vrot.lane.b32.xlu0 %v1239, 113
        %v1247 = vpop.permute.xlu0 %1246
        %1248 = vrot.lane.b32.xlu0 %v1240, 113
        %v1249 = vpop.permute.xlu0 %1248
        %1250 = vrot.lane.b32.xlu0 %v1241, 113
        %v1251 = vpop.permute.xlu0 %1250
        %1252 = vrot.lane.b32.xlu0 %v1242, 113
        %v1253 = vpop.permute.xlu0 %1252
        %1254 = vrot.lane.b32.xlu0 %v1243, 113
        %v1255 = vpop.permute.xlu0 %1254
        %v1256 = vsel %vm660, %v1245, %v1247
        %v1257 = vsel %vm660, %v1247, %v1249
        %v1258 = vsel %vm660, %v1251, %v1253
        %v1259 = vsel %vm660, %v1253, %v1255
        %v1265 = vsel %vm509, %v1216, 0
        %v1268 = vsel %vm509, %v1217, 0
        %1270 = vmatpush.bf16.msra.mxu0 0
        %1271 = vmatpush.bf16.msra.mxu0 0
        %1272 = vmatpush.bf16.msra.mxu0 0
        %1273 = vmatpush.bf16.msra.mxu0 0
        %1274 = vmatpush.bf16.msra.mxu0 0
        %1275 = vmatpush.bf16.msra.mxu0 0
        %1276 = vmatpush.bf16.msra.mxu0 %v1258
        %1277 = vmatpush.bf16.msra.mxu0 %v1256
        %1278 = vmatmul.bf16.gmra.mxu0 %v1265
        %v1279 = vpop.f32.mrf.mxu0
        %v1280 = vadd.f32 0.0, %v1279
        %v1281 = vpop.f32.mrf.mxu0
        %v1282 = vadd.f32 0.0, %v1281
        %1283 = vmatmul.bf16.gmra.mxu0 %v1268
        %v1284 = vpop.f32.mrf.mxu0
        %v1285 = vadd.f32 0.0, %v1284
        %v1286 = vpop.f32.mrf.mxu0
        %v1287 = vadd.f32 0.0, %v1286
        %1288 = vdwg.mxu0
        %1289 = vmatpush.bf16.msra.mxu0 0
        %1290 = vmatpush.bf16.msra.mxu0 0
        %1291 = vmatpush.bf16.msra.mxu0 0
        %1292 = vmatpush.bf16.msra.mxu0 0
        %1293 = vmatpush.bf16.msra.mxu0 0
        %1294 = vmatpush.bf16.msra.mxu0 0
        %1295 = vmatpush.bf16.msra.mxu0 %v1259
        %1296 = vmatpush.bf16.msra.mxu0 %v1257
        %1297 = vmatmul.bf16.gmra.mxu0 %v1265
        %v1298 = vpop.f32.mrf.mxu0
        %v1299 = vadd.f32 0.0, %v1298
        %v1300 = vpop.f32.mrf.mxu0
        %v1301 = vadd.f32 0.0, %v1300
        %1302 = vmatmul.bf16.gmra.mxu0 %v1268
        %v1303 = vpop.f32.mrf.mxu0
        %v1304 = vadd.f32 0.0, %v1303
        %v1305 = vpop.f32.mrf.mxu0
        %v1306 = vadd.f32 0.0, %v1305
        %1307 = vdwg.mxu0
        %v1308 = vadd.f32 %v1169, %v1280
        %v1309 = vadd.f32 %v1170, %v1299
        %v1310 = vadd.f32 %v1171, %v1282
        %v1311 = vadd.f32 %v1172, %v1301
        %v1312 = vadd.f32 %v1173, %v1285
        %v1313 = vadd.f32 %v1174, %v1304
        %v1314 = vadd.f32 %v1175, %v1287
        %v1315 = vadd.f32 %v1176, %v1306
        %s1316 = scalar_lea.vmem [#allocation3], 112
        %v1317 = vld [vmem:[%s1316] sm:$0xf]
        %v1318 = vld [vmem:[%s1316 + $0x4] sm:$0xf]
        %v1319 = vld [vmem:[%s1316 + $0x8] sm:$0xf]
        %v1320 = vld [vmem:[%s1316 + $0xc] sm:$0xf]
        %v1325 = vunpack.c.l.b16 %v1317
        %v1326 = vunpack.c.l.b16 %v1318
        %v1327 = vunpack.c.l.b16 %v1319
        %v1328 = vunpack.c.l.b16 %v1320
        %v1329 = vpack.c.b16 %v1326, %v1325
        %v1330 = vpack.c.b16 %v1328, %v1327
        %v1339 = vunpack.c.l.b16 %v1030
        %v1340 = vunpack.c.h.b16 %v1030
        %v1341 = vunpack.c.l.b16 %v1031
        %v1342 = vunpack.c.l.b16 %v1032
        %v1343 = vunpack.c.h.b16 %v1032
        %v1344 = vunpack.c.l.b16 %v1033
        %v1345 = vunpack.c.l.b16 %v1034
        %v1346 = vunpack.c.h.b16 %v1034
        %v1347 = vunpack.c.l.b16 %v1035
        %v1348 = vunpack.c.l.b16 %v1036
        %v1349 = vunpack.c.h.b16 %v1036
        %v1350 = vunpack.c.l.b16 %v1037
        %v1351 = vpack.c.b16 %v1342, %v1339
        %v1352 = vpack.c.b16 %v1343, %v1340
        %v1353 = vpack.c.b16 %v1344, %v1341
        %v1354 = vpack.c.b16 %v1348, %v1345
        %v1355 = vpack.c.b16 %v1349, %v1346
        %v1356 = vpack.c.b16 %v1350, %v1347
        %1357 = vrot.lane.b32.xlu0 %v1351, 112
        %v1358 = vpop.permute.xlu0 %1357
        %1359 = vrot.lane.b32.xlu0 %v1352, 112
        %v1360 = vpop.permute.xlu0 %1359
        %1361 = vrot.lane.b32.xlu0 %v1353, 112
        %v1362 = vpop.permute.xlu0 %1361
        %1363 = vrot.lane.b32.xlu0 %v1354, 112
        %v1364 = vpop.permute.xlu0 %1363
        %1365 = vrot.lane.b32.xlu0 %v1355, 112
        %v1366 = vpop.permute.xlu0 %1365
        %1367 = vrot.lane.b32.xlu0 %v1356, 112
        %v1368 = vpop.permute.xlu0 %1367
        %vm1369 = vcmask 916480
        %v1370 = vsel %vm1369, %v1358, %v1360
        %v1371 = vsel %vm1369, %v1360, %v1362
        %v1372 = vsel %vm1369, %v1364, %v1366
        %v1373 = vsel %vm1369, %v1366, %v1368
        %v1379 = vsel %vm509, %v1329, 0
        %v1382 = vsel %vm509, %v1330, 0
        %1384 = vmatpush.bf16.msra.mxu0 0
        %1385 = vmatpush.bf16.msra.mxu0 0
        %1386 = vmatpush.bf16.msra.mxu0 0
        %1387 = vmatpush.bf16.msra.mxu0 0
        %1388 = vmatpush.bf16.msra.mxu0 0
        %1389 = vmatpush.bf16.msra.mxu0 0
        %1390 = vmatpush.bf16.msra.mxu0 %v1372
        %1391 = vmatpush.bf16.msra.mxu0 %v1370
        %1392 = vmatmul.bf16.gmra.mxu0 %v1379
        %v1393 = vpop.f32.mrf.mxu0
        %v1394 = vadd.f32 0.0, %v1393
        %v1395 = vpop.f32.mrf.mxu0
        %v1396 = vadd.f32 0.0, %v1395
        %1397 = vmatmul.bf16.gmra.mxu0 %v1382
        %v1398 = vpop.f32.mrf.mxu0
        %v1399 = vadd.f32 0.0, %v1398
        %v1400 = vpop.f32.mrf.mxu0
        %v1401 = vadd.f32 0.0, %v1400
        %1402 = vdwg.mxu0
        %1403 = vmatpush.bf16.msra.mxu0 0
        %1404 = vmatpush.bf16.msra.mxu0 0
        %1405 = vmatpush.bf16.msra.mxu0 0
        %1406 = vmatpush.bf16.msra.mxu0 0
        %1407 = vmatpush.bf16.msra.mxu0 0
        %1408 = vmatpush.bf16.msra.mxu0 0
        %1409 = vmatpush.bf16.msra.mxu0 %v1373
        %1410 = vmatpush.bf16.msra.mxu0 %v1371
        %1411 = vmatmul.bf16.gmra.mxu0 %v1379
        %v1412 = vpop.f32.mrf.mxu0
        %v1413 = vadd.f32 0.0, %v1412
        %v1414 = vpop.f32.mrf.mxu0
        %v1415 = vadd.f32 0.0, %v1414
        %1416 = vmatmul.bf16.gmra.mxu0 %v1382
        %v1417 = vpop.f32.mrf.mxu0
        %v1418 = vadd.f32 0.0, %v1417
        %v1419 = vpop.f32.mrf.mxu0
        %v1420 = vadd.f32 0.0, %v1419
        %1421 = vdwg.mxu0
        %v1422 = vadd.f32 %v1308, %v1394
        %v1423 = vadd.f32 %v1309, %v1413
        %v1424 = vadd.f32 %v1310, %v1396
        %v1425 = vadd.f32 %v1311, %v1415
        %v1426 = vadd.f32 %v1312, %v1399
        %v1427 = vadd.f32 %v1313, %v1418
        %v1428 = vadd.f32 %v1314, %v1401
        %v1429 = vadd.f32 %v1315, %v1420
        %1430 = vrot.lane.b32.xlu0 %v656, 17
        %v1431 = vpop.permute.xlu0 %1430
        %v1432 = vrot.slane %v1431, 4
        %v1433 = vsel %vm602, %v1432, %v1431
        %v1434 = vunpack.c.l.b16 %v1433
        %v1435 = vunpack.c.h.b16 %v1433
        %v1436 = vunpack.c.l.b16 0
        %v1437 = vunpack.c.h.b16 0
        %vm1438 = vcmp.ne.s32.totalorder %v1434, %v1436
        %vm1439 = vcmp.ne.s32.totalorder %v1435, %v1437
        %vm1440 = vmpackc.low %vm1439, %vm1438
        %v1441 = vunpack.c.l.b16 %v1432
        %v1442 = vunpack.c.h.b16 %v1432
        %v1443 = vunpack.c.l.b16 0
        %v1444 = vunpack.c.h.b16 0
        %vm1445 = vcmp.ne.s32.totalorder %v1441, %v1443
        %vm1446 = vcmp.ne.s32.totalorder %v1442, %v1444
        %vm1447 = vmpackc.low %vm1446, %vm1445
        %v1448 = vsel %vm1440, %v1030, 0
        %v1449 = vsel %vm1447, %v1031, 0
        %v1450 = vsel %vm1440, %v1032, 0
        %v1451 = vsel %vm1447, %v1033, 0
        %v1452 = vsel %vm1440, %v1034, 0
        %v1453 = vsel %vm1447, %v1035, 0
        %v1454 = vsel %vm1440, %v1036, 0
        %v1455 = vsel %vm1447, %v1037, 0
        %s1456 = scalar_lea.vmem [#allocation3], 128
        %v1457 = vld [vmem:[%s1456] sm:$0xf]
        %v1458 = vld [vmem:[%s1456 + $0x4] sm:$0xf]
        %v1459 = vld [vmem:[%s1456 + $0x8] sm:$0xf]
        %v1460 = vld [vmem:[%s1456 + $0xc] sm:$0xf]
        %v1465 = vunpack.c.l.b16 %v1457
        %v1466 = vunpack.c.l.b16 %v1458
        %v1467 = vunpack.c.l.b16 %v1459
        %v1468 = vunpack.c.l.b16 %v1460
        %v1469 = vpack.c.b16 %v1466, %v1465
        %v1470 = vpack.c.b16 %v1468, %v1467
        %v1479 = vunpack.c.l.b16 %v1448
        %v1480 = vunpack.c.h.b16 %v1448
        %v1481 = vunpack.c.l.b16 %v1449
        %v1482 = vunpack.c.l.b16 %v1450
        %v1483 = vunpack.c.h.b16 %v1450
        %v1484 = vunpack.c.l.b16 %v1451
        %v1485 = vunpack.c.l.b16 %v1452
        %v1486 = vunpack.c.h.b16 %v1452
        %v1487 = vunpack.c.l.b16 %v1453
        %v1488 = vunpack.c.l.b16 %v1454
        %v1489 = vunpack.c.h.b16 %v1454
        %v1490 = vunpack.c.l.b16 %v1455
        %v1491 = vpack.c.b16 %v1482, %v1479
        %v1492 = vpack.c.b16 %v1483, %v1480
        %v1493 = vpack.c.b16 %v1484, %v1481
        %v1494 = vpack.c.b16 %v1488, %v1485
        %v1495 = vpack.c.b16 %v1489, %v1486
        %v1496 = vpack.c.b16 %v1490, %v1487
        %1497 = vrot.lane.b32.xlu0 %v1491, 111
        %v1498 = vpop.permute.xlu0 %1497
        %1499 = vrot.lane.b32.xlu0 %v1492, 111
        %v1500 = vpop.permute.xlu0 %1499
        %1501 = vrot.lane.b32.xlu0 %v1493, 111
        %v1502 = vpop.permute.xlu0 %1501
        %1503 = vrot.lane.b32.xlu0 %v1494, 111
        %v1504 = vpop.permute.xlu0 %1503
        %1505 = vrot.lane.b32.xlu0 %v1495, 111
        %v1506 = vpop.permute.xlu0 %1505
        %1507 = vrot.lane.b32.xlu0 %v1496, 111
        %v1508 = vpop.permute.xlu0 %1507
        %v1509 = vsel %vm419, %v1498, %v1500
        %v1510 = vsel %vm419, %v1500, %v1502
        %v1511 = vsel %vm419, %v1504, %v1506
        %v1512 = vsel %vm419, %v1506, %v1508
        %v1518 = vsel %vm509, %v1469, 0
        %v1521 = vsel %vm509, %v1470, 0
        %1523 = vmatpush.bf16.msra.mxu0 0
        %1524 = vmatpush.bf16.msra.mxu0 0
        %1525 = vmatpush.bf16.msra.mxu0 0
        %1526 = vmatpush.bf16.msra.mxu0 0
        %1527 = vmatpush.bf16.msra.mxu0 0
        %1528 = vmatpush.bf16.msra.mxu0 0
        %1529 = vmatpush.bf16.msra.mxu0 %v1511
        %1530 = vmatpush.bf16.msra.mxu0 %v1509
        %1531 = vmatmul.bf16.gmra.mxu0 %v1518
        %v1532 = vpop.f32.mrf.mxu0
        %v1533 = vadd.f32 0.0, %v1532
        %v1534 = vpop.f32.mrf.mxu0
        %v1535 = vadd.f32 0.0, %v1534
        %1536 = vmatmul.bf16.gmra.mxu0 %v1521
        %v1537 = vpop.f32.mrf.mxu0
        %v1538 = vadd.f32 0.0, %v1537
        %v1539 = vpop.f32.mrf.mxu0
        %v1540 = vadd.f32 0.0, %v1539
        %1541 = vdwg.mxu0
        %1542 = vmatpush.bf16.msra.mxu0 0
        %1543 = vmatpush.bf16.msra.mxu0 0
        %1544 = vmatpush.bf16.msra.mxu0 0
        %1545 = vmatpush.bf16.msra.mxu0 0
        %1546 = vmatpush.bf16.msra.mxu0 0
        %1547 = vmatpush.bf16.msra.mxu0 0
        %1548 = vmatpush.bf16.msra.mxu0 %v1512
        %1549 = vmatpush.bf16.msra.mxu0 %v1510
        %1550 = vmatmul.bf16.gmra.mxu0 %v1518
        %v1551 = vpop.f32.mrf.mxu0
        %v1552 = vadd.f32 0.0, %v1551
        %v1553 = vpop.f32.mrf.mxu0
        %v1554 = vadd.f32 0.0, %v1553
        %1555 = vmatmul.bf16.gmra.mxu0 %v1521
        %v1556 = vpop.f32.mrf.mxu0
        %v1557 = vadd.f32 0.0, %v1556
        %v1558 = vpop.f32.mrf.mxu0
        %v1559 = vadd.f32 0.0, %v1558
        %1560 = vdwg.mxu0
        %v1561 = vadd.f32 %v1422, %v1533
        %v1562 = vadd.f32 %v1423, %v1552
        %v1563 = vadd.f32 %v1424, %v1535
        %v1564 = vadd.f32 %v1425, %v1554
        %v1565 = vadd.f32 %v1426, %v1538
        %v1566 = vadd.f32 %v1427, %v1557
        %v1567 = vadd.f32 %v1428, %v1540
        %v1568 = vadd.f32 %v1429, %v1559
        %v1569 = vld [vmem:[%s2] sm:$0xff]
        %v1570 = vld [vmem:[%s2 + $0x8] sm:$0xff]
        %v1571 = vld [vmem:[%s2 + $0x10] sm:$0xff]
        %v1572 = vld [vmem:[%s2 + $0x18] sm:$0xff]
        %1574 = vset.pattern.permute.xlu0 0
        %1575 = vperm.xlu0 %1574, %v1569
        %v1576 = vpop.permute.xlu0 %1575
        %1579 = vset.pattern.permute.xlu0 0
        %1580 = vperm.xlu0 %1579, %v1570
        %v1581 = vpop.permute.xlu0 %1580
        %1584 = vset.pattern.permute.xlu0 0
        %1585 = vperm.xlu0 %1584, %v1571
        %v1586 = vpop.permute.xlu0 %1585
        %1589 = vset.pattern.permute.xlu0 0
        %1590 = vperm.xlu0 %1589, %v1572
        %v1591 = vpop.permute.xlu0 %1590
        %v1593 = vadd.f32 %v1561, %v1576
        %v1594 = vadd.f32 %v1562, %v1576
        %v1595 = vadd.f32 %v1563, %v1581
        %v1596 = vadd.f32 %v1564, %v1581
        %v1597 = vadd.f32 %v1565, %v1586
        %v1598 = vadd.f32 %v1566, %v1586
        %v1599 = vadd.f32 %v1567, %v1591
        %v1600 = vadd.f32 %v1568, %v1591
        %v1601 = vmax.f32 %v1593, 0.0
        %v1602 = vmax.f32 %v1594, 0.0
        %v1603 = vmax.f32 %v1595, 0.0
        %v1604 = vmax.f32 %v1596, 0.0
        %v1605 = vmax.f32 %v1597, 0.0
        %v1606 = vmax.f32 %v1598, 0.0
        %v1607 = vmax.f32 %v1599, 0.0
        %v1608 = vmax.f32 %v1600, 0.0
        %v1609 = vpack.c.bf16 %v1602, %v1601
        %v1610 = vpack.c.bf16 %v1604, %v1603
        %v1611 = vpack.c.bf16 %v1606, %v1605
        %v1612 = vpack.c.bf16 %v1608, %v1607
        %1613 = vst [vmem:[#allocation2 + $0x4] sm:$0xff] %v1609
        %1614 = vst [vmem:[#allocation2 + $0x14] sm:$0xff] %v1610
        %1615 = vst [vmem:[#allocation2 + $0x24] sm:$0xff] %v1611
        %1616 = vst [vmem:[#allocation2 + $0x34] sm:$0xff] %v1612
        %v1617 = vld [vmem:[#allocation2] sm:$0xff]
        %v1618 = vld [vmem:[#allocation2 + $0x8] sm:$0xf]
        %v1619 = vld [vmem:[#allocation2 + $0x10] sm:$0xff]
        %v1620 = vld [vmem:[#allocation2 + $0x18] sm:$0xf]
        %v1621 = vld [vmem:[#allocation2 + $0x20] sm:$0xff]
        %v1622 = vld [vmem:[#allocation2 + $0x28] sm:$0xf]
        %v1623 = vld [vmem:[#allocation2 + $0x30] sm:$0xff]
        %v1624 = vld [vmem:[#allocation2 + $0x38] sm:$0xf]
        %v1625 = vsel %vm427, %v1617, 0
        %v1626 = vsel %vm434, %v1618, 0
        %v1627 = vsel %vm427, %v1619, 0
        %v1628 = vsel %vm434, %v1620, 0
        %v1629 = vsel %vm427, %v1621, 0
        %v1630 = vsel %vm434, %v1622, 0
        %v1631 = vsel %vm427, %v1623, 0
        %v1632 = vsel %vm434, %v1624, 0
        %v1633 = vld [vmem:[#allocation6] sm:$0xf]
        %v1634 = vld [vmem:[#allocation6 + $0x4] sm:$0xf]
        %v1635 = vld [vmem:[#allocation6 + $0x8] sm:$0xf]
        %v1636 = vld [vmem:[#allocation6 + $0xc] sm:$0xf]
        %s1637 = scalar_lea.vmem [#allocation6], 16
        %v1638 = vld [vmem:[%s1637] sm:$0xf]
        %v1639 = vld [vmem:[%s1637 + $0x4] sm:$0xf]
        %v1640 = vld [vmem:[%s1637 + $0x8] sm:$0xf]
        %v1641 = vld [vmem:[%s1637 + $0xc] sm:$0xf]
        %v1646 = vunpack.c.l.b16 %v1638
        %v1647 = vunpack.c.l.b16 %v1639
        %v1648 = vunpack.c.l.b16 %v1640
        %v1649 = vunpack.c.l.b16 %v1641
        %v1650 = vpack.c.b16 %v1647, %v1646
        %v1651 = vpack.c.b16 %v1649, %v1648
        %v1660 = vunpack.c.l.b16 %v1617
        %v1661 = vunpack.c.h.b16 %v1617
        %v1662 = vunpack.c.l.b16 %v1618
        %v1663 = vunpack.c.l.b16 %v1619
        %v1664 = vunpack.c.h.b16 %v1619
        %v1665 = vunpack.c.l.b16 %v1620
        %v1666 = vunpack.c.l.b16 %v1621
        %v1667 = vunpack.c.h.b16 %v1621
        %v1668 = vunpack.c.l.b16 %v1622
        %v1669 = vunpack.c.l.b16 %v1623
        %v1670 = vunpack.c.h.b16 %v1623
        %v1671 = vunpack.c.l.b16 %v1624
        %v1672 = vpack.c.b16 %v1663, %v1660
        %v1673 = vpack.c.b16 %v1664, %v1661
        %v1674 = vpack.c.b16 %v1665, %v1662
        %v1675 = vpack.c.b16 %v1669, %v1666
        %v1676 = vpack.c.b16 %v1670, %v1667
        %v1677 = vpack.c.b16 %v1671, %v1668
        %1678 = vrot.lane.b32.xlu0 %v1672, 16
        %v1679 = vpop.permute.xlu0 %1678
        %1680 = vrot.lane.b32.xlu0 %v1673, 16
        %v1681 = vpop.permute.xlu0 %1680
        %1682 = vrot.lane.b32.xlu0 %v1674, 16
        %v1683 = vpop.permute.xlu0 %1682
        %1684 = vrot.lane.b32.xlu0 %v1675, 16
        %v1685 = vpop.permute.xlu0 %1684
        %1686 = vrot.lane.b32.xlu0 %v1676, 16
        %v1687 = vpop.permute.xlu0 %1686
        %1688 = vrot.lane.b32.xlu0 %v1677, 16
        %v1689 = vpop.permute.xlu0 %1688
        %v1690 = vsel %vm500, %v1679, %v1681
        %v1691 = vsel %vm500, %v1681, %v1683
        %v1692 = vsel %vm500, %v1685, %v1687
        %v1693 = vsel %vm500, %v1687, %v1689
        %v1699 = vsel %vm509, %v1650, 0
        %v1702 = vsel %vm509, %v1651, 0
        %1704 = vmatpush.bf16.msra.mxu0 0
        %1705 = vmatpush.bf16.msra.mxu0 0
        %1706 = vmatpush.bf16.msra.mxu0 0
        %1707 = vmatpush.bf16.msra.mxu0 0
        %1708 = vmatpush.bf16.msra.mxu0 0
        %1709 = vmatpush.bf16.msra.mxu0 0
        %1710 = vmatpush.bf16.msra.mxu0 %v1692
        %1711 = vmatpush.bf16.msra.mxu0 %v1690
        %1712 = vmatmul.bf16.gmra.mxu0 %v1699
        %v1713 = vpop.f32.mrf.mxu0
        %v1714 = vadd.f32 0.0, %v1713
        %v1715 = vpop.f32.mrf.mxu0
        %v1716 = vadd.f32 0.0, %v1715
        %1717 = vmatmul.bf16.gmra.mxu0 %v1702
        %v1718 = vpop.f32.mrf.mxu0
        %v1719 = vadd.f32 0.0, %v1718
        %v1720 = vpop.f32.mrf.mxu0
        %v1721 = vadd.f32 0.0, %v1720
        %1722 = vdwg.mxu0
        %1723 = vmatpush.bf16.msra.mxu0 0
        %1724 = vmatpush.bf16.msra.mxu0 0
        %1725 = vmatpush.bf16.msra.mxu0 0
        %1726 = vmatpush.bf16.msra.mxu0 0
        %1727 = vmatpush.bf16.msra.mxu0 0
        %1728 = vmatpush.bf16.msra.mxu0 0
        %1729 = vmatpush.bf16.msra.mxu0 %v1693
        %1730 = vmatpush.bf16.msra.mxu0 %v1691
        %1731 = vmatmul.bf16.gmra.mxu0 %v1699
        %v1732 = vpop.f32.mrf.mxu0
        %v1733 = vadd.f32 0.0, %v1732
        %v1734 = vpop.f32.mrf.mxu0
        %v1735 = vadd.f32 0.0, %v1734
        %1736 = vmatmul.bf16.gmra.mxu0 %v1702
        %v1737 = vpop.f32.mrf.mxu0
        %v1738 = vadd.f32 0.0, %v1737
        %v1739 = vpop.f32.mrf.mxu0
        %v1740 = vadd.f32 0.0, %v1739
        %1741 = vdwg.mxu0
        %v1746 = vunpack.c.l.b16 %v1633
        %v1747 = vunpack.c.l.b16 %v1634
        %v1748 = vunpack.c.l.b16 %v1635
        %v1749 = vunpack.c.l.b16 %v1636
        %v1750 = vpack.c.b16 %v1747, %v1746
        %v1751 = vpack.c.b16 %v1749, %v1748
        %v1760 = vunpack.c.l.b16 %v1625
        %v1761 = vunpack.c.h.b16 %v1625
        %v1762 = vunpack.c.l.b16 %v1626
        %v1763 = vunpack.c.l.b16 %v1627
        %v1764 = vunpack.c.h.b16 %v1627
        %v1765 = vunpack.c.l.b16 %v1628
        %v1766 = vunpack.c.l.b16 %v1629
        %v1767 = vunpack.c.h.b16 %v1629
        %v1768 = vunpack.c.l.b16 %v1630
        %v1769 = vunpack.c.l.b16 %v1631
        %v1770 = vunpack.c.h.b16 %v1631
        %v1771 = vunpack.c.l.b16 %v1632
        %v1772 = vpack.c.b16 %v1763, %v1760
        %v1773 = vpack.c.b16 %v1764, %v1761
        %v1774 = vpack.c.b16 %v1765, %v1762
        %v1775 = vpack.c.b16 %v1769, %v1766
        %v1776 = vpack.c.b16 %v1770, %v1767
        %v1777 = vpack.c.b16 %v1771, %v1768
        %1778 = vrot.lane.b32.xlu0 %v1772, 17
        %v1779 = vpop.permute.xlu0 %1778
        %1780 = vrot.lane.b32.xlu0 %v1773, 17
        %v1781 = vpop.permute.xlu0 %1780
        %1782 = vrot.lane.b32.xlu0 %v1774, 17
        %v1783 = vpop.permute.xlu0 %1782
        %1784 = vrot.lane.b32.xlu0 %v1775, 17
        %v1785 = vpop.permute.xlu0 %1784
        %1786 = vrot.lane.b32.xlu0 %v1776, 17
        %v1787 = vpop.permute.xlu0 %1786
        %1788 = vrot.lane.b32.xlu0 %v1777, 17
        %v1789 = vpop.permute.xlu0 %1788
        %v1790 = vsel %vm602, %v1779, %v1781
        %v1791 = vsel %vm602, %v1781, %v1783
        %v1792 = vsel %vm602, %v1785, %v1787
        %v1793 = vsel %vm602, %v1787, %v1789
        %v1799 = vsel %vm509, %v1750, 0
        %v1802 = vsel %vm509, %v1751, 0
        %1804 = vmatpush.bf16.msra.mxu0 0
        %1805 = vmatpush.bf16.msra.mxu0 0
        %1806 = vmatpush.bf16.msra.mxu0 0
        %1807 = vmatpush.bf16.msra.mxu0 0
        %1808 = vmatpush.bf16.msra.mxu0 0
        %1809 = vmatpush.bf16.msra.mxu0 0
        %1810 = vmatpush.bf16.msra.mxu0 %v1792
        %1811 = vmatpush.bf16.msra.mxu0 %v1790
        %1812 = vmatmul.bf16.gmra.mxu0 %v1799
        %v1813 = vpop.f32.mrf.mxu0
        %v1814 = vadd.f32 %v1714, %v1813
        %v1815 = vpop.f32.mrf.mxu0
        %v1816 = vadd.f32 %v1716, %v1815
        %1817 = vmatmul.bf16.gmra.mxu0 %v1802
        %v1818 = vpop.f32.mrf.mxu0
        %v1819 = vadd.f32 %v1719, %v1818
        %v1820 = vpop.f32.mrf.mxu0
        %v1821 = vadd.f32 %v1721, %v1820
        %1822 = vdwg.mxu0
        %1823 = vmatpush.bf16.msra.mxu0 0
        %1824 = vmatpush.bf16.msra.mxu0 0
        %1825 = vmatpush.bf16.msra.mxu0 0
        %1826 = vmatpush.bf16.msra.mxu0 0
        %1827 = vmatpush.bf16.msra.mxu0 0
        %1828 = vmatpush.bf16.msra.mxu0 0
        %1829 = vmatpush.bf16.msra.mxu0 %v1793
        %1830 = vmatpush.bf16.msra.mxu0 %v1791
        %1831 = vmatmul.bf16.gmra.mxu0 %v1799
        %v1832 = vpop.f32.mrf.mxu0
        %v1833 = vadd.f32 %v1733, %v1832
        %v1834 = vpop.f32.mrf.mxu0
        %v1835 = vadd.f32 %v1735, %v1834
        %1836 = vmatmul.bf16.gmra.mxu0 %v1802
        %v1837 = vpop.f32.mrf.mxu0
        %v1838 = vadd.f32 %v1738, %v1837
        %v1839 = vpop.f32.mrf.mxu0
        %v1840 = vadd.f32 %v1740, %v1839
        %1841 = vdwg.mxu0
        %v1842 = vsel %vm668, %v1617, 0
        %v1843 = vsel %vm675, %v1618, 0
        %v1844 = vsel %vm668, %v1619, 0
        %v1845 = vsel %vm675, %v1620, 0
        %v1846 = vsel %vm668, %v1621, 0
        %v1847 = vsel %vm675, %v1622, 0
        %v1848 = vsel %vm668, %v1623, 0
        %v1849 = vsel %vm675, %v1624, 0
        %s1850 = scalar_lea.vmem [#allocation6], 32
        %v1851 = vld [vmem:[%s1850] sm:$0xf]
        %v1852 = vld [vmem:[%s1850 + $0x4] sm:$0xf]
        %v1853 = vld [vmem:[%s1850 + $0x8] sm:$0xf]
        %v1854 = vld [vmem:[%s1850 + $0xc] sm:$0xf]
        %v1859 = vunpack.c.l.b16 %v1851
        %v1860 = vunpack.c.l.b16 %v1852
        %v1861 = vunpack.c.l.b16 %v1853
        %v1862 = vunpack.c.l.b16 %v1854
        %v1863 = vpack.c.b16 %v1860, %v1859
        %v1864 = vpack.c.b16 %v1862, %v1861
        %v1873 = vunpack.c.l.b16 %v1842
        %v1874 = vunpack.c.h.b16 %v1842
        %v1875 = vunpack.c.l.b16 %v1843
        %v1876 = vunpack.c.l.b16 %v1844
        %v1877 = vunpack.c.h.b16 %v1844
        %v1878 = vunpack.c.l.b16 %v1845
        %v1879 = vunpack.c.l.b16 %v1846
        %v1880 = vunpack.c.h.b16 %v1846
        %v1881 = vunpack.c.l.b16 %v1847
        %v1882 = vunpack.c.l.b16 %v1848
        %v1883 = vunpack.c.h.b16 %v1848
        %v1884 = vunpack.c.l.b16 %v1849
        %v1885 = vpack.c.b16 %v1876, %v1873
        %v1886 = vpack.c.b16 %v1877, %v1874
        %v1887 = vpack.c.b16 %v1878, %v1875
        %v1888 = vpack.c.b16 %v1882, %v1879
        %v1889 = vpack.c.b16 %v1883, %v1880
        %v1890 = vpack.c.b16 %v1884, %v1881
        %1891 = vrot.lane.b32.xlu0 %v1885, 15
        %v1892 = vpop.permute.xlu0 %1891
        %1893 = vrot.lane.b32.xlu0 %v1886, 15
        %v1894 = vpop.permute.xlu0 %1893
        %1895 = vrot.lane.b32.xlu0 %v1887, 15
        %v1896 = vpop.permute.xlu0 %1895
        %1897 = vrot.lane.b32.xlu0 %v1888, 15
        %v1898 = vpop.permute.xlu0 %1897
        %1899 = vrot.lane.b32.xlu0 %v1889, 15
        %v1900 = vpop.permute.xlu0 %1899
        %1901 = vrot.lane.b32.xlu0 %v1890, 15
        %v1902 = vpop.permute.xlu0 %1901
        %v1903 = vsel %vm737, %v1892, %v1894
        %v1904 = vsel %vm737, %v1894, %v1896
        %v1905 = vsel %vm737, %v1898, %v1900
        %v1906 = vsel %vm737, %v1900, %v1902
        %v1912 = vsel %vm509, %v1863, 0
        %v1915 = vsel %vm509, %v1864, 0
        %1917 = vmatpush.bf16.msra.mxu0 0
        %1918 = vmatpush.bf16.msra.mxu0 0
        %1919 = vmatpush.bf16.msra.mxu0 0
        %1920 = vmatpush.bf16.msra.mxu0 0
        %1921 = vmatpush.bf16.msra.mxu0 0
        %1922 = vmatpush.bf16.msra.mxu0 0
        %1923 = vmatpush.bf16.msra.mxu0 %v1905
        %1924 = vmatpush.bf16.msra.mxu0 %v1903
        %1925 = vmatmul.bf16.gmra.mxu0 %v1912
        %v1926 = vpop.f32.mrf.mxu0
        %v1927 = vadd.f32 0.0, %v1926
        %v1928 = vpop.f32.mrf.mxu0
        %v1929 = vadd.f32 0.0, %v1928
        %1930 = vmatmul.bf16.gmra.mxu0 %v1915
        %v1931 = vpop.f32.mrf.mxu0
        %v1932 = vadd.f32 0.0, %v1931
        %v1933 = vpop.f32.mrf.mxu0
        %v1934 = vadd.f32 0.0, %v1933
        %1935 = vdwg.mxu0
        %1936 = vmatpush.bf16.msra.mxu0 0
        %1937 = vmatpush.bf16.msra.mxu0 0
        %1938 = vmatpush.bf16.msra.mxu0 0
        %1939 = vmatpush.bf16.msra.mxu0 0
        %1940 = vmatpush.bf16.msra.mxu0 0
        %1941 = vmatpush.bf16.msra.mxu0 0
        %1942 = vmatpush.bf16.msra.mxu0 %v1906
        %1943 = vmatpush.bf16.msra.mxu0 %v1904
        %1944 = vmatmul.bf16.gmra.mxu0 %v1912
        %v1945 = vpop.f32.mrf.mxu0
        %v1946 = vadd.f32 0.0, %v1945
        %v1947 = vpop.f32.mrf.mxu0
        %v1948 = vadd.f32 0.0, %v1947
        %1949 = vmatmul.bf16.gmra.mxu0 %v1915
        %v1950 = vpop.f32.mrf.mxu0
        %v1951 = vadd.f32 0.0, %v1950
        %v1952 = vpop.f32.mrf.mxu0
        %v1953 = vadd.f32 0.0, %v1952
        %1954 = vdwg.mxu0
        %v1955 = vadd.f32 %v1814, %v1927
        %v1956 = vadd.f32 %v1833, %v1946
        %v1957 = vadd.f32 %v1816, %v1929
        %v1958 = vadd.f32 %v1835, %v1948
        %v1959 = vadd.f32 %v1819, %v1932
        %v1960 = vadd.f32 %v1838, %v1951
        %v1961 = vadd.f32 %v1821, %v1934
        %v1962 = vadd.f32 %v1840, %v1953
        %v1963 = vsel %vm809, %v1617, 0
        %v1964 = vsel %vm816, %v1618, 0
        %v1965 = vsel %vm809, %v1619, 0
        %v1966 = vsel %vm816, %v1620, 0
        %v1967 = vsel %vm809, %v1621, 0
        %v1968 = vsel %vm816, %v1622, 0
        %v1969 = vsel %vm809, %v1623, 0
        %v1970 = vsel %vm816, %v1624, 0
        %s1971 = scalar_lea.vmem [#allocation6], 48
        %v1972 = vld [vmem:[%s1971] sm:$0xf]
        %v1973 = vld [vmem:[%s1971 + $0x4] sm:$0xf]
        %v1974 = vld [vmem:[%s1971 + $0x8] sm:$0xf]
        %v1975 = vld [vmem:[%s1971 + $0xc] sm:$0xf]
        %v1980 = vunpack.c.l.b16 %v1972
        %v1981 = vunpack.c.l.b16 %v1973
        %v1982 = vunpack.c.l.b16 %v1974
        %v1983 = vunpack.c.l.b16 %v1975
        %v1984 = vpack.c.b16 %v1981, %v1980
        %v1985 = vpack.c.b16 %v1983, %v1982
        %v1994 = vunpack.c.l.b16 %v1963
        %v1995 = vunpack.c.h.b16 %v1963
        %v1996 = vunpack.c.l.b16 %v1964
        %v1997 = vunpack.c.l.b16 %v1965
        %v1998 = vunpack.c.h.b16 %v1965
        %v1999 = vunpack.c.l.b16 %v1966
        %v2000 = vunpack.c.l.b16 %v1967
        %v2001 = vunpack.c.h.b16 %v1967
        %v2002 = vunpack.c.l.b16 %v1968
        %v2003 = vunpack.c.l.b16 %v1969
        %v2004 = vunpack.c.h.b16 %v1969
        %v2005 = vunpack.c.l.b16 %v1970
        %v2006 = vpack.c.b16 %v1997, %v1994
        %v2007 = vpack.c.b16 %v1998, %v1995
        %v2008 = vpack.c.b16 %v1999, %v1996
        %v2009 = vpack.c.b16 %v2003, %v2000
        %v2010 = vpack.c.b16 %v2004, %v2001
        %v2011 = vpack.c.b16 %v2005, %v2002
        %2012 = vrot.lane.b32.xlu0 %v2006, 1
        %v2013 = vpop.permute.xlu0 %2012
        %2014 = vrot.lane.b32.xlu0 %v2007, 1
        %v2015 = vpop.permute.xlu0 %2014
        %2016 = vrot.lane.b32.xlu0 %v2008, 1
        %v2017 = vpop.permute.xlu0 %2016
        %2018 = vrot.lane.b32.xlu0 %v2009, 1
        %v2019 = vpop.permute.xlu0 %2018
        %2020 = vrot.lane.b32.xlu0 %v2010, 1
        %v2021 = vpop.permute.xlu0 %2020
        %2022 = vrot.lane.b32.xlu0 %v2011, 1
        %v2023 = vpop.permute.xlu0 %2022
        %v2024 = vsel %vm878, %v2013, %v2015
        %v2025 = vsel %vm878, %v2015, %v2017
        %v2026 = vsel %vm878, %v2019, %v2021
        %v2027 = vsel %vm878, %v2021, %v2023
        %v2033 = vsel %vm509, %v1984, 0
        %v2036 = vsel %vm509, %v1985, 0
        %2038 = vmatpush.bf16.msra.mxu0 0
        %2039 = vmatpush.bf16.msra.mxu0 0
        %2040 = vmatpush.bf16.msra.mxu0 0
        %2041 = vmatpush.bf16.msra.mxu0 0
        %2042 = vmatpush.bf16.msra.mxu0 0
        %2043 = vmatpush.bf16.msra.mxu0 0
        %2044 = vmatpush.bf16.msra.mxu0 %v2026
        %2045 = vmatpush.bf16.msra.mxu0 %v2024
        %2046 = vmatmul.bf16.gmra.mxu0 %v2033
        %v2047 = vpop.f32.mrf.mxu0
        %v2048 = vadd.f32 0.0, %v2047
        %v2049 = vpop.f32.mrf.mxu0
        %v2050 = vadd.f32 0.0, %v2049
        %2051 = vmatmul.bf16.gmra.mxu0 %v2036
        %v2052 = vpop.f32.mrf.mxu0
        %v2053 = vadd.f32 0.0, %v2052
        %v2054 = vpop.f32.mrf.mxu0
        %v2055 = vadd.f32 0.0, %v2054
        %2056 = vdwg.mxu0
        %2057 = vmatpush.bf16.msra.mxu0 0
        %2058 = vmatpush.bf16.msra.mxu0 0
        %2059 = vmatpush.bf16.msra.mxu0 0
        %2060 = vmatpush.bf16.msra.mxu0 0
        %2061 = vmatpush.bf16.msra.mxu0 0
        %2062 = vmatpush.bf16.msra.mxu0 0
        %2063 = vmatpush.bf16.msra.mxu0 %v2027
        %2064 = vmatpush.bf16.msra.mxu0 %v2025
        %2065 = vmatmul.bf16.gmra.mxu0 %v2033
        %v2066 = vpop.f32.mrf.mxu0
        %v2067 = vadd.f32 0.0, %v2066
        %v2068 = vpop.f32.mrf.mxu0
        %v2069 = vadd.f32 0.0, %v2068
        %2070 = vmatmul.bf16.gmra.mxu0 %v2036
        %v2071 = vpop.f32.mrf.mxu0
        %v2072 = vadd.f32 0.0, %v2071
        %v2073 = vpop.f32.mrf.mxu0
        %v2074 = vadd.f32 0.0, %v2073
        %2075 = vdwg.mxu0
        %v2076 = vadd.f32 %v1955, %v2048
        %v2077 = vadd.f32 %v1956, %v2067
        %v2078 = vadd.f32 %v1957, %v2050
        %v2079 = vadd.f32 %v1958, %v2069
        %v2080 = vadd.f32 %v1959, %v2053
        %v2081 = vadd.f32 %v1960, %v2072
        %v2082 = vadd.f32 %v1961, %v2055
        %v2083 = vadd.f32 %v1962, %v2074
        %v2084 = vld [vmem:[#allocation2 + $0x4] sm:$0xff]
        %v2085 = vld [vmem:[#allocation2 + $0x14] sm:$0xff]
        %v2086 = vld [vmem:[#allocation2 + $0x24] sm:$0xff]
        %v2087 = vld [vmem:[#allocation2 + $0x34] sm:$0xff]
        %s2088 = scalar_lea.vmem [#allocation6], 64
        %v2089 = vld [vmem:[%s2088] sm:$0xf]
        %v2090 = vld [vmem:[%s2088 + $0x4] sm:$0xf]
        %v2091 = vld [vmem:[%s2088 + $0x8] sm:$0xf]
        %v2092 = vld [vmem:[%s2088 + $0xc] sm:$0xf]
        %v2097 = vunpack.c.l.b16 %v2089
        %v2098 = vunpack.c.l.b16 %v2090
        %v2099 = vunpack.c.l.b16 %v2091
        %v2100 = vunpack.c.l.b16 %v2092
        %v2101 = vpack.c.b16 %v2098, %v2097
        %v2102 = vpack.c.b16 %v2100, %v2099
        %v2107 = vunpack.c.l.b16 %v2084
        %v2108 = vunpack.c.h.b16 %v2084
        %v2109 = vunpack.c.l.b16 %v2085
        %v2110 = vunpack.c.h.b16 %v2085
        %v2111 = vunpack.c.l.b16 %v2086
        %v2112 = vunpack.c.h.b16 %v2086
        %v2113 = vunpack.c.l.b16 %v2087
        %v2114 = vunpack.c.h.b16 %v2087
        %v2115 = vpack.c.b16 %v2109, %v2107
        %v2116 = vpack.c.b16 %v2110, %v2108
        %v2117 = vpack.c.b16 %v2113, %v2111
        %v2118 = vpack.c.b16 %v2114, %v2112
        %v2124 = vsel %vm509, %v2101, 0
        %v2127 = vsel %vm509, %v2102, 0
        %2129 = vmatpush.bf16.msra.mxu0 0
        %2130 = vmatpush.bf16.msra.mxu0 0
        %2131 = vmatpush.bf16.msra.mxu0 0
        %2132 = vmatpush.bf16.msra.mxu0 0
        %2133 = vmatpush.bf16.msra.mxu0 0
        %2134 = vmatpush.bf16.msra.mxu0 0
        %2135 = vmatpush.bf16.msra.mxu0 %v2117
        %2136 = vmatpush.bf16.msra.mxu0 %v2115
        %2137 = vmatmul.bf16.gmra.mxu0 %v2124
        %v2138 = vpop.f32.mrf.mxu0
        %v2139 = vadd.f32 0.0, %v2138
        %v2140 = vpop.f32.mrf.mxu0
        %v2141 = vadd.f32 0.0, %v2140
        %2142 = vmatmul.bf16.gmra.mxu0 %v2127
        %v2143 = vpop.f32.mrf.mxu0
        %v2144 = vadd.f32 0.0, %v2143
        %v2145 = vpop.f32.mrf.mxu0
        %v2146 = vadd.f32 0.0, %v2145
        %2147 = vdwg.mxu0
        %2148 = vmatpush.bf16.msra.mxu0 0
        %2149 = vmatpush.bf16.msra.mxu0 0
        %2150 = vmatpush.bf16.msra.mxu0 0
        %2151 = vmatpush.bf16.msra.mxu0 0
        %2152 = vmatpush.bf16.msra.mxu0 0
        %2153 = vmatpush.bf16.msra.mxu0 0
        %2154 = vmatpush.bf16.msra.mxu0 %v2118
        %2155 = vmatpush.bf16.msra.mxu0 %v2116
        %2156 = vmatmul.bf16.gmra.mxu0 %v2124
        %v2157 = vpop.f32.mrf.mxu0
        %v2158 = vadd.f32 0.0, %v2157
        %v2159 = vpop.f32.mrf.mxu0
        %v2160 = vadd.f32 0.0, %v2159
        %2161 = vmatmul.bf16.gmra.mxu0 %v2127
        %v2162 = vpop.f32.mrf.mxu0
        %v2163 = vadd.f32 0.0, %v2162
        %v2164 = vpop.f32.mrf.mxu0
        %v2165 = vadd.f32 0.0, %v2164
        %2166 = vdwg.mxu0
        %v2167 = vadd.f32 %v2076, %v2139
        %v2168 = vadd.f32 %v2077, %v2158
        %v2169 = vadd.f32 %v2078, %v2141
        %v2170 = vadd.f32 %v2079, %v2160
        %v2171 = vadd.f32 %v2080, %v2144
        %v2172 = vadd.f32 %v2081, %v2163
        %v2173 = vadd.f32 %v2082, %v2146
        %v2174 = vadd.f32 %v2083, %v2165
        %v2175 = vld [vmem:[#allocation2 + $0x4] sm:$0xff]
        %v2176 = vld [vmem:[#allocation2 + $0xc] sm:$0xf]
        %v2177 = vld [vmem:[#allocation2 + $0x14] sm:$0xff]
        %v2178 = vld [vmem:[#allocation2 + $0x1c] sm:$0xf]
        %v2179 = vld [vmem:[#allocation2 + $0x24] sm:$0xff]
        %v2180 = vld [vmem:[#allocation2 + $0x2c] sm:$0xf]
        %v2181 = vld [vmem:[#allocation2 + $0x34] sm:$0xff]
        %v2182 = vld [vmem:[#allocation2 + $0x3c] sm:$0xf]
        %v2183 = vsel %vm1048, %v2175, 0
        %v2184 = vsel %vm1055, %v2176, 0
        %v2185 = vsel %vm1048, %v2177, 0
        %v2186 = vsel %vm1055, %v2178, 0
        %v2187 = vsel %vm1048, %v2179, 0
        %v2188 = vsel %vm1055, %v2180, 0
        %v2189 = vsel %vm1048, %v2181, 0
        %v2190 = vsel %vm1055, %v2182, 0
        %s2191 = scalar_lea.vmem [#allocation6], 80
        %v2192 = vld [vmem:[%s2191] sm:$0xf]
        %v2193 = vld [vmem:[%s2191 + $0x4] sm:$0xf]
        %v2194 = vld [vmem:[%s2191 + $0x8] sm:$0xf]
        %v2195 = vld [vmem:[%s2191 + $0xc] sm:$0xf]
        %v2200 = vunpack.c.l.b16 %v2192
        %v2201 = vunpack.c.l.b16 %v2193
        %v2202 = vunpack.c.l.b16 %v2194
        %v2203 = vunpack.c.l.b16 %v2195
        %v2204 = vpack.c.b16 %v2201, %v2200
        %v2205 = vpack.c.b16 %v2203, %v2202
        %v2214 = vunpack.c.l.b16 %v2183
        %v2215 = vunpack.c.h.b16 %v2183
        %v2216 = vunpack.c.l.b16 %v2184
        %v2217 = vunpack.c.l.b16 %v2185
        %v2218 = vunpack.c.h.b16 %v2185
        %v2219 = vunpack.c.l.b16 %v2186
        %v2220 = vunpack.c.l.b16 %v2187
        %v2221 = vunpack.c.h.b16 %v2187
        %v2222 = vunpack.c.l.b16 %v2188
        %v2223 = vunpack.c.l.b16 %v2189
        %v2224 = vunpack.c.h.b16 %v2189
        %v2225 = vunpack.c.l.b16 %v2190
        %v2226 = vpack.c.b16 %v2217, %v2214
        %v2227 = vpack.c.b16 %v2218, %v2215
        %v2228 = vpack.c.b16 %v2219, %v2216
        %v2229 = vpack.c.b16 %v2223, %v2220
        %v2230 = vpack.c.b16 %v2224, %v2221
        %v2231 = vpack.c.b16 %v2225, %v2222
        %2232 = vrot.lane.b32.xlu0 %v2226, 127
        %v2233 = vpop.permute.xlu0 %2232
        %2234 = vrot.lane.b32.xlu0 %v2227, 127
        %v2235 = vpop.permute.xlu0 %2234
        %2236 = vrot.lane.b32.xlu0 %v2228, 127
        %v2237 = vpop.permute.xlu0 %2236
        %2238 = vrot.lane.b32.xlu0 %v2229, 127
        %v2239 = vpop.permute.xlu0 %2238
        %2240 = vrot.lane.b32.xlu0 %v2230, 127
        %v2241 = vpop.permute.xlu0 %2240
        %2242 = vrot.lane.b32.xlu0 %v2231, 127
        %v2243 = vpop.permute.xlu0 %2242
        %v2244 = vsel %vm801, %v2233, %v2235
        %v2245 = vsel %vm801, %v2235, %v2237
        %v2246 = vsel %vm801, %v2239, %v2241
        %v2247 = vsel %vm801, %v2241, %v2243
        %v2253 = vsel %vm509, %v2204, 0
        %v2256 = vsel %vm509, %v2205, 0
        %2258 = vmatpush.bf16.msra.mxu0 0
        %2259 = vmatpush.bf16.msra.mxu0 0
        %2260 = vmatpush.bf16.msra.mxu0 0
        %2261 = vmatpush.bf16.msra.mxu0 0
        %2262 = vmatpush.bf16.msra.mxu0 0
        %2263 = vmatpush.bf16.msra.mxu0 0
        %2264 = vmatpush.bf16.msra.mxu0 %v2246
        %2265 = vmatpush.bf16.msra.mxu0 %v2244
        %2266 = vmatmul.bf16.gmra.mxu0 %v2253
        %v2267 = vpop.f32.mrf.mxu0
        %v2268 = vadd.f32 0.0, %v2267
        %v2269 = vpop.f32.mrf.mxu0
        %v2270 = vadd.f32 0.0, %v2269
        %2271 = vmatmul.bf16.gmra.mxu0 %v2256
        %v2272 = vpop.f32.mrf.mxu0
        %v2273 = vadd.f32 0.0, %v2272
        %v2274 = vpop.f32.mrf.mxu0
        %v2275 = vadd.f32 0.0, %v2274
        %2276 = vdwg.mxu0
        %2277 = vmatpush.bf16.msra.mxu0 0
        %2278 = vmatpush.bf16.msra.mxu0 0
        %2279 = vmatpush.bf16.msra.mxu0 0
        %2280 = vmatpush.bf16.msra.mxu0 0
        %2281 = vmatpush.bf16.msra.mxu0 0
        %2282 = vmatpush.bf16.msra.mxu0 0
        %2283 = vmatpush.bf16.msra.mxu0 %v2247
        %2284 = vmatpush.bf16.msra.mxu0 %v2245
        %2285 = vmatmul.bf16.gmra.mxu0 %v2253
        %v2286 = vpop.f32.mrf.mxu0
        %v2287 = vadd.f32 0.0, %v2286
        %v2288 = vpop.f32.mrf.mxu0
        %v2289 = vadd.f32 0.0, %v2288
        %2290 = vmatmul.bf16.gmra.mxu0 %v2256
        %v2291 = vpop.f32.mrf.mxu0
        %v2292 = vadd.f32 0.0, %v2291
        %v2293 = vpop.f32.mrf.mxu0
        %v2294 = vadd.f32 0.0, %v2293
        %2295 = vdwg.mxu0
        %v2296 = vadd.f32 %v2167, %v2268
        %v2297 = vadd.f32 %v2168, %v2287
        %v2298 = vadd.f32 %v2169, %v2270
        %v2299 = vadd.f32 %v2170, %v2289
        %v2300 = vadd.f32 %v2171, %v2273
        %v2301 = vadd.f32 %v2172, %v2292
        %v2302 = vadd.f32 %v2173, %v2275
        %v2303 = vadd.f32 %v2174, %v2294
        %v2304 = vsel %vm1187, %v2175, 0
        %v2305 = vsel %vm1194, %v2176, 0
        %v2306 = vsel %vm1187, %v2177, 0
        %v2307 = vsel %vm1194, %v2178, 0
        %v2308 = vsel %vm1187, %v2179, 0
        %v2309 = vsel %vm1194, %v2180, 0
        %v2310 = vsel %vm1187, %v2181, 0
        %v2311 = vsel %vm1194, %v2182, 0
        %s2312 = scalar_lea.vmem [#allocation6], 96
        %v2313 = vld [vmem:[%s2312] sm:$0xf]
        %v2314 = vld [vmem:[%s2312 + $0x4] sm:$0xf]
        %v2315 = vld [vmem:[%s2312 + $0x8] sm:$0xf]
        %v2316 = vld [vmem:[%s2312 + $0xc] sm:$0xf]
        %v2321 = vunpack.c.l.b16 %v2313
        %v2322 = vunpack.c.l.b16 %v2314
        %v2323 = vunpack.c.l.b16 %v2315
        %v2324 = vunpack.c.l.b16 %v2316
        %v2325 = vpack.c.b16 %v2322, %v2321
        %v2326 = vpack.c.b16 %v2324, %v2323
        %v2335 = vunpack.c.l.b16 %v2304
        %v2336 = vunpack.c.h.b16 %v2304
        %v2337 = vunpack.c.l.b16 %v2305
        %v2338 = vunpack.c.l.b16 %v2306
        %v2339 = vunpack.c.h.b16 %v2306
        %v2340 = vunpack.c.l.b16 %v2307
        %v2341 = vunpack.c.l.b16 %v2308
        %v2342 = vunpack.c.h.b16 %v2308
        %v2343 = vunpack.c.l.b16 %v2309
        %v2344 = vunpack.c.l.b16 %v2310
        %v2345 = vunpack.c.h.b16 %v2310
        %v2346 = vunpack.c.l.b16 %v2311
        %v2347 = vpack.c.b16 %v2338, %v2335
        %v2348 = vpack.c.b16 %v2339, %v2336
        %v2349 = vpack.c.b16 %v2340, %v2337
        %v2350 = vpack.c.b16 %v2344, %v2341
        %v2351 = vpack.c.b16 %v2345, %v2342
        %v2352 = vpack.c.b16 %v2346, %v2343
        %2353 = vrot.lane.b32.xlu0 %v2347, 113
        %v2354 = vpop.permute.xlu0 %2353
        %2355 = vrot.lane.b32.xlu0 %v2348, 113
        %v2356 = vpop.permute.xlu0 %2355
        %2357 = vrot.lane.b32.xlu0 %v2349, 113
        %v2358 = vpop.permute.xlu0 %2357
        %2359 = vrot.lane.b32.xlu0 %v2350, 113
        %v2360 = vpop.permute.xlu0 %2359
        %2361 = vrot.lane.b32.xlu0 %v2351, 113
        %v2362 = vpop.permute.xlu0 %2361
        %2363 = vrot.lane.b32.xlu0 %v2352, 113
        %v2364 = vpop.permute.xlu0 %2363
        %v2365 = vsel %vm660, %v2354, %v2356
        %v2366 = vsel %vm660, %v2356, %v2358
        %v2367 = vsel %vm660, %v2360, %v2362
        %v2368 = vsel %vm660, %v2362, %v2364
        %v2374 = vsel %vm509, %v2325, 0
        %v2377 = vsel %vm509, %v2326, 0
        %2379 = vmatpush.bf16.msra.mxu0 0
        %2380 = vmatpush.bf16.msra.mxu0 0
        %2381 = vmatpush.bf16.msra.mxu0 0
        %2382 = vmatpush.bf16.msra.mxu0 0
        %2383 = vmatpush.bf16.msra.mxu0 0
        %2384 = vmatpush.bf16.msra.mxu0 0
        %2385 = vmatpush.bf16.msra.mxu0 %v2367
        %2386 = vmatpush.bf16.msra.mxu0 %v2365
        %2387 = vmatmul.bf16.gmra.mxu0 %v2374
        %v2388 = vpop.f32.mrf.mxu0
        %v2389 = vadd.f32 0.0, %v2388
        %v2390 = vpop.f32.mrf.mxu0
        %v2391 = vadd.f32 0.0, %v2390
        %2392 = vmatmul.bf16.gmra.mxu0 %v2377
        %v2393 = vpop.f32.mrf.mxu0
        %v2394 = vadd.f32 0.0, %v2393
        %v2395 = vpop.f32.mrf.mxu0
        %v2396 = vadd.f32 0.0, %v2395
        %2397 = vdwg.mxu0
        %2398 = vmatpush.bf16.msra.mxu0 0
        %2399 = vmatpush.bf16.msra.mxu0 0
        %2400 = vmatpush.bf16.msra.mxu0 0
        %2401 = vmatpush.bf16.msra.mxu0 0
        %2402 = vmatpush.bf16.msra.mxu0 0
        %2403 = vmatpush.bf16.msra.mxu0 0
        %2404 = vmatpush.bf16.msra.mxu0 %v2368
        %2405 = vmatpush.bf16.msra.mxu0 %v2366
        %2406 = vmatmul.bf16.gmra.mxu0 %v2374
        %v2407 = vpop.f32.mrf.mxu0
        %v2408 = vadd.f32 0.0, %v2407
        %v2409 = vpop.f32.mrf.mxu0
        %v2410 = vadd.f32 0.0, %v2409
        %2411 = vmatmul.bf16.gmra.mxu0 %v2377
        %v2412 = vpop.f32.mrf.mxu0
        %v2413 = vadd.f32 0.0, %v2412
        %v2414 = vpop.f32.mrf.mxu0
        %v2415 = vadd.f32 0.0, %v2414
        %2416 = vdwg.mxu0
        %v2417 = vadd.f32 %v2296, %v2389
        %v2418 = vadd.f32 %v2297, %v2408
        %v2419 = vadd.f32 %v2298, %v2391
        %v2420 = vadd.f32 %v2299, %v2410
        %v2421 = vadd.f32 %v2300, %v2394
        %v2422 = vadd.f32 %v2301, %v2413
        %v2423 = vadd.f32 %v2302, %v2396
        %v2424 = vadd.f32 %v2303, %v2415
        %s2425 = scalar_lea.vmem [#allocation6], 112
        %v2426 = vld [vmem:[%s2425] sm:$0xf]
        %v2427 = vld [vmem:[%s2425 + $0x4] sm:$0xf]
        %v2428 = vld [vmem:[%s2425 + $0x8] sm:$0xf]
        %v2429 = vld [vmem:[%s2425 + $0xc] sm:$0xf]
        %v2434 = vunpack.c.l.b16 %v2426
        %v2435 = vunpack.c.l.b16 %v2427
        %v2436 = vunpack.c.l.b16 %v2428
        %v2437 = vunpack.c.l.b16 %v2429
        %v2438 = vpack.c.b16 %v2435, %v2434
        %v2439 = vpack.c.b16 %v2437, %v2436
        %v2448 = vunpack.c.l.b16 %v2175
        %v2449 = vunpack.c.h.b16 %v2175
        %v2450 = vunpack.c.l.b16 %v2176
        %v2451 = vunpack.c.l.b16 %v2177
        %v2452 = vunpack.c.h.b16 %v2177
        %v2453 = vunpack.c.l.b16 %v2178
        %v2454 = vunpack.c.l.b16 %v2179
        %v2455 = vunpack.c.h.b16 %v2179
        %v2456 = vunpack.c.l.b16 %v2180
        %v2457 = vunpack.c.l.b16 %v2181
        %v2458 = vunpack.c.h.b16 %v2181
        %v2459 = vunpack.c.l.b16 %v2182
        %v2460 = vpack.c.b16 %v2451, %v2448
        %v2461 = vpack.c.b16 %v2452, %v2449
        %v2462 = vpack.c.b16 %v2453, %v2450
        %v2463 = vpack.c.b16 %v2457, %v2454
        %v2464 = vpack.c.b16 %v2458, %v2455
        %v2465 = vpack.c.b16 %v2459, %v2456
        %2466 = vrot.lane.b32.xlu0 %v2460, 112
        %v2467 = vpop.permute.xlu0 %2466
        %2468 = vrot.lane.b32.xlu0 %v2461, 112
        %v2469 = vpop.permute.xlu0 %2468
        %2470 = vrot.lane.b32.xlu0 %v2462, 112
        %v2471 = vpop.permute.xlu0 %2470
        %2472 = vrot.lane.b32.xlu0 %v2463, 112
        %v2473 = vpop.permute.xlu0 %2472
        %2474 = vrot.lane.b32.xlu0 %v2464, 112
        %v2475 = vpop.permute.xlu0 %2474
        %2476 = vrot.lane.b32.xlu0 %v2465, 112
        %v2477 = vpop.permute.xlu0 %2476
        %v2478 = vsel %vm1369, %v2467, %v2469
        %v2479 = vsel %vm1369, %v2469, %v2471
        %v2480 = vsel %vm1369, %v2473, %v2475
        %v2481 = vsel %vm1369, %v2475, %v2477
        %v2487 = vsel %vm509, %v2438, 0
        %v2490 = vsel %vm509, %v2439, 0
        %2492 = vmatpush.bf16.msra.mxu0 0
        %2493 = vmatpush.bf16.msra.mxu0 0
        %2494 = vmatpush.bf16.msra.mxu0 0
        %2495 = vmatpush.bf16.msra.mxu0 0
        %2496 = vmatpush.bf16.msra.mxu0 0
        %2497 = vmatpush.bf16.msra.mxu0 0
        %2498 = vmatpush.bf16.msra.mxu0 %v2480
        %2499 = vmatpush.bf16.msra.mxu0 %v2478
        %2500 = vmatmul.bf16.gmra.mxu0 %v2487
        %v2501 = vpop.f32.mrf.mxu0
        %v2502 = vadd.f32 0.0, %v2501
        %v2503 = vpop.f32.mrf.mxu0
        %v2504 = vadd.f32 0.0, %v2503
        %2505 = vmatmul.bf16.gmra.mxu0 %v2490
        %v2506 = vpop.f32.mrf.mxu0
        %v2507 = vadd.f32 0.0, %v2506
        %v2508 = vpop.f32.mrf.mxu0
        %v2509 = vadd.f32 0.0, %v2508
        %2510 = vdwg.mxu0
        %2511 = vmatpush.bf16.msra.mxu0 0
        %2512 = vmatpush.bf16.msra.mxu0 0
        %2513 = vmatpush.bf16.msra.mxu0 0
        %2514 = vmatpush.bf16.msra.mxu0 0
        %2515 = vmatpush.bf16.msra.mxu0 0
        %2516 = vmatpush.bf16.msra.mxu0 0
        %2517 = vmatpush.bf16.msra.mxu0 %v2481
        %2518 = vmatpush.bf16.msra.mxu0 %v2479
        %2519 = vmatmul.bf16.gmra.mxu0 %v2487
        %v2520 = vpop.f32.mrf.mxu0
        %v2521 = vadd.f32 0.0, %v2520
        %v2522 = vpop.f32.mrf.mxu0
        %v2523 = vadd.f32 0.0, %v2522
        %2524 = vmatmul.bf16.gmra.mxu0 %v2490
        %v2525 = vpop.f32.mrf.mxu0
        %v2526 = vadd.f32 0.0, %v2525
        %v2527 = vpop.f32.mrf.mxu0
        %v2528 = vadd.f32 0.0, %v2527
        %2529 = vdwg.mxu0
        %v2530 = vadd.f32 %v2417, %v2502
        %v2531 = vadd.f32 %v2418, %v2521
        %v2532 = vadd.f32 %v2419, %v2504
        %v2533 = vadd.f32 %v2420, %v2523
        %v2534 = vadd.f32 %v2421, %v2507
        %v2535 = vadd.f32 %v2422, %v2526
        %v2536 = vadd.f32 %v2423, %v2509
        %v2537 = vadd.f32 %v2424, %v2528
        %v2538 = vsel %vm1440, %v2175, 0
        %v2539 = vsel %vm1447, %v2176, 0
        %v2540 = vsel %vm1440, %v2177, 0
        %v2541 = vsel %vm1447, %v2178, 0
        %v2542 = vsel %vm1440, %v2179, 0
        %v2543 = vsel %vm1447, %v2180, 0
        %v2544 = vsel %vm1440, %v2181, 0
        %v2545 = vsel %vm1447, %v2182, 0
        %s2546 = scalar_lea.vmem [#allocation6], 128
        %v2547 = vld [vmem:[%s2546] sm:$0xf]
        %v2548 = vld [vmem:[%s2546 + $0x4] sm:$0xf]
        %v2549 = vld [vmem:[%s2546 + $0x8] sm:$0xf]
        %v2550 = vld [vmem:[%s2546 + $0xc] sm:$0xf]
        %v2555 = vunpack.c.l.b16 %v2547
        %v2556 = vunpack.c.l.b16 %v2548
        %v2557 = vunpack.c.l.b16 %v2549
        %v2558 = vunpack.c.l.b16 %v2550
        %v2559 = vpack.c.b16 %v2556, %v2555
        %v2560 = vpack.c.b16 %v2558, %v2557
        %v2569 = vunpack.c.l.b16 %v2538
        %v2570 = vunpack.c.h.b16 %v2538
        %v2571 = vunpack.c.l.b16 %v2539
        %v2572 = vunpack.c.l.b16 %v2540
        %v2573 = vunpack.c.h.b16 %v2540
        %v2574 = vunpack.c.l.b16 %v2541
        %v2575 = vunpack.c.l.b16 %v2542
        %v2576 = vunpack.c.h.b16 %v2542
        %v2577 = vunpack.c.l.b16 %v2543
        %v2578 = vunpack.c.l.b16 %v2544
        %v2579 = vunpack.c.h.b16 %v2544
        %v2580 = vunpack.c.l.b16 %v2545
        %v2581 = vpack.c.b16 %v2572, %v2569
        %v2582 = vpack.c.b16 %v2573, %v2570
        %v2583 = vpack.c.b16 %v2574, %v2571
        %v2584 = vpack.c.b16 %v2578, %v2575
        %v2585 = vpack.c.b16 %v2579, %v2576
        %v2586 = vpack.c.b16 %v2580, %v2577
        %2587 = vrot.lane.b32.xlu0 %v2581, 111
        %v2588 = vpop.permute.xlu0 %2587
        %2589 = vrot.lane.b32.xlu0 %v2582, 111
        %v2590 = vpop.permute.xlu0 %2589
        %2591 = vrot.lane.b32.xlu0 %v2583, 111
        %v2592 = vpop.permute.xlu0 %2591
        %2593 = vrot.lane.b32.xlu0 %v2584, 111
        %v2594 = vpop.permute.xlu0 %2593
        %2595 = vrot.lane.b32.xlu0 %v2585, 111
        %v2596 = vpop.permute.xlu0 %2595
        %2597 = vrot.lane.b32.xlu0 %v2586, 111
        %v2598 = vpop.permute.xlu0 %2597
        %v2599 = vsel %vm419, %v2588, %v2590
        %v2600 = vsel %vm419, %v2590, %v2592
        %v2601 = vsel %vm419, %v2594, %v2596
        %v2602 = vsel %vm419, %v2596, %v2598
        %v2608 = vsel %vm509, %v2559, 0
        %v2611 = vsel %vm509, %v2560, 0
        %2613 = vmatpush.bf16.msra.mxu0 0
        %2614 = vmatpush.bf16.msra.mxu0 0
        %2615 = vmatpush.bf16.msra.mxu0 0
        %2616 = vmatpush.bf16.msra.mxu0 0
        %2617 = vmatpush.bf16.msra.mxu0 0
        %2618 = vmatpush.bf16.msra.mxu0 0
        %2619 = vmatpush.bf16.msra.mxu0 %v2601
        %2620 = vmatpush.bf16.msra.mxu0 %v2599
        %2621 = vmatmul.bf16.gmra.mxu0 %v2608
        %v2622 = vpop.f32.mrf.mxu0
        %v2623 = vadd.f32 0.0, %v2622
        %v2624 = vpop.f32.mrf.mxu0
        %v2625 = vadd.f32 0.0, %v2624
        %2626 = vmatmul.bf16.gmra.mxu0 %v2611
        %v2627 = vpop.f32.mrf.mxu0
        %v2628 = vadd.f32 0.0, %v2627
        %v2629 = vpop.f32.mrf.mxu0
        %v2630 = vadd.f32 0.0, %v2629
        %2631 = vdwg.mxu0
        %2632 = vmatpush.bf16.msra.mxu0 0
        %2633 = vmatpush.bf16.msra.mxu0 0
        %2634 = vmatpush.bf16.msra.mxu0 0
        %2635 = vmatpush.bf16.msra.mxu0 0
        %2636 = vmatpush.bf16.msra.mxu0 0
        %2637 = vmatpush.bf16.msra.mxu0 0
        %2638 = vmatpush.bf16.msra.mxu0 %v2602
        %2639 = vmatpush.bf16.msra.mxu0 %v2600
        %2640 = vmatmul.bf16.gmra.mxu0 %v2608
        %v2641 = vpop.f32.mrf.mxu0
        %v2642 = vadd.f32 0.0, %v2641
        %v2643 = vpop.f32.mrf.mxu0
        %v2644 = vadd.f32 0.0, %v2643
        %2645 = vmatmul.bf16.gmra.mxu0 %v2611
        %v2646 = vpop.f32.mrf.mxu0
        %v2647 = vadd.f32 0.0, %v2646
        %v2648 = vpop.f32.mrf.mxu0
        %v2649 = vadd.f32 0.0, %v2648
        %2650 = vdwg.mxu0
        %v2651 = vadd.f32 %v2530, %v2623
        %v2652 = vadd.f32 %v2531, %v2642
        %v2653 = vadd.f32 %v2532, %v2625
        %v2654 = vadd.f32 %v2533, %v2644
        %v2655 = vadd.f32 %v2534, %v2628
        %v2656 = vadd.f32 %v2535, %v2647
        %v2657 = vadd.f32 %v2536, %v2630
        %v2658 = vadd.f32 %v2537, %v2649
        %v2659 = vld [vmem:[%s4] sm:$0xff]
        %v2660 = vld [vmem:[%s4 + $0x8] sm:$0xff]
        %v2661 = vld [vmem:[%s4 + $0x10] sm:$0xff]
        %v2662 = vld [vmem:[%s4 + $0x18] sm:$0xff]
        %2664 = vset.pattern.permute.xlu0 0
        %2665 = vperm.xlu0 %2664, %v2659
        %v2666 = vpop.permute.xlu0 %2665
        %2669 = vset.pattern.permute.xlu0 0
        %2670 = vperm.xlu0 %2669, %v2660
        %v2671 = vpop.permute.xlu0 %2670
        %2674 = vset.pattern.permute.xlu0 0
        %2675 = vperm.xlu0 %2674, %v2661
        %v2676 = vpop.permute.xlu0 %2675
        %2679 = vset.pattern.permute.xlu0 0
        %2680 = vperm.xlu0 %2679, %v2662
        %v2681 = vpop.permute.xlu0 %2680
        %v2683 = vadd.f32 %v2651, %v2666
        %v2684 = vadd.f32 %v2652, %v2666
        %v2685 = vadd.f32 %v2653, %v2671
        %v2686 = vadd.f32 %v2654, %v2671
        %v2687 = vadd.f32 %v2655, %v2676
        %v2688 = vadd.f32 %v2656, %v2676
        %v2689 = vadd.f32 %v2657, %v2681
        %v2690 = vadd.f32 %v2658, %v2681
        %v2691 = vadd.f32 %v2683, %v2684
        %2692 = vadd.xlane.f32.xlu0 %v2691
        %v2693 = vpop.xlane.xlu0 %2692
        %v2694 = vadd.f32 %v2685, %v2686
        %2695 = vadd.xlane.f32.xlu0 %v2694
        %v2696 = vpop.xlane.xlu0 %2695
        %v2697 = vadd.f32 %v2687, %v2688
        %2698 = vadd.xlane.f32.xlu0 %v2697
        %v2699 = vpop.xlane.xlu0 %2698
        %v2700 = vadd.f32 %v2689, %v2690
        %2701 = vadd.xlane.f32.xlu0 %v2700
        %v2702 = vpop.xlane.xlu0 %2701
        %v2703 = vmul.f32 %v2693, 0.00390625
        %v2704 = vmul.f32 %v2696, 0.00390625
        %v2705 = vmul.f32 %v2699, 0.00390625
        %v2706 = vmul.f32 %v2702, 0.00390625
        %v2707 = vld [vmem:[%s5] sm:$0xff]
        %v2708 = vld [vmem:[%s5 + $0x8] sm:$0xff]
        %v2709 = vld [vmem:[%s5 + $0x10] sm:$0xff]
        %v2710 = vld [vmem:[%s5 + $0x18] sm:$0xff]
        %v2711 = vmul.f32 %v2707, %v2703
        %v2712 = vmul.f32 %v2708, %v2704
        %v2713 = vmul.f32 %v2709, %v2705
        %v2714 = vmul.f32 %v2710, %v2706
        %vm2715 = vcmask 31744
        %v2716 = vsel %vm2715, %v2711, 0.0
        %v2717 = vsel %vm2715, %v2712, 0.0
        %v2718 = vadd.f32 %v2716, %v2717
        %v2719 = vsel %vm2715, %v2713, 0.0
        %v2720 = vadd.f32 %v2718, %v2719
        %v2721 = vsel %vm2715, %v2714, 0.0
        %v2722 = vadd.f32 %v2720, %v2721
        %v2723 = vrot.slane %v2722, 4
        %v2724 = vadd.f32 %v2722, %v2723
        %v2725 = vrot.slane %v2724, 2
        %v2726 = vadd.f32 %v2724, %v2725
        %v2727 = vrot.slane %v2726, 1
        %v2728 = vadd.f32 %v2726, %v2727
        %v2729 = vmax.f32 %v2728, 0.0
        %v2730 = vld [vmem:[%s6] sm:$0xff]
        %v2731 = vld [vmem:[%s6 + $0x8] sm:$0xff]
        %v2732 = vld [vmem:[%s6 + $0x10] sm:$0xff]
        %v2733 = vld [vmem:[%s6 + $0x18] sm:$0xff]
        %v2734 = vmul.f32 %v2730, %v2729
        %v2735 = vmul.f32 %v2731, %v2729
        %v2736 = vmul.f32 %v2732, %v2729
        %v2737 = vmul.f32 %v2733, %v2729
        %v2738 = vsel %vm2715, %v2734, 0.0
        %2739 = vadd.xlane.f32.xlu0 %v2738
        %v2740 = vpop.xlane.xlu0 %2739
        %v2741 = vsel %vm2715, %v2735, 0.0
        %2742 = vadd.xlane.f32.xlu0 %v2741
        %v2743 = vpop.xlane.xlu0 %2742
        %v2744 = vsel %vm2715, %v2736, 0.0
        %2745 = vadd.xlane.f32.xlu0 %v2744
        %v2746 = vpop.xlane.xlu0 %2745
        %v2747 = vsel %vm2715, %v2737, 0.0
        %2748 = vadd.xlane.f32.xlu0 %v2747
        %v2749 = vpop.xlane.xlu0 %2748
        %v2750 = vsub.f32 0.0, %v2740
        %v2751 = vsub.f32 0.0, %v2743
        %v2752 = vsub.f32 0.0, %v2746
        %v2753 = vsub.f32 0.0, %v2749
        %v2754 = vmul.f32 %v2750, 1.442695
        %v2755 = vpow.pop %v2754
        %v2756 = vmul.f32 %v2751, 1.442695
        %v2757 = vpow.pop %v2756
        %v2758 = vmul.f32 %v2752, 1.442695
        %v2759 = vpow.pop %v2758
        %v2760 = vmul.f32 %v2753, 1.442695
        %v2761 = vpow.pop %v2760
        %v2762 = vadd.f32 %v2755, 1.0
        %v2763 = vadd.f32 %v2757, 1.0
        %v2764 = vadd.f32 %v2759, 1.0
        %v2765 = vadd.f32 %v2761, 1.0
        %v2766 = vrcp.pop %v2762
        %v2767 = vmul.f32 %v2762, %v2766
        %v2768 = vsub.f32 1.0, %v2767
        %v2769 = vmul.f32 %v2766, %v2768
        %v2770 = vadd.f32 %v2766, %v2769
        %vm2771 = vweird.f32 %v2762
        %vm2772 = vweird.f32 %v2766
        %vm2773 = vmor %vm2771, %vm2772
        %v2774 = vsel %vm2773, %v2766, %v2770
        %v2775 = vand.u32 2147483647, %v2762
        %vm2776 = vcmp.eq.f32.partialorder %v2775, 8.507059e+37
        %v2777 = vand.u32 %v2762, 2147483648
        %v2778 = vor.u32 1.1754944e-38, %v2777
        %v2779 = vsel %vm2776, %v2778, %v2774
        %v2780 = vmul.f32 1.0, %v2779
        %v2781 = vrcp.pop %v2763
        %v2782 = vmul.f32 %v2763, %v2781
        %v2783 = vsub.f32 1.0, %v2782
        %v2784 = vmul.f32 %v2781, %v2783
        %v2785 = vadd.f32 %v2781, %v2784
        %vm2786 = vweird.f32 %v2763
        %vm2787 = vweird.f32 %v2781
        %vm2788 = vmor %vm2786, %vm2787
        %v2789 = vsel %vm2788, %v2781, %v2785
        %v2790 = vand.u32 2147483647, %v2763
        %vm2791 = vcmp.eq.f32.partialorder %v2790, 8.507059e+37
        %v2792 = vand.u32 %v2763, 2147483648
        %v2793 = vor.u32 1.1754944e-38, %v2792
        %v2794 = vsel %vm2791, %v2793, %v2789
        %v2795 = vmul.f32 1.0, %v2794
        %v2796 = vrcp.pop %v2764
        %v2797 = vmul.f32 %v2764, %v2796
        %v2798 = vsub.f32 1.0, %v2797
        %v2799 = vmul.f32 %v2796, %v2798
        %v2800 = vadd.f32 %v2796, %v2799
        %vm2801 = vweird.f32 %v2764
        %vm2802 = vweird.f32 %v2796
        %vm2803 = vmor %vm2801, %vm2802
        %v2804 = vsel %vm2803, %v2796, %v2800
        %v2805 = vand.u32 2147483647, %v2764
        %vm2806 = vcmp.eq.f32.partialorder %v2805, 8.507059e+37
        %v2807 = vand.u32 %v2764, 2147483648
        %v2808 = vor.u32 1.1754944e-38, %v2807
        %v2809 = vsel %vm2806, %v2808, %v2804
        %v2810 = vmul.f32 1.0, %v2809
        %v2811 = vrcp.pop %v2765
        %v2812 = vmul.f32 %v2765, %v2811
        %v2813 = vsub.f32 1.0, %v2812
        %v2814 = vmul.f32 %v2811, %v2813
        %v2815 = vadd.f32 %v2811, %v2814
        %vm2816 = vweird.f32 %v2765
        %vm2817 = vweird.f32 %v2811
        %vm2818 = vmor %vm2816, %vm2817
        %v2819 = vsel %vm2818, %v2811, %v2815
        %v2820 = vand.u32 2147483647, %v2765
        %vm2821 = vcmp.eq.f32.partialorder %v2820, 8.507059e+37
        %v2822 = vand.u32 %v2765, 2147483648
        %v2823 = vor.u32 1.1754944e-38, %v2822
        %v2824 = vsel %vm2821, %v2823, %v2819
        %v2825 = vmul.f32 1.0, %v2824
        %v2826 = vmul.f32 %v2780, 0.1
        %v2827 = vmul.f32 %v2795, 0.1
        %v2828 = vmul.f32 %v2810, 0.1
        %v2829 = vmul.f32 %v2825, 0.1
        %v2830 = vmul.f32 %v2683, %v2826
        %v2831 = vmul.f32 %v2684, %v2826
        %v2832 = vmul.f32 %v2685, %v2827
        %v2833 = vmul.f32 %v2686, %v2827
        %v2834 = vmul.f32 %v2687, %v2828
        %v2835 = vmul.f32 %v2688, %v2828
        %v2836 = vmul.f32 %v2689, %v2829
        %v2837 = vmul.f32 %v2690, %v2829
        %v2838 = vld [vmem:[%s364] sm:$0xff]
        %v2839 = vld [vmem:[%s364 + $0x8] sm:$0xff]
        %v2840 = vld [vmem:[%s364 + $0x10] sm:$0xff]
        %v2841 = vld [vmem:[%s364 + $0x18] sm:$0xff]
        %v2842 = vld [vmem:[%s364 + $0x20] sm:$0xff]
        %v2843 = vld [vmem:[%s364 + $0x28] sm:$0xff]
        %v2844 = vld [vmem:[%s364 + $0x30] sm:$0xff]
        %v2845 = vld [vmem:[%s364 + $0x38] sm:$0xff]
        %v2846 = vadd.f32 %v2830, %v2838
        %v2847 = vadd.f32 %v2831, %v2839
        %v2848 = vadd.f32 %v2832, %v2840
        %v2849 = vadd.f32 %v2833, %v2841
        %v2850 = vadd.f32 %v2834, %v2842
        %v2851 = vadd.f32 %v2835, %v2843
        %v2852 = vadd.f32 %v2836, %v2844
        %v2853 = vadd.f32 %v2837, %v2845
        %2854 = vst [vmem:[%s359] sm:$0xff] %v2846
        %2855 = vst [vmem:[%s359 + $0x8] sm:$0xff] %v2847
        %2856 = vst [vmem:[%s359 + $0x10] sm:$0xff] %v2848
        %2857 = vst [vmem:[%s359 + $0x18] sm:$0xff] %v2849
        %2858 = vst [vmem:[%s359 + $0x20] sm:$0xff] %v2850
        %2859 = vst [vmem:[%s359 + $0x28] sm:$0xff] %v2851
        %2860 = vst [vmem:[%s359 + $0x30] sm:$0xff] %v2852
        %2861 = vst [vmem:[%s359 + $0x38] sm:$0xff] %v2853
        %s2862 = sand.u32 %s227, 1
        %s2863 = scalar_lea.sflag [#allocation5], %s2862
        %s2864 = sand.u32 %s227, 1
        %s2865 = smul.addr %s2864, 64
        %s2866 = scalar_lea.vmem [#allocation8], %s2865
        // Predicated region
        $region65: #{tpu_custom_call.1} parent=55 // pred_check
          %p2867 = pneg %p237
        $region66: #{tpu_custom_call.1} parent=55 // pred_check_branch
          %2869 = sbr.rel (%p2867) target = $region68
        $region67: #{tpu_custom_call.1} parent=55 // pred_region
          %2871 = vsyncadd %s2863, 0
          %s2872 = smul.addr %s25, 8
          %s2873 = smul.addr %s2872, 8
          %s2874 = scalar_lea.hbm %s9, %s2873
          %s2875 = sshll.u32 %s2866, 4
          %s2876 = int_to_ptr.vmem [resolvable:$true] %s2875
          %s2877 = sshll.u32 %s2874, 4
          %s2878 = int_to_ptr.hbm [resolvable:$true] %s2877
          %2883 = dma.vmem_to_hbm [thread:$0]  %s2876, 1024, %s2878, %s2863, 256, 256, 16
        $region68: #{tpu_custom_call.1} parent=55 // pred_fallthru
          _
      $region56: #{tpu_custom_call.1} parent=5 // pred_fallthru
        _
      %p2884 = scmp.le.s32.totalorder 2, %s20
      // Predicated region
      $region69: #{tpu_custom_call.1} parent=5 // pred_check
        %p2885 = pneg %p2884
      $region70: #{tpu_custom_call.1} parent=5 // pred_check_branch
        %2887 = sbr.rel (%p2885) target = $region72
      $region71: #{tpu_custom_call.1} parent=5 // pred_region
        %s2888 = ssub.s32 %s20, 2
        // Predicated region
        $region73: #{tpu_custom_call.1} parent=71 // pred_check
          %p2889 = pneg %p243
        $region74: #{tpu_custom_call.1} parent=71 // pred_check_branch
          %2891 = sbr.rel (%p2889) target = $region76
        $region75: #{tpu_custom_call.1} parent=71 // pred_region
          %s2892 = sand.u32 %s228, 1
          %s2893 = scalar_lea.sflag [#allocation5], %s2892
          %s2894 = sand.u32 %s228, 1
          %s2895 = smul.addr %s2894, 64
          %s2896 = scalar_lea.vmem [#allocation8], %s2895
          %2898 = dma.done %s2893, 1024
        $region76: #{tpu_custom_call.1} parent=71 // pred_fallthru
          _
      $region72: #{tpu_custom_call.1} parent=5 // pred_fallthru
        _
    $region6: #{tpu_custom_call.1} parent=1 // loop_footer
      %s24 = sadd.s32 1, %s20
    $region7: #{tpu_custom_call.1} parent=1 // loop_footer_branch
      %19 = sbr.rel target = $region3
    $region8: #{tpu_custom_call.1} parent=1 // loop_exit
      _
    %2899 = vsyncpa [#allocation4], 1
    %s2900 = scalar_lea.sflag [#allocation4], 1
    %2901 = vsyncpa %s2900, 1
    %2902 = vsyncpa [#allocation7], 1
    %2903 = vsyncpa [#allocation5], 1
    %s2904 = scalar_lea.sflag [#allocation5], 1
    %2905 = vsyncpa %s2904, 1

</llo_original>
